<compile_context>
chip_gen: v5e
topology: v5e:2x2
jax: 0.10.0
libtpu: 0.0.40
codegen_flags: <defaults>
</compile_context>

<pallas_src>
import math

import numpy as np
import jax
import jax.numpy as jnp
from jax.experimental import pallas as pl
from jax.experimental.pallas import tpu as pltpu


# (kernel_size, stride, padding, output_padding) for deconv1..deconv4
_LAYER_CFG = [
    (5, 2, 2, 1),
    (3, 2, 2, 1),
    (4, 2, 2, 1),
    (3, 2, 2, 1),
]


def _deconv_out_len(l_in, k, s, p, op):
    return (l_in - 1) * s - 2 * p + k + op


# ----------------------------------------------------------------------------
# Fused kernel: whole decoder, whole batch, single invocation (no grid).
# Activations are kept as (C, N*L): channels on sublanes, batch*length on lanes.
# Each ConvTranspose1d:
#     V   = Wt_cat @ h                (1 matmul,  Wt_cat is (K*C_out, C_in))
#     out = sum_m V[m*C_out:(m+1)*C_out, :] @ At_m  + b   (K matmuls; At_m is the 0/1
#           tap-scatter matrix, block-diagonal over batch, shape (N*L_in, N*L_out))
# ----------------------------------------------------------------------------
def _decoder_kernel(x_ref,
                    at1_ref, wt1_ref, b1_ref,
                    at2_ref, wt2_ref, b2_ref,
                    at3_ref, wt3_ref, b3_ref,
                    at4_ref, wt4_ref, b4_ref,
                    o_ref, xcat_ref, ocat_ref):
    n = x_ref.shape[0]
    l0 = x_ref.shape[2]
    l4 = o_ref.shape[2]

    # Pack the NCL input into one (C_latent, N*L0) slab: pure sliced VMEM stores,
    # no transpose anywhere (input is already channels-major per batch element).
    for i in range(n):                                    # static unroll, N is small
        xcat_ref[:, pl.ds(i * l0, l0)] = x_ref[i]

    def deconv(h, at_ref, wt_ref, b_ref, relu):
        # h: (C_in, N*L_in) bf16 ; wt: (K*C_out, C_in) bf16 ;
        # at: (K, N*L_in, N*L_out) bf16 (0/1, block-diag over batch) ; b: (C_out, 1) f32
        k = at_ref.shape[0]
        c_out = b_ref.shape[0]
        v = jnp.dot(wt_ref[...], h, preferred_element_type=jnp.float32)   # (K*C_out, N*L_in)
        v = v.astype(jnp.bfloat16)
        acc = jnp.dot(v[0:c_out, :], at_ref[0], preferred_element_type=jnp.float32)
        for m in range(1, k):                             # static unroll, K in {3,4,5}
            acc = acc + jnp.dot(v[m * c_out:(m + 1) * c_out, :], at_ref[m],
                                preferred_element_type=jnp.float32)
        acc = acc + b_ref[...]                            # (C_out,1) broadcast over lanes
        return jnp.maximum(acc, 0.0) if relu else acc

    h = xcat_ref[...].astype(jnp.bfloat16)
    h = deconv(h, at1_ref, wt1_ref, b1_ref, relu=True).astype(jnp.bfloat16)
    h = deconv(h, at2_ref, wt2_ref, b2_ref, relu=True).astype(jnp.bfloat16)
    h = deconv(h, at3_ref, wt3_ref, b3_ref, relu=True).astype(jnp.bfloat16)
    ocat_ref[...] = deconv(h, at4_ref, wt4_ref, b4_ref, relu=False)       # (C4, N*L4) f32

    # Write PyTorch NCL output directly (one lane-slice per batch element).
    for i in range(n):
        o_ref[i, :, :] = ocat_ref[:, pl.ds(i * l4, l4)]


# ----------------------------------------------------------------------------
# Host-side parameter preparation (done once, outside the hot path)
# ----------------------------------------------------------------------------
def _tap_select_matrices(l_in, l_out, k, stride, padding):
    """A[m, j, t] = 1 iff j == t*stride - padding + m (PyTorch ConvTranspose1d rule)."""
    a = np.zeros((k, l_out, l_in), np.float32)
    t = np.arange(l_in)
    for m in range(k):
        j = t * stride - padding + m
        valid = (j >= 0) & (j < l_out)
        a[m, j[valid], t[valid]] = 1.0
    return a


def init_raw_params(key, num_tracts=48, latent_dims=20):
    """PyTorch-layout ConvTranspose1d params: weight (C_in, C_out, K), bias (C_out,)."""
    cfgs = [
        (latent_dims, 64, 5),
        (64, 32, 3),
        (32, 16, 4),
        (16, num_tracts, 3),
    ]
    ks = jax.random.split(key, 2 * len(cfgs))
    raw = []
    for i, (cin, cout, k) in enumerate(cfgs):
        bound = 1.0 / math.sqrt(cout * k)
        w = jax.random.uniform(ks[2 * i], (cin, cout, k), jnp.float32, -bound, bound)
        b = jax.random.uniform(ks[2 * i + 1], (cout,), jnp.float32, -bound, bound)
        raw.append((w, b))
    return raw


def prepare_params(raw, l0, batch):
    """Precompute MXU-friendly constants.

    at{i}: (K, B*L_in, B*L_out) bf16, transposed 0/1 tap scatter, block-diag over batch.
    wt{i}: (K*C_out, C_in)      bf16, rows ordered (tap, c_out):  wt[m*C_out+o, c] = W[c,o,m].
    b{i}:  (C_out, 1)           f32.
    """
    params = {}
    l_in = l0
    eye = np.eye(batch, dtype=np.float32)
    for i, ((w, b), (k, s, p, op)) in enumerate(zip(raw, _LAYER_CFG), start=1):
        c_in, c_out, _ = w.shape
        l_out = _deconv_out_len(l_in, k, s, p, op)
        a = _tap_select_matrices(l_in, l_out, k, s, p)              # (K, L_out, L_in)
        at = np.transpose(a, (0, 2, 1))                             # (K, L_in, L_out)
        at_bd = np.stack([np.kron(eye, at[m]) for m in range(k)])   # (K, B*L_in, B*L_out)
        params[f"at{i}"] = jnp.asarray(at_bd, dtype=jnp.bfloat16)   # 0/1 -> exact in bf16
        wt = np.transpose(np.asarray(w), (2, 1, 0)).reshape(k * c_out, c_in)
        params[f"wt{i}"] = jnp.asarray(wt, dtype=jnp.bfloat16)
        params[f"b{i}"] = jnp.asarray(np.asarray(b).reshape(c_out, 1), dtype=jnp.float32)
        l_in = l_out
    return params


# ----------------------------------------------------------------------------
# Forward pass (jitted): x is PyTorch-style NCL (N, latent_dims, L0)
# ----------------------------------------------------------------------------
@jax.jit
def conv1d_decoder(params, x):
    n, c_lat, l0 = x.shape
    c4 = params["b4"].shape[0]
    l4 = params["at4"].shape[2] // n

    args = [x]
    flops = 0
    bytes_accessed = x.size * 4 + n * c4 * l4 * 4
    for i in range(1, 5):
        at, wt, b = params[f"at{i}"], params[f"wt{i}"], params[f"b{i}"]
        k, bl_in, bl_out = at.shape
        kc_out, c_in = wt.shape
        flops += 2 * kc_out * c_in * bl_in + 2 * kc_out * bl_in * bl_out
        bytes_accessed += at.size * 2 + wt.size * 2 + b.size * 4
        args += [at, wt, b]

    return pl.pallas_call(
        _decoder_kernel,
        out_shape=jax.ShapeDtypeStruct((n, c4, l4), jnp.float32),
        scratch_shapes=[
            pltpu.VMEM((c_lat, n * l0), jnp.float32),   # packed input slab
            pltpu.VMEM((c4, n * l4), jnp.float32),      # packed output slab
        ],
        cost_estimate=pl.CostEstimate(flops=int(flops), transcendentals=0,
                                      bytes_accessed=int(bytes_accessed)),
    )(*args)


# ----------------------------------------------------------------------------
# Pure-JAX reference (direct ConvTranspose1d definition) for self-check
# ----------------------------------------------------------------------------
def _reference_decoder(raw, x):
    h = x
    n_layers = len(raw)
    for i, ((w, b), (k, s, p, op)) in enumerate(zip(raw, _LAYER_CFG)):
        n, c_in, l_in = h.shape
        c_out = w.shape[1]
        l_out = _deconv_out_len(l_in, k, s, p, op)
        full_len = (l_in - 1) * s + k
        full = jnp.zeros((n, c_out, full_len), jnp.float32)
        for m in range(k):
            contrib = jnp.einsum("ncl,co->nol", h, w[:, :, m])      # (N, C_out, L_in)
            stop = m + s * (l_in - 1) + 1
            full = full.at[:, :, m:stop:s].add(contrib)
        out = full[:, :, p:p + l_out] + b[None, :, None]
        if i < n_layers - 1:
            out = jnp.maximum(out, 0.0)
        h = out
    return h


if __name__ == "__main__":
    key = jax.random.PRNGKey(0)
    k_param, k_input = jax.random.split(key)

    num_tracts = 48
    latent_dims = 20
    batch = 2
    l0 = 13   # decoder input length (matches the paired encoder's final conv length)

    raw = init_raw_params(k_param, num_tracts=num_tracts, latent_dims=latent_dims)
    params = prepare_params(raw, l0, batch)
    x = jax.random.normal(k_input, (batch, latent_dims, l0), dtype=jnp.float32)

    out = conv1d_decoder(params, x)
    jax.block_until_ready(out)

    # L: 13 -> 26 -> 50 -> 99 -> 196
    assert out.shape == (batch, num_tracts, 196), out.shape

    ref = _reference_decoder(raw, x)
    err = float(jnp.max(jnp.abs(out - ref)))
    # bf16 MXU inputs with f32 accumulation -> loosened parity tolerance vs f32 reference.
    assert err < 2e-2, f"kernel vs reference mismatch: max abs err = {err}"

    print("KERNEL_OK")
</pallas_src>

<mosaic_0001>
module attributes {stable_mosaic.version = 11 : i64} {
  func.func @_decoder_kernel(%arg0: memref<2x20x13xf32, #tpu.memory_space<vmem>>, %arg1: memref<5x26x52xbf16, #tpu.memory_space<vmem>>, %arg2: memref<320x20xbf16, #tpu.memory_space<vmem>>, %arg3: memref<64x1xf32, #tpu.memory_space<vmem>>, %arg4: memref<3x52x100xbf16, #tpu.memory_space<vmem>>, %arg5: memref<96x64xbf16, #tpu.memory_space<vmem>>, %arg6: memref<32x1xf32, #tpu.memory_space<vmem>>, %arg7: memref<4x100x198xbf16, #tpu.memory_space<vmem>>, %arg8: memref<64x32xbf16, #tpu.memory_space<vmem>>, %arg9: memref<16x1xf32, #tpu.memory_space<vmem>>, %arg10: memref<3x198x392xbf16, #tpu.memory_space<vmem>>, %arg11: memref<144x16xbf16, #tpu.memory_space<vmem>>, %arg12: memref<48x1xf32, #tpu.memory_space<vmem>>, %arg13: memref<2x48x196xf32, #tpu.memory_space<vmem>>, %arg14: memref<20x26xf32, #tpu.memory_space<vmem>>, %arg15: memref<48x392xf32, #tpu.memory_space<vmem>>) attributes {dimension_semantics = [], scalar_prefetch = 0 : i64, scratch_operands = 2 : i64, tpu.core_type = #tpu.core_type<tc>} {
    %c0 = arith.constant 0 : index
    %c0_0 = arith.constant 0 : index
    %c0_1 = arith.constant 0 : index
    %0 = vector.load %arg0[%c0, %c0_0, %c0_1] : memref<2x20x13xf32, #tpu.memory_space<vmem>>, vector<1x20x13xf32>
    %1 = vector.shape_cast %0 : vector<1x20x13xf32> to vector<20x13xf32>
    %c0_2 = arith.constant 0 : index
    %c0_3 = arith.constant 0 : index
    %2 = vector.load %arg14[%c0_2, %c0_3] : memref<20x26xf32, #tpu.memory_space<vmem>>, vector<20x13xf32>
    tpu.vector_store %arg14[%c0_2, %c0_3], %1 {strides = array<i32>} : memref<20x26xf32, #tpu.memory_space<vmem>>, vector<20x13xf32>,
    %c1 = arith.constant 1 : index
    %c0_4 = arith.constant 0 : index
    %c0_5 = arith.constant 0 : index
    %3 = vector.load %arg0[%c1, %c0_4, %c0_5] : memref<2x20x13xf32, #tpu.memory_space<vmem>>, vector<1x20x13xf32>
    %4 = vector.shape_cast %3 : vector<1x20x13xf32> to vector<20x13xf32>
    %c0_6 = arith.constant 0 : index
    %c13 = arith.constant 13 : index
    %5 = vector.load %arg14[%c0_6, %c13] : memref<20x26xf32, #tpu.memory_space<vmem>>, vector<20x13xf32>
    tpu.vector_store %arg14[%c0_6, %c13], %4 {strides = array<i32>} : memref<20x26xf32, #tpu.memory_space<vmem>>, vector<20x13xf32>,
    %c0_7 = arith.constant 0 : index
    %c0_8 = arith.constant 0 : index
    %6 = vector.load %arg14[%c0_7, %c0_8] : memref<20x26xf32, #tpu.memory_space<vmem>>, vector<20x26xf32>
    %7 = arith.truncf %6 : vector<20x26xf32> to vector<20x26xbf16>
    %c0_9 = arith.constant 0 : index
    %c0_10 = arith.constant 0 : index
    %8 = vector.load %arg2[%c0_9, %c0_10] : memref<320x20xbf16, #tpu.memory_space<vmem>>, vector<320x20xbf16>
    %cst = arith.constant dense<0.000000e+00> : vector<320x26xf32>
    %9 = tpu.matmul %8, %7, %cst {dimension_numbers = #tpu.dot_dimension_numbers<[1], [0], [0], [1], [0, 0, 1, 1], [], []>} : vector<320x20xbf16>, vector<20x26xbf16>, vector<320x26xf32> -> vector<320x26xf32>
    %10 = arith.truncf %9 : vector<320x26xf32> to vector<320x26xbf16>
    %11 = vector.extract_strided_slice %10 {offsets = [0, 0], sizes = [64, 26], strides = [1, 1]} : vector<320x26xbf16> to vector<64x26xbf16>
    %c0_11 = arith.constant 0 : index
    %c0_12 = arith.constant 0 : index
    %c0_13 = arith.constant 0 : index
    %12 = vector.load %arg1[%c0_11, %c0_12, %c0_13] : memref<5x26x52xbf16, #tpu.memory_space<vmem>>, vector<1x26x52xbf16>
    %13 = vector.shape_cast %12 : vector<1x26x52xbf16> to vector<26x52xbf16>
    %cst_14 = arith.constant dense<0.000000e+00> : vector<64x52xf32>
    %14 = tpu.matmul %11, %13, %cst_14 {dimension_numbers = #tpu.dot_dimension_numbers<[1], [0], [0], [1], [0, 0, 1, 1], [], []>} : vector<64x26xbf16>, vector<26x52xbf16>, vector<64x52xf32> -> vector<64x52xf32>
    %15 = vector.extract_strided_slice %10 {offsets = [64, 0], sizes = [64, 26], strides = [1, 1]} : vector<320x26xbf16> to vector<64x26xbf16>
    %c1_15 = arith.constant 1 : index
    %c0_16 = arith.constant 0 : index
    %c0_17 = arith.constant 0 : index
    %16 = vector.load %arg1[%c1_15, %c0_16, %c0_17] : memref<5x26x52xbf16, #tpu.memory_space<vmem>>, vector<1x26x52xbf16>
    %17 = vector.shape_cast %16 : vector<1x26x52xbf16> to vector<26x52xbf16>
    %cst_18 = arith.constant dense<0.000000e+00> : vector<64x52xf32>
    %18 = tpu.matmul %15, %17, %cst_18 {dimension_numbers = #tpu.dot_dimension_numbers<[1], [0], [0], [1], [0, 0, 1, 1], [], []>} : vector<64x26xbf16>, vector<26x52xbf16>, vector<64x52xf32> -> vector<64x52xf32>
    %19 = arith.addf %14, %18 : vector<64x52xf32>
    %20 = vector.extract_strided_slice %10 {offsets = [128, 0], sizes = [64, 26], strides = [1, 1]} : vector<320x26xbf16> to vector<64x26xbf16>
    %c2 = arith.constant 2 : index
    %c0_19 = arith.constant 0 : index
    %c0_20 = arith.constant 0 : index
    %21 = vector.load %arg1[%c2, %c0_19, %c0_20] : memref<5x26x52xbf16, #tpu.memory_space<vmem>>, vector<1x26x52xbf16>
    %22 = vector.shape_cast %21 : vector<1x26x52xbf16> to vector<26x52xbf16>
    %cst_21 = arith.constant dense<0.000000e+00> : vector<64x52xf32>
    %23 = tpu.matmul %20, %22, %cst_21 {dimension_numbers = #tpu.dot_dimension_numbers<[1], [0], [0], [1], [0, 0, 1, 1], [], []>} : vector<64x26xbf16>, vector<26x52xbf16>, vector<64x52xf32> -> vector<64x52xf32>
    %24 = arith.addf %19, %23 : vector<64x52xf32>
    %25 = vector.extract_strided_slice %10 {offsets = [192, 0], sizes = [64, 26], strides = [1, 1]} : vector<320x26xbf16> to vector<64x26xbf16>
    %c3 = arith.constant 3 : index
    %c0_22 = arith.constant 0 : index
    %c0_23 = arith.constant 0 : index
    %26 = vector.load %arg1[%c3, %c0_22, %c0_23] : memref<5x26x52xbf16, #tpu.memory_space<vmem>>, vector<1x26x52xbf16>
    %27 = vector.shape_cast %26 : vector<1x26x52xbf16> to vector<26x52xbf16>
    %cst_24 = arith.constant dense<0.000000e+00> : vector<64x52xf32>
    %28 = tpu.matmul %25, %27, %cst_24 {dimension_numbers = #tpu.dot_dimension_numbers<[1], [0], [0], [1], [0, 0, 1, 1], [], []>} : vector<64x26xbf16>, vector<26x52xbf16>, vector<64x52xf32> -> vector<64x52xf32>
    %29 = arith.addf %24, %28 : vector<64x52xf32>
    %30 = vector.extract_strided_slice %10 {offsets = [256, 0], sizes = [64, 26], strides = [1, 1]} : vector<320x26xbf16> to vector<64x26xbf16>
    %c4 = arith.constant 4 : index
    %c0_25 = arith.constant 0 : index
    %c0_26 = arith.constant 0 : index
    %31 = vector.load %arg1[%c4, %c0_25, %c0_26] : memref<5x26x52xbf16, #tpu.memory_space<vmem>>, vector<1x26x52xbf16>
    %32 = vector.shape_cast %31 : vector<1x26x52xbf16> to vector<26x52xbf16>
    %cst_27 = arith.constant dense<0.000000e+00> : vector<64x52xf32>
    %33 = tpu.matmul %30, %32, %cst_27 {dimension_numbers = #tpu.dot_dimension_numbers<[1], [0], [0], [1], [0, 0, 1, 1], [], []>} : vector<64x26xbf16>, vector<26x52xbf16>, vector<64x52xf32> -> vector<64x52xf32>
    %34 = arith.addf %29, %33 : vector<64x52xf32>
    %c0_28 = arith.constant 0 : index
    %c0_29 = arith.constant 0 : index
    %35 = vector.load %arg3[%c0_28, %c0_29] : memref<64x1xf32, #tpu.memory_space<vmem>>, vector<64x1xf32>
    %36 = vector.broadcast %35 : vector<64x1xf32> to vector<64x52xf32>
    %37 = arith.addf %34, %36 : vector<64x52xf32>
    %cst_30 = arith.constant 0.000000e+00 : f32
    %38 = vector.broadcast %cst_30 : f32 to vector<64x52xf32>
    %39 = arith.maximumf %37, %38 : vector<64x52xf32>
    %40 = arith.truncf %39 : vector<64x52xf32> to vector<64x52xbf16>
    %c0_31 = arith.constant 0 : index
    %c0_32 = arith.constant 0 : index
    %41 = vector.load %arg5[%c0_31, %c0_32] : memref<96x64xbf16, #tpu.memory_space<vmem>>, vector<96x64xbf16>
    %cst_33 = arith.constant dense<0.000000e+00> : vector<96x52xf32>
    %42 = tpu.matmul %41, %40, %cst_33 {dimension_numbers = #tpu.dot_dimension_numbers<[1], [0], [0], [1], [0, 0, 1, 1], [], []>} : vector<96x64xbf16>, vector<64x52xbf16>, vector<96x52xf32> -> vector<96x52xf32>
    %43 = arith.truncf %42 : vector<96x52xf32> to vector<96x52xbf16>
    %44 = vector.extract_strided_slice %43 {offsets = [0, 0], sizes = [32, 52], strides = [1, 1]} : vector<96x52xbf16> to vector<32x52xbf16>
    %c0_34 = arith.constant 0 : index
    %c0_35 = arith.constant 0 : index
    %c0_36 = arith.constant 0 : index
    %45 = vector.load %arg4[%c0_34, %c0_35, %c0_36] : memref<3x52x100xbf16, #tpu.memory_space<vmem>>, vector<1x52x100xbf16>
    %46 = vector.shape_cast %45 : vector<1x52x100xbf16> to vector<52x100xbf16>
    %cst_37 = arith.constant dense<0.000000e+00> : vector<32x100xf32>
    %47 = tpu.matmul %44, %46, %cst_37 {dimension_numbers = #tpu.dot_dimension_numbers<[1], [0], [0], [1], [0, 0, 1, 1], [], []>} : vector<32x52xbf16>, vector<52x100xbf16>, vector<32x100xf32> -> vector<32x100xf32>
    %48 = vector.extract_strided_slice %43 {offsets = [32, 0], sizes = [32, 52], strides = [1, 1]} : vector<96x52xbf16> to vector<32x52xbf16>
    %c1_38 = arith.constant 1 : index
    %c0_39 = arith.constant 0 : index
    %c0_40 = arith.constant 0 : index
    %49 = vector.load %arg4[%c1_38, %c0_39, %c0_40] : memref<3x52x100xbf16, #tpu.memory_space<vmem>>, vector<1x52x100xbf16>
    %50 = vector.shape_cast %49 : vector<1x52x100xbf16> to vector<52x100xbf16>
    %cst_41 = arith.constant dense<0.000000e+00> : vector<32x100xf32>
    %51 = tpu.matmul %48, %50, %cst_41 {dimension_numbers = #tpu.dot_dimension_numbers<[1], [0], [0], [1], [0, 0, 1, 1], [], []>} : vector<32x52xbf16>, vector<52x100xbf16>, vector<32x100xf32> -> vector<32x100xf32>
    %52 = arith.addf %47, %51 : vector<32x100xf32>
    %53 = vector.extract_strided_slice %43 {offsets = [64, 0], sizes = [32, 52], strides = [1, 1]} : vector<96x52xbf16> to vector<32x52xbf16>
    %c2_42 = arith.constant 2 : index
    %c0_43 = arith.constant 0 : index
    %c0_44 = arith.constant 0 : index
    %54 = vector.load %arg4[%c2_42, %c0_43, %c0_44] : memref<3x52x100xbf16, #tpu.memory_space<vmem>>, vector<1x52x100xbf16>
    %55 = vector.shape_cast %54 : vector<1x52x100xbf16> to vector<52x100xbf16>
    %cst_45 = arith.constant dense<0.000000e+00> : vector<32x100xf32>
    %56 = tpu.matmul %53, %55, %cst_45 {dimension_numbers = #tpu.dot_dimension_numbers<[1], [0], [0], [1], [0, 0, 1, 1], [], []>} : vector<32x52xbf16>, vector<52x100xbf16>, vector<32x100xf32> -> vector<32x100xf32>
    %57 = arith.addf %52, %56 : vector<32x100xf32>
    %c0_46 = arith.constant 0 : index
    %c0_47 = arith.constant 0 : index
    %58 = vector.load %arg6[%c0_46, %c0_47] : memref<32x1xf32, #tpu.memory_space<vmem>>, vector<32x1xf32>
    %59 = vector.broadcast %58 : vector<32x1xf32> to vector<32x100xf32>
    %60 = arith.addf %57, %59 : vector<32x100xf32>
    %cst_48 = arith.constant 0.000000e+00 : f32
    %61 = vector.broadcast %cst_48 : f32 to vector<32x100xf32>
    %62 = arith.maximumf %60, %61 : vector<32x100xf32>
    %63 = arith.truncf %62 : vector<32x100xf32> to vector<32x100xbf16>
    %c0_49 = arith.constant 0 : index
    %c0_50 = arith.constant 0 : index
    %64 = vector.load %arg8[%c0_49, %c0_50] : memref<64x32xbf16, #tpu.memory_space<vmem>>, vector<64x32xbf16>
    %cst_51 = arith.constant dense<0.000000e+00> : vector<64x100xf32>
    %65 = tpu.matmul %64, %63, %cst_51 {dimension_numbers = #tpu.dot_dimension_numbers<[1], [0], [0], [1], [0, 0, 1, 1], [], []>} : vector<64x32xbf16>, vector<32x100xbf16>, vector<64x100xf32> -> vector<64x100xf32>
    %66 = arith.truncf %65 : vector<64x100xf32> to vector<64x100xbf16>
    %67 = vector.extract_strided_slice %66 {offsets = [0, 0], sizes = [16, 100], strides = [1, 1]} : vector<64x100xbf16> to vector<16x100xbf16>
    %c0_52 = arith.constant 0 : index
    %c0_53 = arith.constant 0 : index
    %c0_54 = arith.constant 0 : index
    %68 = vector.load %arg7[%c0_52, %c0_53, %c0_54] : memref<4x100x198xbf16, #tpu.memory_space<vmem>>, vector<1x100x198xbf16>
    %69 = vector.shape_cast %68 : vector<1x100x198xbf16> to vector<100x198xbf16>
    %cst_55 = arith.constant dense<0.000000e+00> : vector<16x198xf32>
    %70 = tpu.matmul %67, %69, %cst_55 {dimension_numbers = #tpu.dot_dimension_numbers<[1], [0], [0], [1], [0, 0, 1, 1], [], []>} : vector<16x100xbf16>, vector<100x198xbf16>, vector<16x198xf32> -> vector<16x198xf32>
    %71 = vector.extract_strided_slice %66 {offsets = [16, 0], sizes = [16, 100], strides = [1, 1]} : vector<64x100xbf16> to vector<16x100xbf16>
    %c1_56 = arith.constant 1 : index
    %c0_57 = arith.constant 0 : index
    %c0_58 = arith.constant 0 : index
    %72 = vector.load %arg7[%c1_56, %c0_57, %c0_58] : memref<4x100x198xbf16, #tpu.memory_space<vmem>>, vector<1x100x198xbf16>
    %73 = vector.shape_cast %72 : vector<1x100x198xbf16> to vector<100x198xbf16>
    %cst_59 = arith.constant dense<0.000000e+00> : vector<16x198xf32>
    %74 = tpu.matmul %71, %73, %cst_59 {dimension_numbers = #tpu.dot_dimension_numbers<[1], [0], [0], [1], [0, 0, 1, 1], [], []>} : vector<16x100xbf16>, vector<100x198xbf16>, vector<16x198xf32> -> vector<16x198xf32>
    %75 = arith.addf %70, %74 : vector<16x198xf32>
    %76 = vector.extract_strided_slice %66 {offsets = [32, 0], sizes = [16, 100], strides = [1, 1]} : vector<64x100xbf16> to vector<16x100xbf16>
    %c2_60 = arith.constant 2 : index
    %c0_61 = arith.constant 0 : index
    %c0_62 = arith.constant 0 : index
    %77 = vector.load %arg7[%c2_60, %c0_61, %c0_62] : memref<4x100x198xbf16, #tpu.memory_space<vmem>>, vector<1x100x198xbf16>
    %78 = vector.shape_cast %77 : vector<1x100x198xbf16> to vector<100x198xbf16>
    %cst_63 = arith.constant dense<0.000000e+00> : vector<16x198xf32>
    %79 = tpu.matmul %76, %78, %cst_63 {dimension_numbers = #tpu.dot_dimension_numbers<[1], [0], [0], [1], [0, 0, 1, 1], [], []>} : vector<16x100xbf16>, vector<100x198xbf16>, vector<16x198xf32> -> vector<16x198xf32>
    %80 = arith.addf %75, %79 : vector<16x198xf32>
    %81 = vector.extract_strided_slice %66 {offsets = [48, 0], sizes = [16, 100], strides = [1, 1]} : vector<64x100xbf16> to vector<16x100xbf16>
    %c3_64 = arith.constant 3 : index
    %c0_65 = arith.constant 0 : index
    %c0_66 = arith.constant 0 : index
    %82 = vector.load %arg7[%c3_64, %c0_65, %c0_66] : memref<4x100x198xbf16, #tpu.memory_space<vmem>>, vector<1x100x198xbf16>
    %83 = vector.shape_cast %82 : vector<1x100x198xbf16> to vector<100x198xbf16>
    %cst_67 = arith.constant dense<0.000000e+00> : vector<16x198xf32>
    %84 = tpu.matmul %81, %83, %cst_67 {dimension_numbers = #tpu.dot_dimension_numbers<[1], [0], [0], [1], [0, 0, 1, 1], [], []>} : vector<16x100xbf16>, vector<100x198xbf16>, vector<16x198xf32> -> vector<16x198xf32>
    %85 = arith.addf %80, %84 : vector<16x198xf32>
    %c0_68 = arith.constant 0 : index
    %c0_69 = arith.constant 0 : index
    %86 = vector.load %arg9[%c0_68, %c0_69] : memref<16x1xf32, #tpu.memory_space<vmem>>, vector<16x1xf32>
    %87 = vector.broadcast %86 : vector<16x1xf32> to vector<16x198xf32>
    %88 = arith.addf %85, %87 : vector<16x198xf32>
    %cst_70 = arith.constant 0.000000e+00 : f32
    %89 = vector.broadcast %cst_70 : f32 to vector<16x198xf32>
    %90 = arith.maximumf %88, %89 : vector<16x198xf32>
    %91 = arith.truncf %90 : vector<16x198xf32> to vector<16x198xbf16>
    %c0_71 = arith.constant 0 : index
    %c0_72 = arith.constant 0 : index
    %92 = vector.load %arg11[%c0_71, %c0_72] : memref<144x16xbf16, #tpu.memory_space<vmem>>, vector<144x16xbf16>
    %cst_73 = arith.constant dense<0.000000e+00> : vector<144x198xf32>
    %93 = tpu.matmul %92, %91, %cst_73 {dimension_numbers = #tpu.dot_dimension_numbers<[1], [0], [0], [1], [0, 0, 1, 1], [], []>} : vector<144x16xbf16>, vector<16x198xbf16>, vector<144x198xf32> -> vector<144x198xf32>
    %94 = arith.truncf %93 : vector<144x198xf32> to vector<144x198xbf16>
    %95 = vector.extract_strided_slice %94 {offsets = [0, 0], sizes = [48, 198], strides = [1, 1]} : vector<144x198xbf16> to vector<48x198xbf16>
    %c0_74 = arith.constant 0 : index
    %c0_75 = arith.constant 0 : index
    %c0_76 = arith.constant 0 : index
    %96 = vector.load %arg10[%c0_74, %c0_75, %c0_76] : memref<3x198x392xbf16, #tpu.memory_space<vmem>>, vector<1x198x392xbf16>
    %97 = vector.shape_cast %96 : vector<1x198x392xbf16> to vector<198x392xbf16>
    %cst_77 = arith.constant dense<0.000000e+00> : vector<48x392xf32>
    %98 = tpu.matmul %95, %97, %cst_77 {dimension_numbers = #tpu.dot_dimension_numbers<[1], [0], [0], [1], [0, 0, 1, 1], [], []>} : vector<48x198xbf16>, vector<198x392xbf16>, vector<48x392xf32> -> vector<48x392xf32>
    %99 = vector.extract_strided_slice %94 {offsets = [48, 0], sizes = [48, 198], strides = [1, 1]} : vector<144x198xbf16> to vector<48x198xbf16>
    %c1_78 = arith.constant 1 : index
    %c0_79 = arith.constant 0 : index
    %c0_80 = arith.constant 0 : index
    %100 = vector.load %arg10[%c1_78, %c0_79, %c0_80] : memref<3x198x392xbf16, #tpu.memory_space<vmem>>, vector<1x198x392xbf16>
    %101 = vector.shape_cast %100 : vector<1x198x392xbf16> to vector<198x392xbf16>
    %cst_81 = arith.constant dense<0.000000e+00> : vector<48x392xf32>
    %102 = tpu.matmul %99, %101, %cst_81 {dimension_numbers = #tpu.dot_dimension_numbers<[1], [0], [0], [1], [0, 0, 1, 1], [], []>} : vector<48x198xbf16>, vector<198x392xbf16>, vector<48x392xf32> -> vector<48x392xf32>
    %103 = arith.addf %98, %102 : vector<48x392xf32>
    %104 = vector.extract_strided_slice %94 {offsets = [96, 0], sizes = [48, 198], strides = [1, 1]} : vector<144x198xbf16> to vector<48x198xbf16>
    %c2_82 = arith.constant 2 : index
    %c0_83 = arith.constant 0 : index
    %c0_84 = arith.constant 0 : index
    %105 = vector.load %arg10[%c2_82, %c0_83, %c0_84] : memref<3x198x392xbf16, #tpu.memory_space<vmem>>, vector<1x198x392xbf16>
    %106 = vector.shape_cast %105 : vector<1x198x392xbf16> to vector<198x392xbf16>
    %cst_85 = arith.constant dense<0.000000e+00> : vector<48x392xf32>
    %107 = tpu.matmul %104, %106, %cst_85 {dimension_numbers = #tpu.dot_dimension_numbers<[1], [0], [0], [1], [0, 0, 1, 1], [], []>} : vector<48x198xbf16>, vector<198x392xbf16>, vector<48x392xf32> -> vector<48x392xf32>
    %108 = arith.addf %103, %107 : vector<48x392xf32>
    %c0_86 = arith.constant 0 : index
    %c0_87 = arith.constant 0 : index
    %109 = vector.load %arg12[%c0_86, %c0_87] : memref<48x1xf32, #tpu.memory_space<vmem>>, vector<48x1xf32>
    %110 = vector.broadcast %109 : vector<48x1xf32> to vector<48x392xf32>
    %111 = arith.addf %108, %110 : vector<48x392xf32>
    %c0_88 = arith.constant 0 : index
    %c0_89 = arith.constant 0 : index
    %112 = vector.load %arg15[%c0_88, %c0_89] : memref<48x392xf32, #tpu.memory_space<vmem>>, vector<48x392xf32>
    tpu.vector_store %arg15[%c0_88, %c0_89], %111 {strides = array<i32>} : memref<48x392xf32, #tpu.memory_space<vmem>>, vector<48x392xf32>,
    %c0_90 = arith.constant 0 : index
    %c0_91 = arith.constant 0 : index
    %113 = vector.load %arg15[%c0_90, %c0_91] : memref<48x392xf32, #tpu.memory_space<vmem>>, vector<48x196xf32>
    %c0_92 = arith.constant 0 : index
    %c0_93 = arith.constant 0 : index
    %c0_94 = arith.constant 0 : index
    %114 = vector.load %arg13[%c0_92, %c0_93, %c0_94] : memref<2x48x196xf32, #tpu.memory_space<vmem>>, vector<1x48x196xf32>
    %115 = vector.shape_cast %114 : vector<1x48x196xf32> to vector<48x196xf32>
    %116 = vector.shape_cast %113 : vector<48x196xf32> to vector<1x48x196xf32>
    tpu.vector_store %arg13[%c0_92, %c0_93, %c0_94], %116 {strides = array<i32>} : memref<2x48x196xf32, #tpu.memory_space<vmem>>, vector<1x48x196xf32>,
    %c0_95 = arith.constant 0 : index
    %c196 = arith.constant 196 : index
    %117 = vector.load %arg15[%c0_95, %c196] : memref<48x392xf32, #tpu.memory_space<vmem>>, vector<48x196xf32>
    %c1_96 = arith.constant 1 : index
    %c0_97 = arith.constant 0 : index
    %c0_98 = arith.constant 0 : index
    %118 = vector.load %arg13[%c1_96, %c0_97, %c0_98] : memref<2x48x196xf32, #tpu.memory_space<vmem>>, vector<1x48x196xf32>
    %119 = vector.shape_cast %118 : vector<1x48x196xf32> to vector<48x196xf32>
    %120 = vector.shape_cast %117 : vector<48x196xf32> to vector<1x48x196xf32>
    tpu.vector_store %arg13[%c1_96, %c0_97, %c0_98], %120 {strides = array<i32>} : memref<2x48x196xf32, #tpu.memory_space<vmem>>, vector<1x48x196xf32>,
    return
  }
}

</mosaic_0001>

<llo_original>
// kernel: conv1d_decoder.1
$region0: #{conv1d_decoder.1}
  #allocation0 [shape = 'u32[]', space=smem, size = 0x4, offset = 0x4, fixed_abs, tag = 'smem constant byte address 0x4 - core index']
  #allocation1 [shape = 'u32[72,128]{1,0:T(1,128)}', space=vmem, size = 0x9000, scoped, tag = 'internal scratch']
  #allocation2 [shape = 'f32[20,26]{1,0:T(8,128)}', space=vmem, size = 0x3000, scoped, tag = 'scratch operand']
  #allocation3 [shape = 'f32[48,392]{1,0:T(8,128)}', space=vmem, size = 0x18000, scoped, tag = 'scratch operand']
  %s0 = inlined_call_operand.vmem [shape: f32[2,20,13], index: 0, kind: input, shape index: {}]
  %s1 = inlined_call_operand.vmem [shape: bf16[5,26,52], index: 1, kind: input, shape index: {}]
  %s2 = inlined_call_operand.vmem [shape: bf16[320,20], index: 2, kind: input, shape index: {}]
  %s3 = inlined_call_operand.vmem [shape: f32[64,1], index: 3, kind: input, shape index: {}]
  %s4 = inlined_call_operand.vmem [shape: bf16[3,52,100], index: 4, kind: input, shape index: {}]
  %s5 = inlined_call_operand.vmem [shape: bf16[96,64], index: 5, kind: input, shape index: {}]
  %s6 = inlined_call_operand.vmem [shape: f32[32,1], index: 6, kind: input, shape index: {}]
  %s7 = inlined_call_operand.vmem [shape: bf16[4,100,198], index: 7, kind: input, shape index: {}]
  %s8 = inlined_call_operand.vmem [shape: bf16[64,32], index: 8, kind: input, shape index: {}]
  %s9 = inlined_call_operand.vmem [shape: f32[16,1], index: 9, kind: input, shape index: {}]
  %s10 = inlined_call_operand.vmem [shape: bf16[3,198,392], index: 10, kind: input, shape index: {}]
  %s11 = inlined_call_operand.vmem [shape: bf16[144,16], index: 11, kind: input, shape index: {}]
  %s12 = inlined_call_operand.vmem [shape: f32[48,1], index: 12, kind: input, shape index: {}]
  %s13 = inlined_call_operand.hbm [shape: f32[2,48,196], index: 13, kind: output, shape index: {}]
  %s14 = sld [smem:[#allocation0]]
  $region62: #{conv1d_decoder.1} parent=0
    _
  %s16 = ssub.s32 1, %s14
  %s17 = scalar_select 0, %s16, %s14
  $region1: #{conv1d_decoder.1} parent=0
    #allocation4 [shape = 'u8[98304]{0}', space=vmem, size = 0x18000, scoped, tag = 'output window, operand 0, single buffered']
    #allocation5 [shape = 's32[1]{0}', space=sflag, size = 0x4, scoped, tag = 'scoped memory for conv1d_decoder.1']
    %18 = vsyncpa [#allocation5], 0
    // Predicated region
    $region2: #{conv1d_decoder.1} parent=1 // pred_check
      _
    $region3: #{conv1d_decoder.1} parent=1 // pred_check_branch
      %20 = sbr.rel (0) target = $region5
    $region4: #{conv1d_decoder.1} parent=1 // pred_region
      _
    $region5: #{conv1d_decoder.1} parent=1 // pred_fallthru
      _
    // Predicated region
    $region6: #{conv1d_decoder.1} parent=1 // pred_check
      _
    $region7: #{conv1d_decoder.1} parent=1 // pred_check_branch
      %22 = sbr.rel (0) target = $region9
    $region8: #{conv1d_decoder.1} parent=1 // pred_region
      _
    $region9: #{conv1d_decoder.1} parent=1 // pred_fallthru
      _
    // Predicated region
    $region10: #{conv1d_decoder.1} parent=1 // pred_check
      _
    $region11: #{conv1d_decoder.1} parent=1 // pred_check_branch
      %24 = sbr.rel (0) target = $region13
    $region12: #{conv1d_decoder.1} parent=1 // pred_region
      _
    $region13: #{conv1d_decoder.1} parent=1 // pred_fallthru
      _
    // Predicated region
    $region14: #{conv1d_decoder.1} parent=1 // pred_check
      _
    $region15: #{conv1d_decoder.1} parent=1 // pred_check_branch
      %26 = sbr.rel (0) target = $region17
    $region16: #{conv1d_decoder.1} parent=1 // pred_region
      _
    $region17: #{conv1d_decoder.1} parent=1 // pred_fallthru
      _
    // Predicated region
    $region18: #{conv1d_decoder.1} parent=1 // pred_check
      _
    $region19: #{conv1d_decoder.1} parent=1 // pred_check_branch
      %28 = sbr.rel (0) target = $region21
    $region20: #{conv1d_decoder.1} parent=1 // pred_region
      _
    $region21: #{conv1d_decoder.1} parent=1 // pred_fallthru
      _
    // Predicated region
    $region22: #{conv1d_decoder.1} parent=1 // pred_check
      _
    $region23: #{conv1d_decoder.1} parent=1 // pred_check_branch
      %30 = sbr.rel (0) target = $region25
    $region24: #{conv1d_decoder.1} parent=1 // pred_region
      _
    $region25: #{conv1d_decoder.1} parent=1 // pred_fallthru
      _
    // Predicated region
    $region26: #{conv1d_decoder.1} parent=1 // pred_check
      _
    $region27: #{conv1d_decoder.1} parent=1 // pred_check_branch
      %32 = sbr.rel (0) target = $region29
    $region28: #{conv1d_decoder.1} parent=1 // pred_region
      _
    $region29: #{conv1d_decoder.1} parent=1 // pred_fallthru
      _
    // Predicated region
    $region30: #{conv1d_decoder.1} parent=1 // pred_check
      _
    $region31: #{conv1d_decoder.1} parent=1 // pred_check_branch
      %34 = sbr.rel (0) target = $region33
    $region32: #{conv1d_decoder.1} parent=1 // pred_region
      _
    $region33: #{conv1d_decoder.1} parent=1 // pred_fallthru
      _
    // Predicated region
    $region34: #{conv1d_decoder.1} parent=1 // pred_check
      _
    $region35: #{conv1d_decoder.1} parent=1 // pred_check_branch
      %36 = sbr.rel (0) target = $region37
    $region36: #{conv1d_decoder.1} parent=1 // pred_region
      _
    $region37: #{conv1d_decoder.1} parent=1 // pred_fallthru
      _
    // Predicated region
    $region38: #{conv1d_decoder.1} parent=1 // pred_check
      _
    $region39: #{conv1d_decoder.1} parent=1 // pred_check_branch
      %38 = sbr.rel (0) target = $region41
    $region40: #{conv1d_decoder.1} parent=1 // pred_region
      _
    $region41: #{conv1d_decoder.1} parent=1 // pred_fallthru
      _
    // Predicated region
    $region42: #{conv1d_decoder.1} parent=1 // pred_check
      _
    $region43: #{conv1d_decoder.1} parent=1 // pred_check_branch
      %40 = sbr.rel (0) target = $region45
    $region44: #{conv1d_decoder.1} parent=1 // pred_region
      _
    $region45: #{conv1d_decoder.1} parent=1 // pred_fallthru
      _
    // Predicated region
    $region46: #{conv1d_decoder.1} parent=1 // pred_check
      _
    $region47: #{conv1d_decoder.1} parent=1 // pred_check_branch
      %42 = sbr.rel (0) target = $region49
    $region48: #{conv1d_decoder.1} parent=1 // pred_region
      _
    $region49: #{conv1d_decoder.1} parent=1 // pred_fallthru
      _
    // Predicated region
    $region50: #{conv1d_decoder.1} parent=1 // pred_check
      _
    $region51: #{conv1d_decoder.1} parent=1 // pred_check_branch
      %44 = sbr.rel (0) target = $region53
    $region52: #{conv1d_decoder.1} parent=1 // pred_region
      _
    $region53: #{conv1d_decoder.1} parent=1 // pred_fallthru
      _
    %v46 = vld [vmem:[%s0] sm:$0xff]
    %v47 = vld [vmem:[%s0 + $0x8] sm:$0xff]
    %v48 = vld [vmem:[%s0 + $0x10] sm:$0xf]
    %vm49 = vcmask 105472
    %50 = vst.msk [vmem:[#allocation2] sm:$0xff] %vm49, %v46
    %51 = vst.msk [vmem:[#allocation2 + $0x8] sm:$0xff] %vm49, %v47
    %vm52 = vcmask 101376
    %53 = vst.msk [vmem:[#allocation2 + $0x10] sm:$0xf] %vm52, %v48
    %s54 = scalar_lea.vmem %s0, 24
    %v55 = vld [vmem:[%s54] sm:$0xff]
    %v56 = vld [vmem:[%s54 + $0x8] sm:$0xff]
    %v57 = vld [vmem:[%s54 + $0x10] sm:$0xf]
    %61 = vrot.lane.b32.xlu0 %v55, 13
    %v62 = vpop.permute.xlu0 %61
    %63 = vrot.lane.b32.xlu0 %v56, 13
    %v64 = vpop.permute.xlu0 %63
    %65 = vrot.lane.b32.xlu0 %v57, 13
    %v66 = vpop.permute.xlu0 %65
    %vm70 = vcmask 212072
    %71 = vst.msk [vmem:[#allocation2] sm:$0xff] %vm70, %v62
    %72 = vst.msk [vmem:[#allocation2 + $0x8] sm:$0xff] %vm70, %v64
    %vm73 = vcmask 207976
    %74 = vst.msk [vmem:[#allocation2 + $0x10] sm:$0xf] %vm73, %v66
    %v75 = vld [vmem:[#allocation2] sm:$0xff]
    %v76 = vld [vmem:[#allocation2 + $0x8] sm:$0xff]
    %v77 = vld [vmem:[#allocation2 + $0x10] sm:$0xf]
    %v78 = vpack.c.bf16 %v76, %v75
    %v79 = vpack.c.bf16 %v77, %v77
    %v80 = vld [vmem:[%s2] sm:$0xf]
    %v81 = vld [vmem:[%s2 + $0x4] sm:$0xf]
    %v82 = vld [vmem:[%s2 + $0x8] sm:$0xf]
    %v83 = vld [vmem:[%s2 + $0xc] sm:$0xf]
    %v84 = vld [vmem:[%s2 + $0x10] sm:$0xf]
    %v85 = vld [vmem:[%s2 + $0x14] sm:$0xf]
    %v86 = vld [vmem:[%s2 + $0x18] sm:$0xf]
    %v87 = vld [vmem:[%s2 + $0x1c] sm:$0xf]
    %v88 = vld [vmem:[%s2 + $0x20] sm:$0xf]
    %v89 = vld [vmem:[%s2 + $0x24] sm:$0xf]
    %v90 = vld [vmem:[%s2 + $0x28] sm:$0xf]
    %v91 = vld [vmem:[%s2 + $0x2c] sm:$0xf]
    %v92 = vld [vmem:[%s2 + $0x30] sm:$0xf]
    %v93 = vld [vmem:[%s2 + $0x34] sm:$0xf]
    %v94 = vld [vmem:[%s2 + $0x38] sm:$0xf]
    %v95 = vld [vmem:[%s2 + $0x3c] sm:$0xf]
    %v96 = vld [vmem:[%s2 + $0x40] sm:$0xf]
    %v97 = vld [vmem:[%s2 + $0x44] sm:$0xf]
    %v98 = vld [vmem:[%s2 + $0x48] sm:$0xf]
    %v99 = vld [vmem:[%s2 + $0x4c] sm:$0xf]
    %v100 = vld [vmem:[%s2 + $0x50] sm:$0xf]
    %v101 = vld [vmem:[%s2 + $0x54] sm:$0xf]
    %v102 = vld [vmem:[%s2 + $0x58] sm:$0xf]
    %v103 = vld [vmem:[%s2 + $0x5c] sm:$0xf]
    %v104 = vld [vmem:[%s2 + $0x60] sm:$0xf]
    %v105 = vld [vmem:[%s2 + $0x64] sm:$0xf]
    %v106 = vld [vmem:[%s2 + $0x68] sm:$0xf]
    %v107 = vld [vmem:[%s2 + $0x6c] sm:$0xf]
    %v108 = vld [vmem:[%s2 + $0x70] sm:$0xf]
    %v109 = vld [vmem:[%s2 + $0x74] sm:$0xf]
    %v110 = vld [vmem:[%s2 + $0x78] sm:$0xf]
    %v111 = vld [vmem:[%s2 + $0x7c] sm:$0xf]
    %v112 = vld [vmem:[%s2 + $0x80] sm:$0xf]
    %v113 = vld [vmem:[%s2 + $0x84] sm:$0xf]
    %v114 = vld [vmem:[%s2 + $0x88] sm:$0xf]
    %v115 = vld [vmem:[%s2 + $0x8c] sm:$0xf]
    %v116 = vld [vmem:[%s2 + $0x90] sm:$0xf]
    %v117 = vld [vmem:[%s2 + $0x94] sm:$0xf]
    %v118 = vld [vmem:[%s2 + $0x98] sm:$0xf]
    %v119 = vld [vmem:[%s2 + $0x9c] sm:$0xf]
    %v160 = vunpack.c.l.b16 %v80
    %v161 = vunpack.c.l.b16 %v81
    %v162 = vunpack.c.l.b16 %v82
    %v163 = vunpack.c.l.b16 %v83
    %v164 = vunpack.c.l.b16 %v84
    %v165 = vunpack.c.l.b16 %v85
    %v166 = vunpack.c.l.b16 %v86
    %v167 = vunpack.c.l.b16 %v87
    %v168 = vunpack.c.l.b16 %v88
    %v169 = vunpack.c.l.b16 %v89
    %v170 = vunpack.c.l.b16 %v90
    %v171 = vunpack.c.l.b16 %v91
    %v172 = vunpack.c.l.b16 %v92
    %v173 = vunpack.c.l.b16 %v93
    %v174 = vunpack.c.l.b16 %v94
    %v175 = vunpack.c.l.b16 %v95
    %v176 = vunpack.c.l.b16 %v96
    %v177 = vunpack.c.l.b16 %v97
    %v178 = vunpack.c.l.b16 %v98
    %v179 = vunpack.c.l.b16 %v99
    %v180 = vunpack.c.l.b16 %v100
    %v181 = vunpack.c.l.b16 %v101
    %v182 = vunpack.c.l.b16 %v102
    %v183 = vunpack.c.l.b16 %v103
    %v184 = vunpack.c.l.b16 %v104
    %v185 = vunpack.c.l.b16 %v105
    %v186 = vunpack.c.l.b16 %v106
    %v187 = vunpack.c.l.b16 %v107
    %v188 = vunpack.c.l.b16 %v108
    %v189 = vunpack.c.l.b16 %v109
    %v190 = vunpack.c.l.b16 %v110
    %v191 = vunpack.c.l.b16 %v111
    %v192 = vunpack.c.l.b16 %v112
    %v193 = vunpack.c.l.b16 %v113
    %v194 = vunpack.c.l.b16 %v114
    %v195 = vunpack.c.l.b16 %v115
    %v196 = vunpack.c.l.b16 %v116
    %v197 = vunpack.c.l.b16 %v117
    %v198 = vunpack.c.l.b16 %v118
    %v199 = vunpack.c.l.b16 %v119
    %v200 = vpack.c.b16 %v161, %v160
    %v201 = vpack.c.b16 %v163, %v162
    %v202 = vpack.c.b16 %v165, %v164
    %v203 = vpack.c.b16 %v167, %v166
    %v204 = vpack.c.b16 %v169, %v168
    %v205 = vpack.c.b16 %v171, %v170
    %v206 = vpack.c.b16 %v173, %v172
    %v207 = vpack.c.b16 %v175, %v174
    %v208 = vpack.c.b16 %v177, %v176
    %v209 = vpack.c.b16 %v179, %v178
    %v210 = vpack.c.b16 %v181, %v180
    %v211 = vpack.c.b16 %v183, %v182
    %v212 = vpack.c.b16 %v185, %v184
    %v213 = vpack.c.b16 %v187, %v186
    %v214 = vpack.c.b16 %v189, %v188
    %v215 = vpack.c.b16 %v191, %v190
    %v216 = vpack.c.b16 %v193, %v192
    %v217 = vpack.c.b16 %v195, %v194
    %v218 = vpack.c.b16 %v197, %v196
    %v219 = vpack.c.b16 %v199, %v198
    %vm220 = vcmask 162816
    %v222 = vsel %vm220, %v200, 0
    %v225 = vsel %vm220, %v201, 0
    %v228 = vsel %vm220, %v202, 0
    %v231 = vsel %vm220, %v203, 0
    %v234 = vsel %vm220, %v204, 0
    %v237 = vsel %vm220, %v205, 0
    %v240 = vsel %vm220, %v206, 0
    %v243 = vsel %vm220, %v207, 0
    %v246 = vsel %vm220, %v208, 0
    %v249 = vsel %vm220, %v209, 0
    %v252 = vsel %vm220, %v210, 0
    %v255 = vsel %vm220, %v211, 0
    %v258 = vsel %vm220, %v212, 0
    %v261 = vsel %vm220, %v213, 0
    %v264 = vsel %vm220, %v214, 0
    %v267 = vsel %vm220, %v215, 0
    %v270 = vsel %vm220, %v216, 0
    %v273 = vsel %vm220, %v217, 0
    %v276 = vsel %vm220, %v218, 0
    %v279 = vsel %vm220, %v219, 0
    %vm281 = vcmask 1041408
    %v283 = vsel %vm281, %v79, 0
    %285 = vmatpush.bf16.msra.mxu0 0
    %286 = vmatpush.bf16.msra.mxu0 0
    %287 = vmatpush.bf16.msra.mxu0 0
    %288 = vmatpush.bf16.msra.mxu0 0
    %289 = vmatpush.bf16.msra.mxu0 0
    %290 = vmatpush.bf16.msra.mxu0 0
    %291 = vmatpush.bf16.msra.mxu0 %v283
    %292 = vmatpush.bf16.msra.mxu0 %v78
    %293 = vmatmul.bf16.gmra.mxu0 %v222
    %v294 = vpop.f32.mrf.mxu0
    %v295 = vadd.f32 0.0, %v294
    %v296 = vpop.f32.mrf.mxu0
    %v297 = vadd.f32 0.0, %v296
    %298 = vmatmul.bf16.gmra.mxu0 %v225
    %v299 = vpop.f32.mrf.mxu0
    %v300 = vadd.f32 0.0, %v299
    %v301 = vpop.f32.mrf.mxu0
    %v302 = vadd.f32 0.0, %v301
    %303 = vmatmul.bf16.gmra.mxu0 %v228
    %v304 = vpop.f32.mrf.mxu0
    %v305 = vadd.f32 0.0, %v304
    %v306 = vpop.f32.mrf.mxu0
    %v307 = vadd.f32 0.0, %v306
    %308 = vmatmul.bf16.gmra.mxu0 %v231
    %v309 = vpop.f32.mrf.mxu0
    %v310 = vadd.f32 0.0, %v309
    %v311 = vpop.f32.mrf.mxu0
    %v312 = vadd.f32 0.0, %v311
    %313 = vmatmul.bf16.gmra.mxu0 %v234
    %v314 = vpop.f32.mrf.mxu0
    %v315 = vadd.f32 0.0, %v314
    %v316 = vpop.f32.mrf.mxu0
    %v317 = vadd.f32 0.0, %v316
    %318 = vmatmul.bf16.gmra.mxu0 %v237
    %v319 = vpop.f32.mrf.mxu0
    %v320 = vadd.f32 0.0, %v319
    %v321 = vpop.f32.mrf.mxu0
    %v322 = vadd.f32 0.0, %v321
    %323 = vmatmul.bf16.gmra.mxu0 %v240
    %v324 = vpop.f32.mrf.mxu0
    %v325 = vadd.f32 0.0, %v324
    %v326 = vpop.f32.mrf.mxu0
    %v327 = vadd.f32 0.0, %v326
    %328 = vmatmul.bf16.gmra.mxu0 %v243
    %v329 = vpop.f32.mrf.mxu0
    %v330 = vadd.f32 0.0, %v329
    %v331 = vpop.f32.mrf.mxu0
    %v332 = vadd.f32 0.0, %v331
    %333 = vmatmul.bf16.gmra.mxu0 %v246
    %v334 = vpop.f32.mrf.mxu0
    %v335 = vadd.f32 0.0, %v334
    %v336 = vpop.f32.mrf.mxu0
    %v337 = vadd.f32 0.0, %v336
    %338 = vmatmul.bf16.gmra.mxu0 %v249
    %v339 = vpop.f32.mrf.mxu0
    %v340 = vadd.f32 0.0, %v339
    %v341 = vpop.f32.mrf.mxu0
    %v342 = vadd.f32 0.0, %v341
    %343 = vmatmul.bf16.gmra.mxu0 %v252
    %v344 = vpop.f32.mrf.mxu0
    %v345 = vadd.f32 0.0, %v344
    %v346 = vpop.f32.mrf.mxu0
    %v347 = vadd.f32 0.0, %v346
    %348 = vmatmul.bf16.gmra.mxu0 %v255
    %v349 = vpop.f32.mrf.mxu0
    %v350 = vadd.f32 0.0, %v349
    %v351 = vpop.f32.mrf.mxu0
    %v352 = vadd.f32 0.0, %v351
    %353 = vmatmul.bf16.gmra.mxu0 %v258
    %v354 = vpop.f32.mrf.mxu0
    %v355 = vadd.f32 0.0, %v354
    %v356 = vpop.f32.mrf.mxu0
    %v357 = vadd.f32 0.0, %v356
    %358 = vmatmul.bf16.gmra.mxu0 %v261
    %v359 = vpop.f32.mrf.mxu0
    %v360 = vadd.f32 0.0, %v359
    %v361 = vpop.f32.mrf.mxu0
    %v362 = vadd.f32 0.0, %v361
    %363 = vmatmul.bf16.gmra.mxu0 %v264
    %v364 = vpop.f32.mrf.mxu0
    %v365 = vadd.f32 0.0, %v364
    %v366 = vpop.f32.mrf.mxu0
    %v367 = vadd.f32 0.0, %v366
    %368 = vmatmul.bf16.gmra.mxu0 %v267
    %v369 = vpop.f32.mrf.mxu0
    %v370 = vadd.f32 0.0, %v369
    %v371 = vpop.f32.mrf.mxu0
    %v372 = vadd.f32 0.0, %v371
    %373 = vmatmul.bf16.gmra.mxu0 %v270
    %v374 = vpop.f32.mrf.mxu0
    %v375 = vadd.f32 0.0, %v374
    %v376 = vpop.f32.mrf.mxu0
    %v377 = vadd.f32 0.0, %v376
    %378 = vmatmul.bf16.gmra.mxu0 %v273
    %v379 = vpop.f32.mrf.mxu0
    %v380 = vadd.f32 0.0, %v379
    %v381 = vpop.f32.mrf.mxu0
    %v382 = vadd.f32 0.0, %v381
    %383 = vmatmul.bf16.gmra.mxu0 %v276
    %v384 = vpop.f32.mrf.mxu0
    %v385 = vadd.f32 0.0, %v384
    %v386 = vpop.f32.mrf.mxu0
    %v387 = vadd.f32 0.0, %v386
    %388 = vmatmul.bf16.gmra.mxu0 %v279
    %v389 = vpop.f32.mrf.mxu0
    %v390 = vadd.f32 0.0, %v389
    %v391 = vpop.f32.mrf.mxu0
    %v392 = vadd.f32 0.0, %v391
    %393 = vdwg.mxu0
    %v394 = vpack.c.bf16 %v295, %v295
    %v395 = vpack.c.bf16 %v297, %v297
    %v396 = vpack.c.bf16 %v300, %v300
    %v397 = vpack.c.bf16 %v302, %v302
    %v398 = vpack.c.bf16 %v305, %v305
    %v399 = vpack.c.bf16 %v307, %v307
    %v400 = vpack.c.bf16 %v310, %v310
    %v401 = vpack.c.bf16 %v312, %v312
    %v402 = vpack.c.bf16 %v315, %v315
    %v403 = vpack.c.bf16 %v317, %v317
    %v404 = vpack.c.bf16 %v320, %v320
    %v405 = vpack.c.bf16 %v322, %v322
    %v406 = vpack.c.bf16 %v325, %v325
    %v407 = vpack.c.bf16 %v327, %v327
    %v408 = vpack.c.bf16 %v330, %v330
    %v409 = vpack.c.bf16 %v332, %v332
    %v410 = vpack.c.bf16 %v335, %v335
    %v411 = vpack.c.bf16 %v337, %v337
    %v412 = vpack.c.bf16 %v340, %v340
    %v413 = vpack.c.bf16 %v342, %v342
    %v414 = vpack.c.bf16 %v345, %v345
    %v415 = vpack.c.bf16 %v347, %v347
    %v416 = vpack.c.bf16 %v350, %v350
    %v417 = vpack.c.bf16 %v352, %v352
    %v418 = vpack.c.bf16 %v355, %v355
    %v419 = vpack.c.bf16 %v357, %v357
    %v420 = vpack.c.bf16 %v360, %v360
    %v421 = vpack.c.bf16 %v362, %v362
    %v422 = vpack.c.bf16 %v365, %v365
    %v423 = vpack.c.bf16 %v367, %v367
    %v424 = vpack.c.bf16 %v370, %v370
    %v425 = vpack.c.bf16 %v372, %v372
    %v426 = vpack.c.bf16 %v375, %v375
    %v427 = vpack.c.bf16 %v377, %v377
    %v428 = vpack.c.bf16 %v380, %v380
    %v429 = vpack.c.bf16 %v382, %v382
    %v430 = vpack.c.bf16 %v385, %v385
    %v431 = vpack.c.bf16 %v387, %v387
    %v432 = vpack.c.bf16 %v390, %v390
    %v433 = vpack.c.bf16 %v392, %v392
    %v434 = vld [vmem:[%s1] sm:$0xf]
    %v435 = vld [vmem:[%s1 + $0x4] sm:$0xf]
    %v436 = vld [vmem:[%s1 + $0x8] sm:$0xf]
    %v437 = vld [vmem:[%s1 + $0xc] sm:$0x1]
    %s438 = scalar_lea.vmem %s1, 16
    %v439 = vld [vmem:[%s438] sm:$0xf]
    %v440 = vld [vmem:[%s438 + $0x4] sm:$0xf]
    %v441 = vld [vmem:[%s438 + $0x8] sm:$0xf]
    %v442 = vld [vmem:[%s438 + $0xc] sm:$0x1]
    %v451 = vunpack.c.l.b16 %v402
    %v452 = vunpack.c.l.b16 %v403
    %v453 = vunpack.c.l.b16 %v404
    %v454 = vunpack.c.l.b16 %v405
    %v455 = vunpack.c.l.b16 %v406
    %v456 = vunpack.c.l.b16 %v407
    %v457 = vunpack.c.l.b16 %v408
    %v458 = vunpack.c.l.b16 %v409
    %v459 = vpack.c.b16 %v452, %v451
    %v460 = vpack.c.b16 %v454, %v453
    %v461 = vpack.c.b16 %v456, %v455
    %v462 = vpack.c.b16 %v458, %v457
    %v467 = vunpack.c.l.b16 %v439
    %v468 = vunpack.c.l.b16 %v440
    %v469 = vunpack.c.l.b16 %v441
    %v470 = vunpack.c.l.b16 %v442
    %v471 = vpack.c.b16 %v468, %v467
    %v472 = vpack.c.b16 %v470, %v469
    %vm474 = vcmask 211968
    %v476 = vsel %vm474, %v459, 0
    %v479 = vsel %vm474, %v460, 0
    %v482 = vsel %vm474, %v461, 0
    %v485 = vsel %vm474, %v462, 0
    %vm487 = vcmask 1044480
    %v489 = vsel %vm487, %v472, 0
    %491 = vmatpush.bf16.msra.mxu0 0
    %492 = vmatpush.bf16.msra.mxu0 0
    %493 = vmatpush.bf16.msra.mxu0 0
    %494 = vmatpush.bf16.msra.mxu0 0
    %495 = vmatpush.bf16.msra.mxu0 0
    %496 = vmatpush.bf16.msra.mxu0 0
    %497 = vmatpush.bf16.msra.mxu0 %v489
    %498 = vmatpush.bf16.msra.mxu0 %v471
    %499 = vmatmul.bf16.gmra.mxu0 %v476
    %v500 = vpop.f32.mrf.mxu0
    %v501 = vadd.f32 0.0, %v500
    %v502 = vpop.f32.mrf.mxu0
    %v503 = vadd.f32 0.0, %v502
    %504 = vmatmul.bf16.gmra.mxu0 %v479
    %v505 = vpop.f32.mrf.mxu0
    %v506 = vadd.f32 0.0, %v505
    %v507 = vpop.f32.mrf.mxu0
    %v508 = vadd.f32 0.0, %v507
    %509 = vmatmul.bf16.gmra.mxu0 %v482
    %v510 = vpop.f32.mrf.mxu0
    %v511 = vadd.f32 0.0, %v510
    %v512 = vpop.f32.mrf.mxu0
    %v513 = vadd.f32 0.0, %v512
    %514 = vmatmul.bf16.gmra.mxu0 %v485
    %v515 = vpop.f32.mrf.mxu0
    %v516 = vadd.f32 0.0, %v515
    %v517 = vpop.f32.mrf.mxu0
    %v518 = vadd.f32 0.0, %v517
    %519 = vdwg.mxu0
    %v528 = vunpack.c.l.b16 %v394
    %v529 = vunpack.c.l.b16 %v395
    %v530 = vunpack.c.l.b16 %v396
    %v531 = vunpack.c.l.b16 %v397
    %v532 = vunpack.c.l.b16 %v398
    %v533 = vunpack.c.l.b16 %v399
    %v534 = vunpack.c.l.b16 %v400
    %v535 = vunpack.c.l.b16 %v401
    %v536 = vpack.c.b16 %v529, %v528
    %v537 = vpack.c.b16 %v531, %v530
    %v538 = vpack.c.b16 %v533, %v532
    %v539 = vpack.c.b16 %v535, %v534
    %v544 = vunpack.c.l.b16 %v434
    %v545 = vunpack.c.l.b16 %v435
    %v546 = vunpack.c.l.b16 %v436
    %v547 = vunpack.c.l.b16 %v437
    %v548 = vpack.c.b16 %v545, %v544
    %v549 = vpack.c.b16 %v547, %v546
    %v552 = vsel %vm474, %v536, 0
    %v555 = vsel %vm474, %v537, 0
    %v558 = vsel %vm474, %v538, 0
    %v561 = vsel %vm474, %v539, 0
    %v564 = vsel %vm487, %v549, 0
    %566 = vmatpush.bf16.msra.mxu0 0
    %567 = vmatpush.bf16.msra.mxu0 0
    %568 = vmatpush.bf16.msra.mxu0 0
    %569 = vmatpush.bf16.msra.mxu0 0
    %570 = vmatpush.bf16.msra.mxu0 0
    %571 = vmatpush.bf16.msra.mxu0 0
    %572 = vmatpush.bf16.msra.mxu0 %v564
    %573 = vmatpush.bf16.msra.mxu0 %v548
    %574 = vmatmul.bf16.gmra.mxu0 %v552
    %v575 = vpop.f32.mrf.mxu0
    %v576 = vadd.f32 %v501, %v575
    %v577 = vpop.f32.mrf.mxu0
    %v578 = vadd.f32 %v503, %v577
    %579 = vmatmul.bf16.gmra.mxu0 %v555
    %v580 = vpop.f32.mrf.mxu0
    %v581 = vadd.f32 %v506, %v580
    %v582 = vpop.f32.mrf.mxu0
    %v583 = vadd.f32 %v508, %v582
    %584 = vmatmul.bf16.gmra.mxu0 %v558
    %v585 = vpop.f32.mrf.mxu0
    %v586 = vadd.f32 %v511, %v585
    %v587 = vpop.f32.mrf.mxu0
    %v588 = vadd.f32 %v513, %v587
    %589 = vmatmul.bf16.gmra.mxu0 %v561
    %v590 = vpop.f32.mrf.mxu0
    %v591 = vadd.f32 %v516, %v590
    %v592 = vpop.f32.mrf.mxu0
    %v593 = vadd.f32 %v518, %v592
    %594 = vdwg.mxu0
    %s595 = scalar_lea.vmem %s1, 32
    %v596 = vld [vmem:[%s595] sm:$0xf]
    %v597 = vld [vmem:[%s595 + $0x4] sm:$0xf]
    %v598 = vld [vmem:[%s595 + $0x8] sm:$0xf]
    %v599 = vld [vmem:[%s595 + $0xc] sm:$0x1]
    %v608 = vunpack.c.l.b16 %v410
    %v609 = vunpack.c.l.b16 %v411
    %v610 = vunpack.c.l.b16 %v412
    %v611 = vunpack.c.l.b16 %v413
    %v612 = vunpack.c.l.b16 %v414
    %v613 = vunpack.c.l.b16 %v415
    %v614 = vunpack.c.l.b16 %v416
    %v615 = vunpack.c.l.b16 %v417
    %v616 = vpack.c.b16 %v609, %v608
    %v617 = vpack.c.b16 %v611, %v610
    %v618 = vpack.c.b16 %v613, %v612
    %v619 = vpack.c.b16 %v615, %v614
    %v624 = vunpack.c.l.b16 %v596
    %v625 = vunpack.c.l.b16 %v597
    %v626 = vunpack.c.l.b16 %v598
    %v627 = vunpack.c.l.b16 %v599
    %v628 = vpack.c.b16 %v625, %v624
    %v629 = vpack.c.b16 %v627, %v626
    %v632 = vsel %vm474, %v616, 0
    %v635 = vsel %vm474, %v617, 0
    %v638 = vsel %vm474, %v618, 0
    %v641 = vsel %vm474, %v619, 0
    %v644 = vsel %vm487, %v629, 0
    %646 = vmatpush.bf16.msra.mxu0 0
    %647 = vmatpush.bf16.msra.mxu0 0
    %648 = vmatpush.bf16.msra.mxu0 0
    %649 = vmatpush.bf16.msra.mxu0 0
    %650 = vmatpush.bf16.msra.mxu0 0
    %651 = vmatpush.bf16.msra.mxu0 0
    %652 = vmatpush.bf16.msra.mxu0 %v644
    %653 = vmatpush.bf16.msra.mxu0 %v628
    %654 = vmatmul.bf16.gmra.mxu0 %v632
    %v655 = vpop.f32.mrf.mxu0
    %v656 = vadd.f32 0.0, %v655
    %v657 = vpop.f32.mrf.mxu0
    %v658 = vadd.f32 0.0, %v657
    %659 = vmatmul.bf16.gmra.mxu0 %v635
    %v660 = vpop.f32.mrf.mxu0
    %v661 = vadd.f32 0.0, %v660
    %v662 = vpop.f32.mrf.mxu0
    %v663 = vadd.f32 0.0, %v662
    %664 = vmatmul.bf16.gmra.mxu0 %v638
    %v665 = vpop.f32.mrf.mxu0
    %v666 = vadd.f32 0.0, %v665
    %v667 = vpop.f32.mrf.mxu0
    %v668 = vadd.f32 0.0, %v667
    %669 = vmatmul.bf16.gmra.mxu0 %v641
    %v670 = vpop.f32.mrf.mxu0
    %v671 = vadd.f32 0.0, %v670
    %v672 = vpop.f32.mrf.mxu0
    %v673 = vadd.f32 0.0, %v672
    %674 = vdwg.mxu0
    %v675 = vadd.f32 %v576, %v656
    %v676 = vadd.f32 %v578, %v658
    %v677 = vadd.f32 %v581, %v661
    %v678 = vadd.f32 %v583, %v663
    %v679 = vadd.f32 %v586, %v666
    %v680 = vadd.f32 %v588, %v668
    %v681 = vadd.f32 %v591, %v671
    %v682 = vadd.f32 %v593, %v673
    %s683 = scalar_lea.vmem %s1, 48
    %v684 = vld [vmem:[%s683] sm:$0xf]
    %v685 = vld [vmem:[%s683 + $0x4] sm:$0xf]
    %v686 = vld [vmem:[%s683 + $0x8] sm:$0xf]
    %v687 = vld [vmem:[%s683 + $0xc] sm:$0x1]
    %v696 = vunpack.c.l.b16 %v418
    %v697 = vunpack.c.l.b16 %v419
    %v698 = vunpack.c.l.b16 %v420
    %v699 = vunpack.c.l.b16 %v421
    %v700 = vunpack.c.l.b16 %v422
    %v701 = vunpack.c.l.b16 %v423
    %v702 = vunpack.c.l.b16 %v424
    %v703 = vunpack.c.l.b16 %v425
    %v704 = vpack.c.b16 %v697, %v696
    %v705 = vpack.c.b16 %v699, %v698
    %v706 = vpack.c.b16 %v701, %v700
    %v707 = vpack.c.b16 %v703, %v702
    %v712 = vunpack.c.l.b16 %v684
    %v713 = vunpack.c.l.b16 %v685
    %v714 = vunpack.c.l.b16 %v686
    %v715 = vunpack.c.l.b16 %v687
    %v716 = vpack.c.b16 %v713, %v712
    %v717 = vpack.c.b16 %v715, %v714
    %v720 = vsel %vm474, %v704, 0
    %v723 = vsel %vm474, %v705, 0
    %v726 = vsel %vm474, %v706, 0
    %v729 = vsel %vm474, %v707, 0
    %v732 = vsel %vm487, %v717, 0
    %734 = vmatpush.bf16.msra.mxu0 0
    %735 = vmatpush.bf16.msra.mxu0 0
    %736 = vmatpush.bf16.msra.mxu0 0
    %737 = vmatpush.bf16.msra.mxu0 0
    %738 = vmatpush.bf16.msra.mxu0 0
    %739 = vmatpush.bf16.msra.mxu0 0
    %740 = vmatpush.bf16.msra.mxu0 %v732
    %741 = vmatpush.bf16.msra.mxu0 %v716
    %742 = vmatmul.bf16.gmra.mxu0 %v720
    %v743 = vpop.f32.mrf.mxu0
    %v744 = vadd.f32 0.0, %v743
    %v745 = vpop.f32.mrf.mxu0
    %v746 = vadd.f32 0.0, %v745
    %747 = vmatmul.bf16.gmra.mxu0 %v723
    %v748 = vpop.f32.mrf.mxu0
    %v749 = vadd.f32 0.0, %v748
    %v750 = vpop.f32.mrf.mxu0
    %v751 = vadd.f32 0.0, %v750
    %752 = vmatmul.bf16.gmra.mxu0 %v726
    %v753 = vpop.f32.mrf.mxu0
    %v754 = vadd.f32 0.0, %v753
    %v755 = vpop.f32.mrf.mxu0
    %v756 = vadd.f32 0.0, %v755
    %757 = vmatmul.bf16.gmra.mxu0 %v729
    %v758 = vpop.f32.mrf.mxu0
    %v759 = vadd.f32 0.0, %v758
    %v760 = vpop.f32.mrf.mxu0
    %v761 = vadd.f32 0.0, %v760
    %762 = vdwg.mxu0
    %v763 = vadd.f32 %v675, %v744
    %v764 = vadd.f32 %v676, %v746
    %v765 = vadd.f32 %v677, %v749
    %v766 = vadd.f32 %v678, %v751
    %v767 = vadd.f32 %v679, %v754
    %v768 = vadd.f32 %v680, %v756
    %v769 = vadd.f32 %v681, %v759
    %v770 = vadd.f32 %v682, %v761
    %s771 = scalar_lea.vmem %s1, 64
    %v772 = vld [vmem:[%s771] sm:$0xf]
    %v773 = vld [vmem:[%s771 + $0x4] sm:$0xf]
    %v774 = vld [vmem:[%s771 + $0x8] sm:$0xf]
    %v775 = vld [vmem:[%s771 + $0xc] sm:$0x1]
    %v784 = vunpack.c.l.b16 %v426
    %v785 = vunpack.c.l.b16 %v427
    %v786 = vunpack.c.l.b16 %v428
    %v787 = vunpack.c.l.b16 %v429
    %v788 = vunpack.c.l.b16 %v430
    %v789 = vunpack.c.l.b16 %v431
    %v790 = vunpack.c.l.b16 %v432
    %v791 = vunpack.c.l.b16 %v433
    %v792 = vpack.c.b16 %v785, %v784
    %v793 = vpack.c.b16 %v787, %v786
    %v794 = vpack.c.b16 %v789, %v788
    %v795 = vpack.c.b16 %v791, %v790
    %v800 = vunpack.c.l.b16 %v772
    %v801 = vunpack.c.l.b16 %v773
    %v802 = vunpack.c.l.b16 %v774
    %v803 = vunpack.c.l.b16 %v775
    %v804 = vpack.c.b16 %v801, %v800
    %v805 = vpack.c.b16 %v803, %v802
    %v808 = vsel %vm474, %v792, 0
    %v811 = vsel %vm474, %v793, 0
    %v814 = vsel %vm474, %v794, 0
    %v817 = vsel %vm474, %v795, 0
    %v820 = vsel %vm487, %v805, 0
    %822 = vmatpush.bf16.msra.mxu0 0
    %823 = vmatpush.bf16.msra.mxu0 0
    %824 = vmatpush.bf16.msra.mxu0 0
    %825 = vmatpush.bf16.msra.mxu0 0
    %826 = vmatpush.bf16.msra.mxu0 0
    %827 = vmatpush.bf16.msra.mxu0 0
    %828 = vmatpush.bf16.msra.mxu0 %v820
    %829 = vmatpush.bf16.msra.mxu0 %v804
    %830 = vmatmul.bf16.gmra.mxu0 %v808
    %v831 = vpop.f32.mrf.mxu0
    %v832 = vadd.f32 0.0, %v831
    %v833 = vpop.f32.mrf.mxu0
    %v834 = vadd.f32 0.0, %v833
    %835 = vmatmul.bf16.gmra.mxu0 %v811
    %v836 = vpop.f32.mrf.mxu0
    %v837 = vadd.f32 0.0, %v836
    %v838 = vpop.f32.mrf.mxu0
    %v839 = vadd.f32 0.0, %v838
    %840 = vmatmul.bf16.gmra.mxu0 %v814
    %v841 = vpop.f32.mrf.mxu0
    %v842 = vadd.f32 0.0, %v841
    %v843 = vpop.f32.mrf.mxu0
    %v844 = vadd.f32 0.0, %v843
    %845 = vmatmul.bf16.gmra.mxu0 %v817
    %v846 = vpop.f32.mrf.mxu0
    %v847 = vadd.f32 0.0, %v846
    %v848 = vpop.f32.mrf.mxu0
    %v849 = vadd.f32 0.0, %v848
    %850 = vdwg.mxu0
    %v851 = vadd.f32 %v763, %v832
    %v852 = vadd.f32 %v764, %v834
    %v853 = vadd.f32 %v765, %v837
    %v854 = vadd.f32 %v766, %v839
    %v855 = vadd.f32 %v767, %v842
    %v856 = vadd.f32 %v768, %v844
    %v857 = vadd.f32 %v769, %v847
    %v858 = vadd.f32 %v770, %v849
    %v859 = vld [vmem:[%s3] sm:$0xff]
    %v860 = vld [vmem:[%s3 + $0x8] sm:$0xff]
    %v861 = vld [vmem:[%s3 + $0x10] sm:$0xff]
    %v862 = vld [vmem:[%s3 + $0x18] sm:$0xff]
    %v863 = vld [vmem:[%s3 + $0x20] sm:$0xff]
    %v864 = vld [vmem:[%s3 + $0x28] sm:$0xff]
    %v865 = vld [vmem:[%s3 + $0x30] sm:$0xff]
    %v866 = vld [vmem:[%s3 + $0x38] sm:$0xff]
    %868 = vset.pattern.permute.xlu0 0
    %869 = vperm.xlu0 %868, %v859
    %v870 = vpop.permute.xlu0 %869
    %873 = vset.pattern.permute.xlu0 0
    %874 = vperm.xlu0 %873, %v860
    %v875 = vpop.permute.xlu0 %874
    %878 = vset.pattern.permute.xlu0 0
    %879 = vperm.xlu0 %878, %v861
    %v880 = vpop.permute.xlu0 %879
    %883 = vset.pattern.permute.xlu0 0
    %884 = vperm.xlu0 %883, %v862
    %v885 = vpop.permute.xlu0 %884
    %888 = vset.pattern.permute.xlu0 0
    %889 = vperm.xlu0 %888, %v863
    %v890 = vpop.permute.xlu0 %889
    %893 = vset.pattern.permute.xlu0 0
    %894 = vperm.xlu0 %893, %v864
    %v895 = vpop.permute.xlu0 %894
    %898 = vset.pattern.permute.xlu0 0
    %899 = vperm.xlu0 %898, %v865
    %v900 = vpop.permute.xlu0 %899
    %903 = vset.pattern.permute.xlu0 0
    %904 = vperm.xlu0 %903, %v866
    %v905 = vpop.permute.xlu0 %904
    %v907 = vadd.f32 %v851, %v870
    %v908 = vadd.f32 %v852, %v875
    %v909 = vadd.f32 %v853, %v880
    %v910 = vadd.f32 %v854, %v885
    %v911 = vadd.f32 %v855, %v890
    %v912 = vadd.f32 %v856, %v895
    %v913 = vadd.f32 %v857, %v900
    %v914 = vadd.f32 %v858, %v905
    %v915 = vmax.f32 %v907, 0.0
    %v916 = vmax.f32 %v908, 0.0
    %v917 = vmax.f32 %v909, 0.0
    %v918 = vmax.f32 %v910, 0.0
    %v919 = vmax.f32 %v911, 0.0
    %v920 = vmax.f32 %v912, 0.0
    %v921 = vmax.f32 %v913, 0.0
    %v922 = vmax.f32 %v914, 0.0
    %v923 = vpack.c.bf16 %v916, %v915
    %v924 = vpack.c.bf16 %v918, %v917
    %v925 = vpack.c.bf16 %v920, %v919
    %v926 = vpack.c.bf16 %v922, %v921
    %v927 = vld [vmem:[%s5] sm:$0xf]
    %v928 = vld [vmem:[%s5 + $0x4] sm:$0xf]
    %v929 = vld [vmem:[%s5 + $0x8] sm:$0xf]
    %v930 = vld [vmem:[%s5 + $0xc] sm:$0xf]
    %v931 = vld [vmem:[%s5 + $0x10] sm:$0xf]
    %v932 = vld [vmem:[%s5 + $0x14] sm:$0xf]
    %v933 = vld [vmem:[%s5 + $0x18] sm:$0xf]
    %v934 = vld [vmem:[%s5 + $0x1c] sm:$0xf]
    %v935 = vld [vmem:[%s5 + $0x20] sm:$0xf]
    %v936 = vld [vmem:[%s5 + $0x24] sm:$0xf]
    %v937 = vld [vmem:[%s5 + $0x28] sm:$0xf]
    %v938 = vld [vmem:[%s5 + $0x2c] sm:$0xf]
    %v951 = vunpack.c.l.b16 %v927
    %v952 = vunpack.c.l.b16 %v928
    %v953 = vunpack.c.l.b16 %v929
    %v954 = vunpack.c.l.b16 %v930
    %v955 = vunpack.c.l.b16 %v931
    %v956 = vunpack.c.l.b16 %v932
    %v957 = vunpack.c.l.b16 %v933
    %v958 = vunpack.c.l.b16 %v934
    %v959 = vunpack.c.l.b16 %v935
    %v960 = vunpack.c.l.b16 %v936
    %v961 = vunpack.c.l.b16 %v937
    %v962 = vunpack.c.l.b16 %v938
    %v963 = vpack.c.b16 %v952, %v951
    %v964 = vpack.c.b16 %v954, %v953
    %v965 = vpack.c.b16 %v956, %v955
    %v966 = vpack.c.b16 %v958, %v957
    %v967 = vpack.c.b16 %v960, %v959
    %v968 = vpack.c.b16 %v962, %v961
    %vm969 = vcmask 523264
    %v971 = vsel %vm969, %v963, 0
    %v974 = vsel %vm969, %v964, 0
    %v977 = vsel %vm969, %v965, 0
    %v980 = vsel %vm969, %v966, 0
    %v983 = vsel %vm969, %v967, 0
    %v986 = vsel %vm969, %v968, 0
    %988 = vmatpush.bf16.msra.mxu0 0
    %989 = vmatpush.bf16.msra.mxu0 0
    %990 = vmatpush.bf16.msra.mxu0 0
    %991 = vmatpush.bf16.msra.mxu0 0
    %992 = vmatpush.bf16.msra.mxu0 %v926
    %993 = vmatpush.bf16.msra.mxu0 %v925
    %994 = vmatpush.bf16.msra.mxu0 %v924
    %995 = vmatpush.bf16.msra.mxu0 %v923
    %996 = vmatmul.bf16.gmra.mxu0 %v971
    %v997 = vpop.f32.mrf.mxu0
    %v998 = vadd.f32 0.0, %v997
    %v999 = vpop.f32.mrf.mxu0
    %v1000 = vadd.f32 0.0, %v999
    %1001 = vmatmul.bf16.gmra.mxu0 %v974
    %v1002 = vpop.f32.mrf.mxu0
    %v1003 = vadd.f32 0.0, %v1002
    %v1004 = vpop.f32.mrf.mxu0
    %v1005 = vadd.f32 0.0, %v1004
    %1006 = vmatmul.bf16.gmra.mxu0 %v977
    %v1007 = vpop.f32.mrf.mxu0
    %v1008 = vadd.f32 0.0, %v1007
    %v1009 = vpop.f32.mrf.mxu0
    %v1010 = vadd.f32 0.0, %v1009
    %1011 = vmatmul.bf16.gmra.mxu0 %v980
    %v1012 = vpop.f32.mrf.mxu0
    %v1013 = vadd.f32 0.0, %v1012
    %v1014 = vpop.f32.mrf.mxu0
    %v1015 = vadd.f32 0.0, %v1014
    %1016 = vmatmul.bf16.gmra.mxu0 %v983
    %v1017 = vpop.f32.mrf.mxu0
    %v1018 = vadd.f32 0.0, %v1017
    %v1019 = vpop.f32.mrf.mxu0
    %v1020 = vadd.f32 0.0, %v1019
    %1021 = vmatmul.bf16.gmra.mxu0 %v986
    %v1022 = vpop.f32.mrf.mxu0
    %v1023 = vadd.f32 0.0, %v1022
    %v1024 = vpop.f32.mrf.mxu0
    %v1025 = vadd.f32 0.0, %v1024
    %1026 = vdwg.mxu0
    %v1027 = vpack.c.bf16 %v998, %v998
    %v1028 = vpack.c.bf16 %v1000, %v1000
    %v1029 = vpack.c.bf16 %v1003, %v1003
    %v1030 = vpack.c.bf16 %v1005, %v1005
    %v1031 = vpack.c.bf16 %v1008, %v1008
    %v1032 = vpack.c.bf16 %v1010, %v1010
    %v1033 = vpack.c.bf16 %v1013, %v1013
    %v1034 = vpack.c.bf16 %v1015, %v1015
    %v1035 = vpack.c.bf16 %v1018, %v1018
    %v1036 = vpack.c.bf16 %v1020, %v1020
    %v1037 = vpack.c.bf16 %v1023, %v1023
    %v1038 = vpack.c.bf16 %v1025, %v1025
    %v1039 = vld [vmem:[%s4] sm:$0xf]
    %v1040 = vld [vmem:[%s4 + $0x4] sm:$0xf]
    %v1041 = vld [vmem:[%s4 + $0x8] sm:$0xf]
    %v1042 = vld [vmem:[%s4 + $0xc] sm:$0xf]
    %v1043 = vld [vmem:[%s4 + $0x10] sm:$0xf]
    %v1044 = vld [vmem:[%s4 + $0x14] sm:$0xf]
    %v1045 = vld [vmem:[%s4 + $0x18] sm:$0x3]
    %s1046 = scalar_lea.vmem %s4, 28
    %v1047 = vld [vmem:[%s1046] sm:$0xf]
    %v1048 = vld [vmem:[%s1046 + $0x4] sm:$0xf]
    %v1049 = vld [vmem:[%s1046 + $0x8] sm:$0xf]
    %v1050 = vld [vmem:[%s1046 + $0xc] sm:$0xf]
    %v1051 = vld [vmem:[%s1046 + $0x10] sm:$0xf]
    %v1052 = vld [vmem:[%s1046 + $0x14] sm:$0xf]
    %v1053 = vld [vmem:[%s1046 + $0x18] sm:$0x3]
    %v1058 = vunpack.c.l.b16 %v1031
    %v1059 = vunpack.c.l.b16 %v1032
    %v1060 = vunpack.c.l.b16 %v1033
    %v1061 = vunpack.c.l.b16 %v1034
    %v1062 = vpack.c.b16 %v1059, %v1058
    %v1063 = vpack.c.b16 %v1061, %v1060
    %v1071 = vunpack.c.l.b16 %v1047
    %v1072 = vunpack.c.l.b16 %v1048
    %v1073 = vunpack.c.l.b16 %v1049
    %v1074 = vunpack.c.l.b16 %v1050
    %v1075 = vunpack.c.l.b16 %v1051
    %v1076 = vunpack.c.l.b16 %v1052
    %v1077 = vunpack.c.l.b16 %v1053
    %v1078 = vpack.c.b16 %v1072, %v1071
    %v1079 = vpack.c.b16 %v1074, %v1073
    %v1080 = vpack.c.b16 %v1076, %v1075
    %v1081 = vpack.c.b16 %v1077, %v1077
    %vm1085 = vcmask 424960
    %v1087 = vsel %vm1085, %v1062, 0
    %v1090 = vsel %vm1085, %v1063, 0
    %v1093 = vsel %vm281, %v1081, 0
    %1095 = vmatpush.bf16.msra.mxu0 0
    %1096 = vmatpush.bf16.msra.mxu0 0
    %1097 = vmatpush.bf16.msra.mxu0 0
    %1098 = vmatpush.bf16.msra.mxu0 0
    %1099 = vmatpush.bf16.msra.mxu0 %v1093
    %1100 = vmatpush.bf16.msra.mxu0 %v1080
    %1101 = vmatpush.bf16.msra.mxu0 %v1079
    %1102 = vmatpush.bf16.msra.mxu0 %v1078
    %1103 = vmatmul.bf16.gmra.mxu0 %v1087
    %v1104 = vpop.f32.mrf.mxu0
    %v1105 = vadd.f32 0.0, %v1104
    %v1106 = vpop.f32.mrf.mxu0
    %v1107 = vadd.f32 0.0, %v1106
    %1108 = vmatmul.bf16.gmra.mxu0 %v1090
    %v1109 = vpop.f32.mrf.mxu0
    %v1110 = vadd.f32 0.0, %v1109
    %v1111 = vpop.f32.mrf.mxu0
    %v1112 = vadd.f32 0.0, %v1111
    %1113 = vdwg.mxu0
    %v1118 = vunpack.c.l.b16 %v1027
    %v1119 = vunpack.c.l.b16 %v1028
    %v1120 = vunpack.c.l.b16 %v1029
    %v1121 = vunpack.c.l.b16 %v1030
    %v1122 = vpack.c.b16 %v1119, %v1118
    %v1123 = vpack.c.b16 %v1121, %v1120
    %v1131 = vunpack.c.l.b16 %v1039
    %v1132 = vunpack.c.l.b16 %v1040
    %v1133 = vunpack.c.l.b16 %v1041
    %v1134 = vunpack.c.l.b16 %v1042
    %v1135 = vunpack.c.l.b16 %v1043
    %v1136 = vunpack.c.l.b16 %v1044
    %v1137 = vunpack.c.l.b16 %v1045
    %v1138 = vpack.c.b16 %v1132, %v1131
    %v1139 = vpack.c.b16 %v1134, %v1133
    %v1140 = vpack.c.b16 %v1136, %v1135
    %v1141 = vpack.c.b16 %v1137, %v1137
    %v1146 = vsel %vm1085, %v1122, 0
    %v1149 = vsel %vm1085, %v1123, 0
    %v1152 = vsel %vm281, %v1141, 0
    %1154 = vmatpush.bf16.msra.mxu0 0
    %1155 = vmatpush.bf16.msra.mxu0 0
    %1156 = vmatpush.bf16.msra.mxu0 0
    %1157 = vmatpush.bf16.msra.mxu0 0
    %1158 = vmatpush.bf16.msra.mxu0 %v1152
    %1159 = vmatpush.bf16.msra.mxu0 %v1140
    %1160 = vmatpush.bf16.msra.mxu0 %v1139
    %1161 = vmatpush.bf16.msra.mxu0 %v1138
    %1162 = vmatmul.bf16.gmra.mxu0 %v1146
    %v1163 = vpop.f32.mrf.mxu0
    %v1164 = vadd.f32 %v1105, %v1163
    %v1165 = vpop.f32.mrf.mxu0
    %v1166 = vadd.f32 %v1107, %v1165
    %1167 = vmatmul.bf16.gmra.mxu0 %v1149
    %v1168 = vpop.f32.mrf.mxu0
    %v1169 = vadd.f32 %v1110, %v1168
    %v1170 = vpop.f32.mrf.mxu0
    %v1171 = vadd.f32 %v1112, %v1170
    %1172 = vdwg.mxu0
    %s1173 = scalar_lea.vmem %s4, 56
    %v1174 = vld [vmem:[%s1173] sm:$0xf]
    %v1175 = vld [vmem:[%s1173 + $0x4] sm:$0xf]
    %v1176 = vld [vmem:[%s1173 + $0x8] sm:$0xf]
    %v1177 = vld [vmem:[%s1173 + $0xc] sm:$0xf]
    %v1178 = vld [vmem:[%s1173 + $0x10] sm:$0xf]
    %v1179 = vld [vmem:[%s1173 + $0x14] sm:$0xf]
    %v1180 = vld [vmem:[%s1173 + $0x18] sm:$0x3]
    %v1185 = vunpack.c.l.b16 %v1035
    %v1186 = vunpack.c.l.b16 %v1036
    %v1187 = vunpack.c.l.b16 %v1037
    %v1188 = vunpack.c.l.b16 %v1038
    %v1189 = vpack.c.b16 %v1186, %v1185
    %v1190 = vpack.c.b16 %v1188, %v1187
    %v1198 = vunpack.c.l.b16 %v1174
    %v1199 = vunpack.c.l.b16 %v1175
    %v1200 = vunpack.c.l.b16 %v1176
    %v1201 = vunpack.c.l.b16 %v1177
    %v1202 = vunpack.c.l.b16 %v1178
    %v1203 = vunpack.c.l.b16 %v1179
    %v1204 = vunpack.c.l.b16 %v1180
    %v1205 = vpack.c.b16 %v1199, %v1198
    %v1206 = vpack.c.b16 %v1201, %v1200
    %v1207 = vpack.c.b16 %v1203, %v1202
    %v1208 = vpack.c.b16 %v1204, %v1204
    %v1213 = vsel %vm1085, %v1189, 0
    %v1216 = vsel %vm1085, %v1190, 0
    %v1219 = vsel %vm281, %v1208, 0
    %1221 = vmatpush.bf16.msra.mxu0 0
    %1222 = vmatpush.bf16.msra.mxu0 0
    %1223 = vmatpush.bf16.msra.mxu0 0
    %1224 = vmatpush.bf16.msra.mxu0 0
    %1225 = vmatpush.bf16.msra.mxu0 %v1219
    %1226 = vmatpush.bf16.msra.mxu0 %v1207
    %1227 = vmatpush.bf16.msra.mxu0 %v1206
    %1228 = vmatpush.bf16.msra.mxu0 %v1205
    %1229 = vmatmul.bf16.gmra.mxu0 %v1213
    %v1230 = vpop.f32.mrf.mxu0
    %v1231 = vadd.f32 0.0, %v1230
    %v1232 = vpop.f32.mrf.mxu0
    %v1233 = vadd.f32 0.0, %v1232
    %1234 = vmatmul.bf16.gmra.mxu0 %v1216
    %v1235 = vpop.f32.mrf.mxu0
    %v1236 = vadd.f32 0.0, %v1235
    %v1237 = vpop.f32.mrf.mxu0
    %v1238 = vadd.f32 0.0, %v1237
    %1239 = vdwg.mxu0
    %v1240 = vadd.f32 %v1164, %v1231
    %v1241 = vadd.f32 %v1166, %v1233
    %v1242 = vadd.f32 %v1169, %v1236
    %v1243 = vadd.f32 %v1171, %v1238
    %v1244 = vld [vmem:[%s6] sm:$0xff]
    %v1245 = vld [vmem:[%s6 + $0x8] sm:$0xff]
    %v1246 = vld [vmem:[%s6 + $0x10] sm:$0xff]
    %v1247 = vld [vmem:[%s6 + $0x18] sm:$0xff]
    %1249 = vset.pattern.permute.xlu0 0
    %1250 = vperm.xlu0 %1249, %v1244
    %v1251 = vpop.permute.xlu0 %1250
    %1254 = vset.pattern.permute.xlu0 0
    %1255 = vperm.xlu0 %1254, %v1245
    %v1256 = vpop.permute.xlu0 %1255
    %1259 = vset.pattern.permute.xlu0 0
    %1260 = vperm.xlu0 %1259, %v1246
    %v1261 = vpop.permute.xlu0 %1260
    %1264 = vset.pattern.permute.xlu0 0
    %1265 = vperm.xlu0 %1264, %v1247
    %v1266 = vpop.permute.xlu0 %1265
    %v1268 = vadd.f32 %v1240, %v1251
    %v1269 = vadd.f32 %v1241, %v1256
    %v1270 = vadd.f32 %v1242, %v1261
    %v1271 = vadd.f32 %v1243, %v1266
    %v1272 = vmax.f32 %v1268, 0.0
    %v1273 = vmax.f32 %v1269, 0.0
    %v1274 = vmax.f32 %v1270, 0.0
    %v1275 = vmax.f32 %v1271, 0.0
    %v1276 = vpack.c.bf16 %v1273, %v1272
    %v1277 = vpack.c.bf16 %v1275, %v1274
    %v1278 = vld [vmem:[%s8] sm:$0xf]
    %v1279 = vld [vmem:[%s8 + $0x4] sm:$0xf]
    %v1280 = vld [vmem:[%s8 + $0x8] sm:$0xf]
    %v1281 = vld [vmem:[%s8 + $0xc] sm:$0xf]
    %v1282 = vld [vmem:[%s8 + $0x10] sm:$0xf]
    %v1283 = vld [vmem:[%s8 + $0x14] sm:$0xf]
    %v1284 = vld [vmem:[%s8 + $0x18] sm:$0xf]
    %v1285 = vld [vmem:[%s8 + $0x1c] sm:$0xf]
    %v1294 = vunpack.c.l.b16 %v1278
    %v1295 = vunpack.c.l.b16 %v1279
    %v1296 = vunpack.c.l.b16 %v1280
    %v1297 = vunpack.c.l.b16 %v1281
    %v1298 = vunpack.c.l.b16 %v1282
    %v1299 = vunpack.c.l.b16 %v1283
    %v1300 = vunpack.c.l.b16 %v1284
    %v1301 = vunpack.c.l.b16 %v1285
    %v1302 = vpack.c.b16 %v1295, %v1294
    %v1303 = vpack.c.b16 %v1297, %v1296
    %v1304 = vpack.c.b16 %v1299, %v1298
    %v1305 = vpack.c.b16 %v1301, %v1300
    %vm1306 = vcmask 261120
    %v1308 = vsel %vm1306, %v1302, 0
    %v1311 = vsel %vm1306, %v1303, 0
    %v1314 = vsel %vm1306, %v1304, 0
    %v1317 = vsel %vm1306, %v1305, 0
    %1319 = vmatpush.bf16.msra.mxu0 0
    %1320 = vmatpush.bf16.msra.mxu0 0
    %1321 = vmatpush.bf16.msra.mxu0 0
    %1322 = vmatpush.bf16.msra.mxu0 0
    %1323 = vmatpush.bf16.msra.mxu0 0
    %1324 = vmatpush.bf16.msra.mxu0 0
    %1325 = vmatpush.bf16.msra.mxu0 %v1277
    %1326 = vmatpush.bf16.msra.mxu0 %v1276
    %1327 = vmatmul.bf16.gmra.mxu0 %v1308
    %v1328 = vpop.f32.mrf.mxu0
    %v1329 = vadd.f32 0.0, %v1328
    %v1330 = vpop.f32.mrf.mxu0
    %v1331 = vadd.f32 0.0, %v1330
    %1332 = vmatmul.bf16.gmra.mxu0 %v1311
    %v1333 = vpop.f32.mrf.mxu0
    %v1334 = vadd.f32 0.0, %v1333
    %v1335 = vpop.f32.mrf.mxu0
    %v1336 = vadd.f32 0.0, %v1335
    %1337 = vmatmul.bf16.gmra.mxu0 %v1314
    %v1338 = vpop.f32.mrf.mxu0
    %v1339 = vadd.f32 0.0, %v1338
    %v1340 = vpop.f32.mrf.mxu0
    %v1341 = vadd.f32 0.0, %v1340
    %1342 = vmatmul.bf16.gmra.mxu0 %v1317
    %v1343 = vpop.f32.mrf.mxu0
    %v1344 = vadd.f32 0.0, %v1343
    %v1345 = vpop.f32.mrf.mxu0
    %v1346 = vadd.f32 0.0, %v1345
    %1347 = vdwg.mxu0
    %v1348 = vpack.c.bf16 %v1329, %v1329
    %v1349 = vpack.c.bf16 %v1331, %v1331
    %v1350 = vpack.c.bf16 %v1334, %v1334
    %v1351 = vpack.c.bf16 %v1336, %v1336
    %v1352 = vpack.c.bf16 %v1339, %v1339
    %v1353 = vpack.c.bf16 %v1341, %v1341
    %v1354 = vpack.c.bf16 %v1344, %v1344
    %v1355 = vpack.c.bf16 %v1346, %v1346
    %v1356 = vld [vmem:[%s7] sm:$0xff]
    %v1357 = vld [vmem:[%s7 + $0x8] sm:$0xff]
    %v1358 = vld [vmem:[%s7 + $0x10] sm:$0xff]
    %v1359 = vld [vmem:[%s7 + $0x18] sm:$0xff]
    %v1360 = vld [vmem:[%s7 + $0x20] sm:$0xff]
    %v1361 = vld [vmem:[%s7 + $0x28] sm:$0xff]
    %v1362 = vld [vmem:[%s7 + $0x30] sm:$0xff]
    %v1363 = vld [vmem:[%s7 + $0x38] sm:$0xff]
    %v1364 = vld [vmem:[%s7 + $0x40] sm:$0xff]
    %v1365 = vld [vmem:[%s7 + $0x48] sm:$0xff]
    %v1366 = vld [vmem:[%s7 + $0x50] sm:$0xff]
    %v1367 = vld [vmem:[%s7 + $0x58] sm:$0xff]
    %v1368 = vld [vmem:[%s7 + $0x60] sm:$0x33]
    %s1369 = scalar_lea.vmem %s7, 104
    %v1370 = vld [vmem:[%s1369] sm:$0xff]
    %v1371 = vld [vmem:[%s1369 + $0x8] sm:$0xff]
    %v1372 = vld [vmem:[%s1369 + $0x10] sm:$0xff]
    %v1373 = vld [vmem:[%s1369 + $0x18] sm:$0xff]
    %v1374 = vld [vmem:[%s1369 + $0x20] sm:$0xff]
    %v1375 = vld [vmem:[%s1369 + $0x28] sm:$0xff]
    %v1376 = vld [vmem:[%s1369 + $0x30] sm:$0xff]
    %v1377 = vld [vmem:[%s1369 + $0x38] sm:$0xff]
    %v1378 = vld [vmem:[%s1369 + $0x40] sm:$0xff]
    %v1379 = vld [vmem:[%s1369 + $0x48] sm:$0xff]
    %v1380 = vld [vmem:[%s1369 + $0x50] sm:$0xff]
    %v1381 = vld [vmem:[%s1369 + $0x58] sm:$0xff]
    %v1382 = vld [vmem:[%s1369 + $0x60] sm:$0x33]
    %v1385 = vunpack.c.l.b16 %v1350
    %v1386 = vunpack.c.l.b16 %v1351
    %v1387 = vpack.c.b16 %v1386, %v1385
    %v1401 = vunpack.c.l.b16 %v1370
    %v1402 = vunpack.c.h.b16 %v1370
    %v1403 = vunpack.c.l.b16 %v1371
    %v1404 = vunpack.c.h.b16 %v1371
    %v1405 = vunpack.c.l.b16 %v1372
    %v1406 = vunpack.c.h.b16 %v1372
    %v1407 = vunpack.c.l.b16 %v1373
    %v1408 = vunpack.c.h.b16 %v1373
    %v1409 = vunpack.c.l.b16 %v1374
    %v1410 = vunpack.c.h.b16 %v1374
    %v1411 = vunpack.c.l.b16 %v1375
    %v1412 = vunpack.c.h.b16 %v1375
    %v1413 = vunpack.c.l.b16 %v1376
    %v1414 = vunpack.c.h.b16 %v1376
    %v1415 = vunpack.c.l.b16 %v1377
    %v1416 = vunpack.c.h.b16 %v1377
    %v1417 = vunpack.c.l.b16 %v1378
    %v1418 = vunpack.c.h.b16 %v1378
    %v1419 = vunpack.c.l.b16 %v1379
    %v1420 = vunpack.c.h.b16 %v1379
    %v1421 = vunpack.c.l.b16 %v1380
    %v1422 = vunpack.c.h.b16 %v1380
    %v1423 = vunpack.c.l.b16 %v1381
    %v1424 = vunpack.c.h.b16 %v1381
    %v1425 = vunpack.c.l.b16 %v1382
    %v1426 = vunpack.c.h.b16 %v1382
    %v1427 = vpack.c.b16 %v1403, %v1401
    %v1428 = vpack.c.b16 %v1404, %v1402
    %v1429 = vpack.c.b16 %v1407, %v1405
    %v1430 = vpack.c.b16 %v1408, %v1406
    %v1431 = vpack.c.b16 %v1411, %v1409
    %v1432 = vpack.c.b16 %v1412, %v1410
    %v1433 = vpack.c.b16 %v1415, %v1413
    %v1434 = vpack.c.b16 %v1416, %v1414
    %v1435 = vpack.c.b16 %v1419, %v1417
    %v1436 = vpack.c.b16 %v1420, %v1418
    %v1437 = vpack.c.b16 %v1423, %v1421
    %v1438 = vpack.c.b16 %v1424, %v1422
    %v1439 = vpack.c.b16 %v1425, %v1425
    %v1440 = vpack.c.b16 %v1426, %v1426
    %vm1453 = vcmask 818176
    %v1455 = vsel %vm1453, %v1387, 0
    %v1458 = vsel %vm281, %v1439, 0
    %v1461 = vsel %vm281, %v1440, 0
    %1463 = vmatpush.bf16.msra.mxu0 0
    %1464 = vmatpush.bf16.msra.mxu0 %v1458
    %1465 = vmatpush.bf16.msra.mxu0 %v1437
    %1466 = vmatpush.bf16.msra.mxu0 %v1435
    %1467 = vmatpush.bf16.msra.mxu0 %v1433
    %1468 = vmatpush.bf16.msra.mxu0 %v1431
    %1469 = vmatpush.bf16.msra.mxu0 %v1429
    %1470 = vmatpush.bf16.msra.mxu0 %v1427
    %1471 = vmatmul.bf16.gmra.mxu0 %v1455
    %v1472 = vpop.f32.mrf.mxu0
    %v1473 = vadd.f32 0.0, %v1472
    %v1474 = vpop.f32.mrf.mxu0
    %v1475 = vadd.f32 0.0, %v1474
    %1476 = vdwg.mxu0
    %1477 = vmatpush.bf16.msra.mxu0 0
    %1478 = vmatpush.bf16.msra.mxu0 %v1461
    %1479 = vmatpush.bf16.msra.mxu0 %v1438
    %1480 = vmatpush.bf16.msra.mxu0 %v1436
    %1481 = vmatpush.bf16.msra.mxu0 %v1434
    %1482 = vmatpush.bf16.msra.mxu0 %v1432
    %1483 = vmatpush.bf16.msra.mxu0 %v1430
    %1484 = vmatpush.bf16.msra.mxu0 %v1428
    %1485 = vmatmul.bf16.gmra.mxu0 %v1455
    %v1486 = vpop.f32.mrf.mxu0
    %v1487 = vadd.f32 0.0, %v1486
    %v1488 = vpop.f32.mrf.mxu0
    %v1489 = vadd.f32 0.0, %v1488
    %1490 = vdwg.mxu0
    %v1493 = vunpack.c.l.b16 %v1348
    %v1494 = vunpack.c.l.b16 %v1349
    %v1495 = vpack.c.b16 %v1494, %v1493
    %v1509 = vunpack.c.l.b16 %v1356
    %v1510 = vunpack.c.h.b16 %v1356
    %v1511 = vunpack.c.l.b16 %v1357
    %v1512 = vunpack.c.h.b16 %v1357
    %v1513 = vunpack.c.l.b16 %v1358
    %v1514 = vunpack.c.h.b16 %v1358
    %v1515 = vunpack.c.l.b16 %v1359
    %v1516 = vunpack.c.h.b16 %v1359
    %v1517 = vunpack.c.l.b16 %v1360
    %v1518 = vunpack.c.h.b16 %v1360
    %v1519 = vunpack.c.l.b16 %v1361
    %v1520 = vunpack.c.h.b16 %v1361
    %v1521 = vunpack.c.l.b16 %v1362
    %v1522 = vunpack.c.h.b16 %v1362
    %v1523 = vunpack.c.l.b16 %v1363
    %v1524 = vunpack.c.h.b16 %v1363
    %v1525 = vunpack.c.l.b16 %v1364
    %v1526 = vunpack.c.h.b16 %v1364
    %v1527 = vunpack.c.l.b16 %v1365
    %v1528 = vunpack.c.h.b16 %v1365
    %v1529 = vunpack.c.l.b16 %v1366
    %v1530 = vunpack.c.h.b16 %v1366
    %v1531 = vunpack.c.l.b16 %v1367
    %v1532 = vunpack.c.h.b16 %v1367
    %v1533 = vunpack.c.l.b16 %v1368
    %v1534 = vunpack.c.h.b16 %v1368
    %v1535 = vpack.c.b16 %v1511, %v1509
    %v1536 = vpack.c.b16 %v1512, %v1510
    %v1537 = vpack.c.b16 %v1515, %v1513
    %v1538 = vpack.c.b16 %v1516, %v1514
    %v1539 = vpack.c.b16 %v1519, %v1517
    %v1540 = vpack.c.b16 %v1520, %v1518
    %v1541 = vpack.c.b16 %v1523, %v1521
    %v1542 = vpack.c.b16 %v1524, %v1522
    %v1543 = vpack.c.b16 %v1527, %v1525
    %v1544 = vpack.c.b16 %v1528, %v1526
    %v1545 = vpack.c.b16 %v1531, %v1529
    %v1546 = vpack.c.b16 %v1532, %v1530
    %v1547 = vpack.c.b16 %v1533, %v1533
    %v1548 = vpack.c.b16 %v1534, %v1534
    %v1562 = vsel %vm1453, %v1495, 0
    %v1565 = vsel %vm281, %v1547, 0
    %v1568 = vsel %vm281, %v1548, 0
    %1570 = vmatpush.bf16.msra.mxu0 0
    %1571 = vmatpush.bf16.msra.mxu0 %v1565
    %1572 = vmatpush.bf16.msra.mxu0 %v1545
    %1573 = vmatpush.bf16.msra.mxu0 %v1543
    %1574 = vmatpush.bf16.msra.mxu0 %v1541
    %1575 = vmatpush.bf16.msra.mxu0 %v1539
    %1576 = vmatpush.bf16.msra.mxu0 %v1537
    %1577 = vmatpush.bf16.msra.mxu0 %v1535
    %1578 = vmatmul.bf16.gmra.mxu0 %v1562
    %v1579 = vpop.f32.mrf.mxu0
    %v1580 = vadd.f32 %v1473, %v1579
    %v1581 = vpop.f32.mrf.mxu0
    %v1582 = vadd.f32 %v1475, %v1581
    %1583 = vdwg.mxu0
    %1584 = vmatpush.bf16.msra.mxu0 0
    %1585 = vmatpush.bf16.msra.mxu0 %v1568
    %1586 = vmatpush.bf16.msra.mxu0 %v1546
    %1587 = vmatpush.bf16.msra.mxu0 %v1544
    %1588 = vmatpush.bf16.msra.mxu0 %v1542
    %1589 = vmatpush.bf16.msra.mxu0 %v1540
    %1590 = vmatpush.bf16.msra.mxu0 %v1538
    %1591 = vmatpush.bf16.msra.mxu0 %v1536
    %1592 = vmatmul.bf16.gmra.mxu0 %v1562
    %v1593 = vpop.f32.mrf.mxu0
    %v1594 = vadd.f32 %v1487, %v1593
    %v1595 = vpop.f32.mrf.mxu0
    %v1596 = vadd.f32 %v1489, %v1595
    %1597 = vdwg.mxu0
    %s1598 = scalar_lea.vmem %s7, 208
    %v1599 = vld [vmem:[%s1598] sm:$0xff]
    %v1600 = vld [vmem:[%s1598 + $0x8] sm:$0xff]
    %v1601 = vld [vmem:[%s1598 + $0x10] sm:$0xff]
    %v1602 = vld [vmem:[%s1598 + $0x18] sm:$0xff]
    %v1603 = vld [vmem:[%s1598 + $0x20] sm:$0xff]
    %v1604 = vld [vmem:[%s1598 + $0x28] sm:$0xff]
    %v1605 = vld [vmem:[%s1598 + $0x30] sm:$0xff]
    %v1606 = vld [vmem:[%s1598 + $0x38] sm:$0xff]
    %v1607 = vld [vmem:[%s1598 + $0x40] sm:$0xff]
    %v1608 = vld [vmem:[%s1598 + $0x48] sm:$0xff]
    %v1609 = vld [vmem:[%s1598 + $0x50] sm:$0xff]
    %v1610 = vld [vmem:[%s1598 + $0x58] sm:$0xff]
    %v1611 = vld [vmem:[%s1598 + $0x60] sm:$0x33]
    %v1614 = vunpack.c.l.b16 %v1352
    %v1615 = vunpack.c.l.b16 %v1353
    %v1616 = vpack.c.b16 %v1615, %v1614
    %v1630 = vunpack.c.l.b16 %v1599
    %v1631 = vunpack.c.h.b16 %v1599
    %v1632 = vunpack.c.l.b16 %v1600
    %v1633 = vunpack.c.h.b16 %v1600
    %v1634 = vunpack.c.l.b16 %v1601
    %v1635 = vunpack.c.h.b16 %v1601
    %v1636 = vunpack.c.l.b16 %v1602
    %v1637 = vunpack.c.h.b16 %v1602
    %v1638 = vunpack.c.l.b16 %v1603
    %v1639 = vunpack.c.h.b16 %v1603
    %v1640 = vunpack.c.l.b16 %v1604
    %v1641 = vunpack.c.h.b16 %v1604
    %v1642 = vunpack.c.l.b16 %v1605
    %v1643 = vunpack.c.h.b16 %v1605
    %v1644 = vunpack.c.l.b16 %v1606
    %v1645 = vunpack.c.h.b16 %v1606
    %v1646 = vunpack.c.l.b16 %v1607
    %v1647 = vunpack.c.h.b16 %v1607
    %v1648 = vunpack.c.l.b16 %v1608
    %v1649 = vunpack.c.h.b16 %v1608
    %v1650 = vunpack.c.l.b16 %v1609
    %v1651 = vunpack.c.h.b16 %v1609
    %v1652 = vunpack.c.l.b16 %v1610
    %v1653 = vunpack.c.h.b16 %v1610
    %v1654 = vunpack.c.l.b16 %v1611
    %v1655 = vunpack.c.h.b16 %v1611
    %v1656 = vpack.c.b16 %v1632, %v1630
    %v1657 = vpack.c.b16 %v1633, %v1631
    %v1658 = vpack.c.b16 %v1636, %v1634
    %v1659 = vpack.c.b16 %v1637, %v1635
    %v1660 = vpack.c.b16 %v1640, %v1638
    %v1661 = vpack.c.b16 %v1641, %v1639
    %v1662 = vpack.c.b16 %v1644, %v1642
    %v1663 = vpack.c.b16 %v1645, %v1643
    %v1664 = vpack.c.b16 %v1648, %v1646
    %v1665 = vpack.c.b16 %v1649, %v1647
    %v1666 = vpack.c.b16 %v1652, %v1650
    %v1667 = vpack.c.b16 %v1653, %v1651
    %v1668 = vpack.c.b16 %v1654, %v1654
    %v1669 = vpack.c.b16 %v1655, %v1655
    %v1683 = vsel %vm1453, %v1616, 0
    %v1686 = vsel %vm281, %v1668, 0
    %v1689 = vsel %vm281, %v1669, 0
    %1691 = vmatpush.bf16.msra.mxu0 0
    %1692 = vmatpush.bf16.msra.mxu0 %v1686
    %1693 = vmatpush.bf16.msra.mxu0 %v1666
    %1694 = vmatpush.bf16.msra.mxu0 %v1664
    %1695 = vmatpush.bf16.msra.mxu0 %v1662
    %1696 = vmatpush.bf16.msra.mxu0 %v1660
    %1697 = vmatpush.bf16.msra.mxu0 %v1658
    %1698 = vmatpush.bf16.msra.mxu0 %v1656
    %1699 = vmatmul.bf16.gmra.mxu0 %v1683
    %v1700 = vpop.f32.mrf.mxu0
    %v1701 = vadd.f32 0.0, %v1700
    %v1702 = vpop.f32.mrf.mxu0
    %v1703 = vadd.f32 0.0, %v1702
    %1704 = vdwg.mxu0
    %1705 = vmatpush.bf16.msra.mxu0 0
    %1706 = vmatpush.bf16.msra.mxu0 %v1689
    %1707 = vmatpush.bf16.msra.mxu0 %v1667
    %1708 = vmatpush.bf16.msra.mxu0 %v1665
    %1709 = vmatpush.bf16.msra.mxu0 %v1663
    %1710 = vmatpush.bf16.msra.mxu0 %v1661
    %1711 = vmatpush.bf16.msra.mxu0 %v1659
    %1712 = vmatpush.bf16.msra.mxu0 %v1657
    %1713 = vmatmul.bf16.gmra.mxu0 %v1683
    %v1714 = vpop.f32.mrf.mxu0
    %v1715 = vadd.f32 0.0, %v1714
    %v1716 = vpop.f32.mrf.mxu0
    %v1717 = vadd.f32 0.0, %v1716
    %1718 = vdwg.mxu0
    %v1719 = vadd.f32 %v1580, %v1701
    %v1720 = vadd.f32 %v1594, %v1715
    %v1721 = vadd.f32 %v1582, %v1703
    %v1722 = vadd.f32 %v1596, %v1717
    %s1723 = scalar_lea.vmem %s7, 312
    %v1724 = vld [vmem:[%s1723] sm:$0xff]
    %v1725 = vld [vmem:[%s1723 + $0x8] sm:$0xff]
    %v1726 = vld [vmem:[%s1723 + $0x10] sm:$0xff]
    %v1727 = vld [vmem:[%s1723 + $0x18] sm:$0xff]
    %v1728 = vld [vmem:[%s1723 + $0x20] sm:$0xff]
    %v1729 = vld [vmem:[%s1723 + $0x28] sm:$0xff]
    %v1730 = vld [vmem:[%s1723 + $0x30] sm:$0xff]
    %v1731 = vld [vmem:[%s1723 + $0x38] sm:$0xff]
    %v1732 = vld [vmem:[%s1723 + $0x40] sm:$0xff]
    %v1733 = vld [vmem:[%s1723 + $0x48] sm:$0xff]
    %v1734 = vld [vmem:[%s1723 + $0x50] sm:$0xff]
    %v1735 = vld [vmem:[%s1723 + $0x58] sm:$0xff]
    %v1736 = vld [vmem:[%s1723 + $0x60] sm:$0x33]
    %v1739 = vunpack.c.l.b16 %v1354
    %v1740 = vunpack.c.l.b16 %v1355
    %v1741 = vpack.c.b16 %v1740, %v1739
    %v1755 = vunpack.c.l.b16 %v1724
    %v1756 = vunpack.c.h.b16 %v1724
    %v1757 = vunpack.c.l.b16 %v1725
    %v1758 = vunpack.c.h.b16 %v1725
    %v1759 = vunpack.c.l.b16 %v1726
    %v1760 = vunpack.c.h.b16 %v1726
    %v1761 = vunpack.c.l.b16 %v1727
    %v1762 = vunpack.c.h.b16 %v1727
    %v1763 = vunpack.c.l.b16 %v1728
    %v1764 = vunpack.c.h.b16 %v1728
    %v1765 = vunpack.c.l.b16 %v1729
    %v1766 = vunpack.c.h.b16 %v1729
    %v1767 = vunpack.c.l.b16 %v1730
    %v1768 = vunpack.c.h.b16 %v1730
    %v1769 = vunpack.c.l.b16 %v1731
    %v1770 = vunpack.c.h.b16 %v1731
    %v1771 = vunpack.c.l.b16 %v1732
    %v1772 = vunpack.c.h.b16 %v1732
    %v1773 = vunpack.c.l.b16 %v1733
    %v1774 = vunpack.c.h.b16 %v1733
    %v1775 = vunpack.c.l.b16 %v1734
    %v1776 = vunpack.c.h.b16 %v1734
    %v1777 = vunpack.c.l.b16 %v1735
    %v1778 = vunpack.c.h.b16 %v1735
    %v1779 = vunpack.c.l.b16 %v1736
    %v1780 = vunpack.c.h.b16 %v1736
    %v1781 = vpack.c.b16 %v1757, %v1755
    %v1782 = vpack.c.b16 %v1758, %v1756
    %v1783 = vpack.c.b16 %v1761, %v1759
    %v1784 = vpack.c.b16 %v1762, %v1760
    %v1785 = vpack.c.b16 %v1765, %v1763
    %v1786 = vpack.c.b16 %v1766, %v1764
    %v1787 = vpack.c.b16 %v1769, %v1767
    %v1788 = vpack.c.b16 %v1770, %v1768
    %v1789 = vpack.c.b16 %v1773, %v1771
    %v1790 = vpack.c.b16 %v1774, %v1772
    %v1791 = vpack.c.b16 %v1777, %v1775
    %v1792 = vpack.c.b16 %v1778, %v1776
    %v1793 = vpack.c.b16 %v1779, %v1779
    %v1794 = vpack.c.b16 %v1780, %v1780
    %v1808 = vsel %vm1453, %v1741, 0
    %v1811 = vsel %vm281, %v1793, 0
    %v1814 = vsel %vm281, %v1794, 0
    %1816 = vmatpush.bf16.msra.mxu0 0
    %1817 = vmatpush.bf16.msra.mxu0 %v1811
    %1818 = vmatpush.bf16.msra.mxu0 %v1791
    %1819 = vmatpush.bf16.msra.mxu0 %v1789
    %1820 = vmatpush.bf16.msra.mxu0 %v1787
    %1821 = vmatpush.bf16.msra.mxu0 %v1785
    %1822 = vmatpush.bf16.msra.mxu0 %v1783
    %1823 = vmatpush.bf16.msra.mxu0 %v1781
    %1824 = vmatmul.bf16.gmra.mxu0 %v1808
    %v1825 = vpop.f32.mrf.mxu0
    %v1826 = vadd.f32 0.0, %v1825
    %v1827 = vpop.f32.mrf.mxu0
    %v1828 = vadd.f32 0.0, %v1827
    %1829 = vdwg.mxu0
    %1830 = vmatpush.bf16.msra.mxu0 0
    %1831 = vmatpush.bf16.msra.mxu0 %v1814
    %1832 = vmatpush.bf16.msra.mxu0 %v1792
    %1833 = vmatpush.bf16.msra.mxu0 %v1790
    %1834 = vmatpush.bf16.msra.mxu0 %v1788
    %1835 = vmatpush.bf16.msra.mxu0 %v1786
    %1836 = vmatpush.bf16.msra.mxu0 %v1784
    %1837 = vmatpush.bf16.msra.mxu0 %v1782
    %1838 = vmatmul.bf16.gmra.mxu0 %v1808
    %v1839 = vpop.f32.mrf.mxu0
    %v1840 = vadd.f32 0.0, %v1839
    %v1841 = vpop.f32.mrf.mxu0
    %v1842 = vadd.f32 0.0, %v1841
    %1843 = vdwg.mxu0
    %v1844 = vadd.f32 %v1719, %v1826
    %v1845 = vadd.f32 %v1720, %v1840
    %v1846 = vadd.f32 %v1721, %v1828
    %v1847 = vadd.f32 %v1722, %v1842
    %v1848 = vld [vmem:[%s9] sm:$0xff]
    %v1849 = vld [vmem:[%s9 + $0x8] sm:$0xff]
    %1851 = vset.pattern.permute.xlu0 0
    %1852 = vperm.xlu0 %1851, %v1848
    %v1853 = vpop.permute.xlu0 %1852
    %1856 = vset.pattern.permute.xlu0 0
    %1857 = vperm.xlu0 %1856, %v1849
    %v1858 = vpop.permute.xlu0 %1857
    %v1860 = vadd.f32 %v1844, %v1853
    %v1861 = vadd.f32 %v1845, %v1853
    %v1862 = vadd.f32 %v1846, %v1858
    %v1863 = vadd.f32 %v1847, %v1858
    %v1864 = vmax.f32 %v1860, 0.0
    %v1865 = vmax.f32 %v1861, 0.0
    %v1866 = vmax.f32 %v1862, 0.0
    %v1867 = vmax.f32 %v1863, 0.0
    %v1868 = vpack.c.bf16 %v1866, %v1864
    %v1869 = vpack.c.bf16 %v1867, %v1865
    %v1870 = vld [vmem:[%s11] sm:$0xf]
    %v1871 = vld [vmem:[%s11 + $0x4] sm:$0xf]
    %v1872 = vld [vmem:[%s11 + $0x8] sm:$0xf]
    %v1873 = vld [vmem:[%s11 + $0xc] sm:$0xf]
    %v1874 = vld [vmem:[%s11 + $0x10] sm:$0xf]
    %v1875 = vld [vmem:[%s11 + $0x14] sm:$0xf]
    %v1876 = vld [vmem:[%s11 + $0x18] sm:$0xf]
    %v1877 = vld [vmem:[%s11 + $0x1c] sm:$0xf]
    %v1878 = vld [vmem:[%s11 + $0x20] sm:$0xf]
    %v1879 = vld [vmem:[%s11 + $0x24] sm:$0xf]
    %v1880 = vld [vmem:[%s11 + $0x28] sm:$0xf]
    %v1881 = vld [vmem:[%s11 + $0x2c] sm:$0xf]
    %v1882 = vld [vmem:[%s11 + $0x30] sm:$0xf]
    %v1883 = vld [vmem:[%s11 + $0x34] sm:$0xf]
    %v1884 = vld [vmem:[%s11 + $0x38] sm:$0xf]
    %v1885 = vld [vmem:[%s11 + $0x3c] sm:$0xf]
    %v1886 = vld [vmem:[%s11 + $0x40] sm:$0xf]
    %v1887 = vld [vmem:[%s11 + $0x44] sm:$0xf]
    %v1906 = vunpack.c.l.b16 %v1870
    %v1907 = vunpack.c.l.b16 %v1871
    %v1908 = vunpack.c.l.b16 %v1872
    %v1909 = vunpack.c.l.b16 %v1873
    %v1910 = vunpack.c.l.b16 %v1874
    %v1911 = vunpack.c.l.b16 %v1875
    %v1912 = vunpack.c.l.b16 %v1876
    %v1913 = vunpack.c.l.b16 %v1877
    %v1914 = vunpack.c.l.b16 %v1878
    %v1915 = vunpack.c.l.b16 %v1879
    %v1916 = vunpack.c.l.b16 %v1880
    %v1917 = vunpack.c.l.b16 %v1881
    %v1918 = vunpack.c.l.b16 %v1882
    %v1919 = vunpack.c.l.b16 %v1883
    %v1920 = vunpack.c.l.b16 %v1884
    %v1921 = vunpack.c.l.b16 %v1885
    %v1922 = vunpack.c.l.b16 %v1886
    %v1923 = vunpack.c.l.b16 %v1887
    %v1924 = vpack.c.b16 %v1907, %v1906
    %v1925 = vpack.c.b16 %v1909, %v1908
    %v1926 = vpack.c.b16 %v1911, %v1910
    %v1927 = vpack.c.b16 %v1913, %v1912
    %v1928 = vpack.c.b16 %v1915, %v1914
    %v1929 = vpack.c.b16 %v1917, %v1916
    %v1930 = vpack.c.b16 %v1919, %v1918
    %v1931 = vpack.c.b16 %v1921, %v1920
    %v1932 = vpack.c.b16 %v1923, %v1922
    %vm1933 = vcmask 130048
    %v1935 = vsel %vm1933, %v1924, 0
    %v1938 = vsel %vm1933, %v1925, 0
    %v1941 = vsel %vm1933, %v1926, 0
    %v1944 = vsel %vm1933, %v1927, 0
    %v1947 = vsel %vm1933, %v1928, 0
    %v1950 = vsel %vm1933, %v1929, 0
    %v1953 = vsel %vm1933, %v1930, 0
    %v1956 = vsel %vm1933, %v1931, 0
    %v1959 = vsel %vm1933, %v1932, 0
    %1961 = vmatpush.bf16.msra.mxu0 0
    %1962 = vmatpush.bf16.msra.mxu0 0
    %1963 = vmatpush.bf16.msra.mxu0 0
    %1964 = vmatpush.bf16.msra.mxu0 0
    %1965 = vmatpush.bf16.msra.mxu0 0
    %1966 = vmatpush.bf16.msra.mxu0 0
    %1967 = vmatpush.bf16.msra.mxu0 0
    %1968 = vmatpush.bf16.msra.mxu0 %v1868
    %1969 = vmatmul.bf16.gmra.mxu0 %v1935
    %v1970 = vpop.f32.mrf.mxu0
    %v1971 = vadd.f32 0.0, %v1970
    %v1972 = vpop.f32.mrf.mxu0
    %v1973 = vadd.f32 0.0, %v1972
    %1974 = vmatmul.bf16.gmra.mxu0 %v1938
    %v1975 = vpop.f32.mrf.mxu0
    %v1976 = vadd.f32 0.0, %v1975
    %v1977 = vpop.f32.mrf.mxu0
    %v1978 = vadd.f32 0.0, %v1977
    %1979 = vmatmul.bf16.gmra.mxu0 %v1941
    %v1980 = vpop.f32.mrf.mxu0
    %v1981 = vadd.f32 0.0, %v1980
    %v1982 = vpop.f32.mrf.mxu0
    %v1983 = vadd.f32 0.0, %v1982
    %1984 = vmatmul.bf16.gmra.mxu0 %v1944
    %v1985 = vpop.f32.mrf.mxu0
    %v1986 = vadd.f32 0.0, %v1985
    %v1987 = vpop.f32.mrf.mxu0
    %v1988 = vadd.f32 0.0, %v1987
    %1989 = vmatmul.bf16.gmra.mxu0 %v1947
    %v1990 = vpop.f32.mrf.mxu0
    %v1991 = vadd.f32 0.0, %v1990
    %v1992 = vpop.f32.mrf.mxu0
    %v1993 = vadd.f32 0.0, %v1992
    %1994 = vmatmul.bf16.gmra.mxu0 %v1950
    %v1995 = vpop.f32.mrf.mxu0
    %v1996 = vadd.f32 0.0, %v1995
    %v1997 = vpop.f32.mrf.mxu0
    %v1998 = vadd.f32 0.0, %v1997
    %1999 = vmatmul.bf16.gmra.mxu0 %v1953
    %v2000 = vpop.f32.mrf.mxu0
    %v2001 = vadd.f32 0.0, %v2000
    %v2002 = vpop.f32.mrf.mxu0
    %v2003 = vadd.f32 0.0, %v2002
    %2004 = vmatmul.bf16.gmra.mxu0 %v1956
    %v2005 = vpop.f32.mrf.mxu0
    %v2006 = vadd.f32 0.0, %v2005
    %v2007 = vpop.f32.mrf.mxu0
    %v2008 = vadd.f32 0.0, %v2007
    %2009 = vmatmul.bf16.gmra.mxu0 %v1959
    %v2010 = vpop.f32.mrf.mxu0
    %v2011 = vadd.f32 0.0, %v2010
    %v2012 = vpop.f32.mrf.mxu0
    %v2013 = vadd.f32 0.0, %v2012
    %2014 = vdwg.mxu0
    %2015 = vmatpush.bf16.msra.mxu0 0
    %2016 = vmatpush.bf16.msra.mxu0 0
    %2017 = vmatpush.bf16.msra.mxu0 0
    %2018 = vmatpush.bf16.msra.mxu0 0
    %2019 = vmatpush.bf16.msra.mxu0 0
    %2020 = vmatpush.bf16.msra.mxu0 0
    %2021 = vmatpush.bf16.msra.mxu0 0
    %2022 = vmatpush.bf16.msra.mxu0 %v1869
    %2023 = vmatmul.bf16.gmra.mxu0 %v1935
    %v2024 = vpop.f32.mrf.mxu0
    %v2025 = vadd.f32 0.0, %v2024
    %v2026 = vpop.f32.mrf.mxu0
    %v2027 = vadd.f32 0.0, %v2026
    %2028 = vmatmul.bf16.gmra.mxu0 %v1938
    %v2029 = vpop.f32.mrf.mxu0
    %v2030 = vadd.f32 0.0, %v2029
    %v2031 = vpop.f32.mrf.mxu0
    %v2032 = vadd.f32 0.0, %v2031
    %2033 = vmatmul.bf16.gmra.mxu0 %v1941
    %v2034 = vpop.f32.mrf.mxu0
    %v2035 = vadd.f32 0.0, %v2034
    %v2036 = vpop.f32.mrf.mxu0
    %v2037 = vadd.f32 0.0, %v2036
    %2038 = vmatmul.bf16.gmra.mxu0 %v1944
    %v2039 = vpop.f32.mrf.mxu0
    %v2040 = vadd.f32 0.0, %v2039
    %v2041 = vpop.f32.mrf.mxu0
    %v2042 = vadd.f32 0.0, %v2041
    %2043 = vmatmul.bf16.gmra.mxu0 %v1947
    %v2044 = vpop.f32.mrf.mxu0
    %v2045 = vadd.f32 0.0, %v2044
    %v2046 = vpop.f32.mrf.mxu0
    %v2047 = vadd.f32 0.0, %v2046
    %2048 = vmatmul.bf16.gmra.mxu0 %v1950
    %v2049 = vpop.f32.mrf.mxu0
    %v2050 = vadd.f32 0.0, %v2049
    %v2051 = vpop.f32.mrf.mxu0
    %v2052 = vadd.f32 0.0, %v2051
    %2053 = vmatmul.bf16.gmra.mxu0 %v1953
    %v2054 = vpop.f32.mrf.mxu0
    %v2055 = vadd.f32 0.0, %v2054
    %v2056 = vpop.f32.mrf.mxu0
    %v2057 = vadd.f32 0.0, %v2056
    %2058 = vmatmul.bf16.gmra.mxu0 %v1956
    %v2059 = vpop.f32.mrf.mxu0
    %v2060 = vadd.f32 0.0, %v2059
    %v2061 = vpop.f32.mrf.mxu0
    %v2062 = vadd.f32 0.0, %v2061
    %2063 = vmatmul.bf16.gmra.mxu0 %v1959
    %v2064 = vpop.f32.mrf.mxu0
    %v2065 = vadd.f32 0.0, %v2064
    %v2066 = vpop.f32.mrf.mxu0
    %v2067 = vadd.f32 0.0, %v2066
    %2068 = vdwg.mxu0
    %v2069 = vpack.c.bf16 %v2025, %v1971
    %v2070 = vpack.c.bf16 %v2027, %v1973
    %v2071 = vpack.c.bf16 %v2030, %v1976
    %v2072 = vpack.c.bf16 %v2032, %v1978
    %v2073 = vpack.c.bf16 %v2035, %v1981
    %v2074 = vpack.c.bf16 %v2037, %v1983
    %v2075 = vpack.c.bf16 %v2040, %v1986
    %v2076 = vpack.c.bf16 %v2042, %v1988
    %v2077 = vpack.c.bf16 %v2045, %v1991
    %v2078 = vpack.c.bf16 %v2047, %v1993
    %v2079 = vpack.c.bf16 %v2050, %v1996
    %v2080 = vpack.c.bf16 %v2052, %v1998
    %v2081 = vpack.c.bf16 %v2055, %v2001
    %v2082 = vpack.c.bf16 %v2057, %v2003
    %v2083 = vpack.c.bf16 %v2060, %v2006
    %v2084 = vpack.c.bf16 %v2062, %v2008
    %v2085 = vpack.c.bf16 %v2065, %v2011
    %v2086 = vpack.c.bf16 %v2067, %v2013
    %v2087 = vld [vmem:[%s10] sm:$0xff]
    %v2088 = vld [vmem:[%s10 + $0x8] sm:$0xff]
    %v2089 = vld [vmem:[%s10 + $0x10] sm:$0xff]
    %v2090 = vld [vmem:[%s10 + $0x18] sm:$0xff]
    %v2091 = vld [vmem:[%s10 + $0x20] sm:$0xff]
    %v2092 = vld [vmem:[%s10 + $0x28] sm:$0xff]
    %v2093 = vld [vmem:[%s10 + $0x30] sm:$0xff]
    %v2094 = vld [vmem:[%s10 + $0x38] sm:$0xff]
    %v2095 = vld [vmem:[%s10 + $0x40] sm:$0xff]
    %v2096 = vld [vmem:[%s10 + $0x48] sm:$0xff]
    %v2097 = vld [vmem:[%s10 + $0x50] sm:$0xff]
    %v2098 = vld [vmem:[%s10 + $0x58] sm:$0xff]
    %v2099 = vld [vmem:[%s10 + $0x60] sm:$0xff]
    %v2100 = vld [vmem:[%s10 + $0x68] sm:$0xff]
    %v2101 = vld [vmem:[%s10 + $0x70] sm:$0xff]
    %v2102 = vld [vmem:[%s10 + $0x78] sm:$0xff]
    %v2103 = vld [vmem:[%s10 + $0x80] sm:$0xff]
    %v2104 = vld [vmem:[%s10 + $0x88] sm:$0xff]
    %v2105 = vld [vmem:[%s10 + $0x90] sm:$0xff]
    %v2106 = vld [vmem:[%s10 + $0x98] sm:$0xff]
    %v2107 = vld [vmem:[%s10 + $0xa0] sm:$0xff]
    %v2108 = vld [vmem:[%s10 + $0xa8] sm:$0xff]
    %v2109 = vld [vmem:[%s10 + $0xb0] sm:$0xff]
    %v2110 = vld [vmem:[%s10 + $0xb8] sm:$0xff]
    %v2111 = vld [vmem:[%s10 + $0xc0] sm:$0xff]
    %v2112 = vld [vmem:[%s10 + $0xc8] sm:$0xff]
    %v2113 = vld [vmem:[%s10 + $0xd0] sm:$0xff]
    %v2114 = vld [vmem:[%s10 + $0xd8] sm:$0xff]
    %v2115 = vld [vmem:[%s10 + $0xe0] sm:$0xff]
    %v2116 = vld [vmem:[%s10 + $0xe8] sm:$0xff]
    %v2117 = vld [vmem:[%s10 + $0xf0] sm:$0xff]
    %v2118 = vld [vmem:[%s10 + $0xf8] sm:$0xff]
    %v2119 = vld [vmem:[%s10 + $0x100] sm:$0xff]
    %v2120 = vld [vmem:[%s10 + $0x108] sm:$0xff]
    %v2121 = vld [vmem:[%s10 + $0x110] sm:$0xff]
    %v2122 = vld [vmem:[%s10 + $0x118] sm:$0xff]
    %v2123 = vld [vmem:[%s10 + $0x120] sm:$0xff]
    %v2124 = vld [vmem:[%s10 + $0x128] sm:$0xff]
    %v2125 = vld [vmem:[%s10 + $0x130] sm:$0xff]
    %v2126 = vld [vmem:[%s10 + $0x138] sm:$0xff]
    %v2127 = vld [vmem:[%s10 + $0x140] sm:$0xff]
    %v2128 = vld [vmem:[%s10 + $0x148] sm:$0xff]
    %v2129 = vld [vmem:[%s10 + $0x150] sm:$0xff]
    %v2130 = vld [vmem:[%s10 + $0x158] sm:$0xff]
    %v2131 = vld [vmem:[%s10 + $0x160] sm:$0xff]
    %v2132 = vld [vmem:[%s10 + $0x168] sm:$0xff]
    %v2133 = vld [vmem:[%s10 + $0x170] sm:$0xff]
    %v2134 = vld [vmem:[%s10 + $0x178] sm:$0xff]
    %v2135 = vld [vmem:[%s10 + $0x180] sm:$0x77]
    %v2136 = vld [vmem:[%s10 + $0x188] sm:$0x77]
    %s2137 = scalar_lea.vmem %s10, 400
    %v2138 = vld [vmem:[%s2137] sm:$0xff]
    %v2139 = vld [vmem:[%s2137 + $0x8] sm:$0xff]
    %v2140 = vld [vmem:[%s2137 + $0x10] sm:$0xff]
    %v2141 = vld [vmem:[%s2137 + $0x18] sm:$0xff]
    %v2142 = vld [vmem:[%s2137 + $0x20] sm:$0xff]
    %v2143 = vld [vmem:[%s2137 + $0x28] sm:$0xff]
    %v2144 = vld [vmem:[%s2137 + $0x30] sm:$0xff]
    %v2145 = vld [vmem:[%s2137 + $0x38] sm:$0xff]
    %v2146 = vld [vmem:[%s2137 + $0x40] sm:$0xff]
    %v2147 = vld [vmem:[%s2137 + $0x48] sm:$0xff]
    %v2148 = vld [vmem:[%s2137 + $0x50] sm:$0xff]
    %v2149 = vld [vmem:[%s2137 + $0x58] sm:$0xff]
    %v2150 = vld [vmem:[%s2137 + $0x60] sm:$0xff]
    %v2151 = vld [vmem:[%s2137 + $0x68] sm:$0xff]
    %v2152 = vld [vmem:[%s2137 + $0x70] sm:$0xff]
    %v2153 = vld [vmem:[%s2137 + $0x78] sm:$0xff]
    %v2154 = vld [vmem:[%s2137 + $0x80] sm:$0xff]
    %v2155 = vld [vmem:[%s2137 + $0x88] sm:$0xff]
    %v2156 = vld [vmem:[%s2137 + $0x90] sm:$0xff]
    %v2157 = vld [vmem:[%s2137 + $0x98] sm:$0xff]
    %v2158 = vld [vmem:[%s2137 + $0xa0] sm:$0xff]
    %v2159 = vld [vmem:[%s2137 + $0xa8] sm:$0xff]
    %v2160 = vld [vmem:[%s2137 + $0xb0] sm:$0xff]
    %v2161 = vld [vmem:[%s2137 + $0xb8] sm:$0xff]
    %v2162 = vld [vmem:[%s2137 + $0xc0] sm:$0xff]
    %v2163 = vld [vmem:[%s2137 + $0xc8] sm:$0xff]
    %v2164 = vld [vmem:[%s2137 + $0xd0] sm:$0xff]
    %v2165 = vld [vmem:[%s2137 + $0xd8] sm:$0xff]
    %v2166 = vld [vmem:[%s2137 + $0xe0] sm:$0xff]
    %v2167 = vld [vmem:[%s2137 + $0xe8] sm:$0xff]
    %v2168 = vld [vmem:[%s2137 + $0xf0] sm:$0xff]
    %v2169 = vld [vmem:[%s2137 + $0xf8] sm:$0xff]
    %v2170 = vld [vmem:[%s2137 + $0x100] sm:$0xff]
    %v2171 = vld [vmem:[%s2137 + $0x108] sm:$0xff]
    %v2172 = vld [vmem:[%s2137 + $0x110] sm:$0xff]
    %v2173 = vld [vmem:[%s2137 + $0x118] sm:$0xff]
    %v2174 = vld [vmem:[%s2137 + $0x120] sm:$0xff]
    %v2175 = vld [vmem:[%s2137 + $0x128] sm:$0xff]
    %v2176 = vld [vmem:[%s2137 + $0x130] sm:$0xff]
    %v2177 = vld [vmem:[%s2137 + $0x138] sm:$0xff]
    %v2178 = vld [vmem:[%s2137 + $0x140] sm:$0xff]
    %v2179 = vld [vmem:[%s2137 + $0x148] sm:$0xff]
    %v2180 = vld [vmem:[%s2137 + $0x150] sm:$0xff]
    %v2181 = vld [vmem:[%s2137 + $0x158] sm:$0xff]
    %v2182 = vld [vmem:[%s2137 + $0x160] sm:$0xff]
    %v2183 = vld [vmem:[%s2137 + $0x168] sm:$0xff]
    %v2184 = vld [vmem:[%s2137 + $0x170] sm:$0xff]
    %v2185 = vld [vmem:[%s2137 + $0x178] sm:$0xff]
    %v2186 = vld [vmem:[%s2137 + $0x180] sm:$0x77]
    %v2187 = vld [vmem:[%s2137 + $0x188] sm:$0x77]
    %v2194 = vunpack.c.l.b16 %v2075
    %v2195 = vunpack.c.h.b16 %v2075
    %v2196 = vunpack.c.l.b16 %v2076
    %v2197 = vunpack.c.h.b16 %v2076
    %v2198 = vunpack.c.l.b16 %v2077
    %v2199 = vunpack.c.h.b16 %v2077
    %v2200 = vunpack.c.l.b16 %v2078
    %v2201 = vunpack.c.h.b16 %v2078
    %v2202 = vunpack.c.l.b16 %v2079
    %v2203 = vunpack.c.h.b16 %v2079
    %v2204 = vunpack.c.l.b16 %v2080
    %v2205 = vunpack.c.h.b16 %v2080
    %v2206 = vpack.c.b16 %v2196, %v2194
    %v2207 = vpack.c.b16 %v2197, %v2195
    %v2208 = vpack.c.b16 %v2200, %v2198
    %v2209 = vpack.c.b16 %v2201, %v2199
    %v2210 = vpack.c.b16 %v2204, %v2202
    %v2211 = vpack.c.b16 %v2205, %v2203
    %v2265 = vunpack.c.l.b16 %v2138
    %v2266 = vunpack.c.h.b16 %v2138
    %v2267 = vunpack.c.l.b16 %v2139
    %v2268 = vunpack.c.h.b16 %v2139
    %v2269 = vunpack.c.l.b16 %v2140
    %v2270 = vunpack.c.h.b16 %v2140
    %v2271 = vunpack.c.l.b16 %v2141
    %v2272 = vunpack.c.h.b16 %v2141
    %v2273 = vunpack.c.l.b16 %v2142
    %v2274 = vunpack.c.h.b16 %v2142
    %v2275 = vunpack.c.l.b16 %v2143
    %v2276 = vunpack.c.h.b16 %v2143
    %v2277 = vunpack.c.l.b16 %v2144
    %v2278 = vunpack.c.h.b16 %v2144
    %v2279 = vunpack.c.l.b16 %v2145
    %v2280 = vunpack.c.h.b16 %v2145
    %v2281 = vunpack.c.l.b16 %v2146
    %v2282 = vunpack.c.h.b16 %v2146
    %v2283 = vunpack.c.l.b16 %v2147
    %v2284 = vunpack.c.h.b16 %v2147
    %v2285 = vunpack.c.l.b16 %v2148
    %v2286 = vunpack.c.h.b16 %v2148
    %v2287 = vunpack.c.l.b16 %v2149
    %v2288 = vunpack.c.h.b16 %v2149
    %v2289 = vunpack.c.l.b16 %v2150
    %v2290 = vunpack.c.h.b16 %v2150
    %v2291 = vunpack.c.l.b16 %v2151
    %v2292 = vunpack.c.h.b16 %v2151
    %v2293 = vunpack.c.l.b16 %v2152
    %v2294 = vunpack.c.h.b16 %v2152
    %v2295 = vunpack.c.l.b16 %v2153
    %v2296 = vunpack.c.h.b16 %v2153
    %v2297 = vunpack.c.l.b16 %v2154
    %v2298 = vunpack.c.h.b16 %v2154
    %v2299 = vunpack.c.l.b16 %v2155
    %v2300 = vunpack.c.h.b16 %v2155
    %v2301 = vunpack.c.l.b16 %v2156
    %v2302 = vunpack.c.h.b16 %v2156
    %v2303 = vunpack.c.l.b16 %v2157
    %v2304 = vunpack.c.h.b16 %v2157
    %v2305 = vunpack.c.l.b16 %v2158
    %v2306 = vunpack.c.h.b16 %v2158
    %v2307 = vunpack.c.l.b16 %v2159
    %v2308 = vunpack.c.h.b16 %v2159
    %v2309 = vunpack.c.l.b16 %v2160
    %v2310 = vunpack.c.h.b16 %v2160
    %v2311 = vunpack.c.l.b16 %v2161
    %v2312 = vunpack.c.h.b16 %v2161
    %v2313 = vunpack.c.l.b16 %v2162
    %v2314 = vunpack.c.h.b16 %v2162
    %v2315 = vunpack.c.l.b16 %v2163
    %v2316 = vunpack.c.h.b16 %v2163
    %v2317 = vunpack.c.l.b16 %v2164
    %v2318 = vunpack.c.h.b16 %v2164
    %v2319 = vunpack.c.l.b16 %v2165
    %v2320 = vunpack.c.h.b16 %v2165
    %v2321 = vunpack.c.l.b16 %v2166
    %v2322 = vunpack.c.h.b16 %v2166
    %v2323 = vunpack.c.l.b16 %v2167
    %v2324 = vunpack.c.h.b16 %v2167
    %v2325 = vunpack.c.l.b16 %v2168
    %v2326 = vunpack.c.h.b16 %v2168
    %v2327 = vunpack.c.l.b16 %v2169
    %v2328 = vunpack.c.h.b16 %v2169
    %v2329 = vunpack.c.l.b16 %v2170
    %v2330 = vunpack.c.h.b16 %v2170
    %v2331 = vunpack.c.l.b16 %v2171
    %v2332 = vunpack.c.h.b16 %v2171
    %v2333 = vunpack.c.l.b16 %v2172
    %v2334 = vunpack.c.h.b16 %v2172
    %v2335 = vunpack.c.l.b16 %v2173
    %v2336 = vunpack.c.h.b16 %v2173
    %v2337 = vunpack.c.l.b16 %v2174
    %v2338 = vunpack.c.h.b16 %v2174
    %v2339 = vunpack.c.l.b16 %v2175
    %v2340 = vunpack.c.h.b16 %v2175
    %v2341 = vunpack.c.l.b16 %v2176
    %v2342 = vunpack.c.h.b16 %v2176
    %v2343 = vunpack.c.l.b16 %v2177
    %v2344 = vunpack.c.h.b16 %v2177
    %v2345 = vunpack.c.l.b16 %v2178
    %v2346 = vunpack.c.h.b16 %v2178
    %v2347 = vunpack.c.l.b16 %v2179
    %v2348 = vunpack.c.h.b16 %v2179
    %v2349 = vunpack.c.l.b16 %v2180
    %v2350 = vunpack.c.h.b16 %v2180
    %v2351 = vunpack.c.l.b16 %v2181
    %v2352 = vunpack.c.h.b16 %v2181
    %v2353 = vunpack.c.l.b16 %v2182
    %v2354 = vunpack.c.h.b16 %v2182
    %v2355 = vunpack.c.l.b16 %v2183
    %v2356 = vunpack.c.h.b16 %v2183
    %v2357 = vunpack.c.l.b16 %v2184
    %v2358 = vunpack.c.h.b16 %v2184
    %v2359 = vunpack.c.l.b16 %v2185
    %v2360 = vunpack.c.h.b16 %v2185
    %v2361 = vunpack.c.l.b16 %v2186
    %v2362 = vunpack.c.h.b16 %v2186
    %v2363 = vunpack.c.l.b16 %v2187
    %v2364 = vunpack.c.h.b16 %v2187
    %v2365 = vpack.c.b16 %v2269, %v2265
    %v2366 = vpack.c.b16 %v2270, %v2266
    %v2367 = vpack.c.b16 %v2271, %v2267
    %v2368 = vpack.c.b16 %v2272, %v2268
    %v2369 = vpack.c.b16 %v2277, %v2273
    %v2370 = vpack.c.b16 %v2278, %v2274
    %v2371 = vpack.c.b16 %v2279, %v2275
    %v2372 = vpack.c.b16 %v2280, %v2276
    %v2373 = vpack.c.b16 %v2285, %v2281
    %v2374 = vpack.c.b16 %v2286, %v2282
    %v2375 = vpack.c.b16 %v2287, %v2283
    %v2376 = vpack.c.b16 %v2288, %v2284
    %v2377 = vpack.c.b16 %v2293, %v2289
    %v2378 = vpack.c.b16 %v2294, %v2290
    %v2379 = vpack.c.b16 %v2295, %v2291
    %v2380 = vpack.c.b16 %v2296, %v2292
    %v2381 = vpack.c.b16 %v2301, %v2297
    %v2382 = vpack.c.b16 %v2302, %v2298
    %v2383 = vpack.c.b16 %v2303, %v2299
    %v2384 = vpack.c.b16 %v2304, %v2300
    %v2385 = vpack.c.b16 %v2309, %v2305
    %v2386 = vpack.c.b16 %v2310, %v2306
    %v2387 = vpack.c.b16 %v2311, %v2307
    %v2388 = vpack.c.b16 %v2312, %v2308
    %v2389 = vpack.c.b16 %v2317, %v2313
    %v2390 = vpack.c.b16 %v2318, %v2314
    %v2391 = vpack.c.b16 %v2319, %v2315
    %v2392 = vpack.c.b16 %v2320, %v2316
    %v2393 = vpack.c.b16 %v2325, %v2321
    %v2394 = vpack.c.b16 %v2326, %v2322
    %v2395 = vpack.c.b16 %v2327, %v2323
    %v2396 = vpack.c.b16 %v2328, %v2324
    %v2397 = vpack.c.b16 %v2333, %v2329
    %v2398 = vpack.c.b16 %v2334, %v2330
    %v2399 = vpack.c.b16 %v2335, %v2331
    %v2400 = vpack.c.b16 %v2336, %v2332
    %v2401 = vpack.c.b16 %v2341, %v2337
    %v2402 = vpack.c.b16 %v2342, %v2338
    %v2403 = vpack.c.b16 %v2343, %v2339
    %v2404 = vpack.c.b16 %v2344, %v2340
    %v2405 = vpack.c.b16 %v2349, %v2345
    %v2406 = vpack.c.b16 %v2350, %v2346
    %v2407 = vpack.c.b16 %v2351, %v2347
    %v2408 = vpack.c.b16 %v2352, %v2348
    %v2409 = vpack.c.b16 %v2357, %v2353
    %v2410 = vpack.c.b16 %v2358, %v2354
    %v2411 = vpack.c.b16 %v2359, %v2355
    %v2412 = vpack.c.b16 %v2360, %v2356
    %v2413 = vpack.c.b16 %v2361, %v2361
    %v2414 = vpack.c.b16 %v2362, %v2362
    %v2415 = vpack.c.b16 %v2363, %v2363
    %v2416 = vpack.c.b16 %v2364, %v2364
    %vm2465 = vcmask 572416
    %v2467 = vsel %vm2465, %v2207, 0
    %v2470 = vsel %vm2465, %v2209, 0
    %v2473 = vsel %vm2465, %v2211, 0
    %vm2475 = vcmask 1042432
    %v2477 = vsel %vm2475, %v2413, 0
    %v2480 = vsel %vm2475, %v2414, 0
    %v2483 = vsel %vm2475, %v2415, 0
    %v2486 = vsel %vm2475, %v2416, 0
    %2488 = vmatpush.bf16.msra.mxu0 %v2393
    %2489 = vmatpush.bf16.msra.mxu0 %v2389
    %2490 = vmatpush.bf16.msra.mxu0 %v2385
    %2491 = vmatpush.bf16.msra.mxu0 %v2381
    %2492 = vmatpush.bf16.msra.mxu0 %v2377
    %2493 = vmatpush.bf16.msra.mxu0 %v2373
    %2494 = vmatpush.bf16.msra.mxu0 %v2369
    %2495 = vmatpush.bf16.msra.mxu0 %v2365
    %2496 = vmatmul.bf16.gmra.mxu0 %v2206
    %v2497 = vpop.f32.mrf.mxu0
    %v2498 = vadd.f32 0.0, %v2497
    %v2499 = vpop.f32.mrf.mxu0
    %v2500 = vadd.f32 0.0, %v2499
    %2501 = vmatmul.bf16.gmra.mxu0 %v2208
    %v2502 = vpop.f32.mrf.mxu0
    %v2503 = vadd.f32 0.0, %v2502
    %v2504 = vpop.f32.mrf.mxu0
    %v2505 = vadd.f32 0.0, %v2504
    %2506 = vmatmul.bf16.gmra.mxu0 %v2210
    %v2507 = vpop.f32.mrf.mxu0
    %v2508 = vadd.f32 0.0, %v2507
    %v2509 = vpop.f32.mrf.mxu0
    %v2510 = vadd.f32 0.0, %v2509
    %2511 = vdwg.mxu0
    %2512 = vmatpush.bf16.msra.mxu0 0
    %2513 = vmatpush.bf16.msra.mxu0 0
    %2514 = vmatpush.bf16.msra.mxu0 0
    %2515 = vmatpush.bf16.msra.mxu0 %v2477
    %2516 = vmatpush.bf16.msra.mxu0 %v2409
    %2517 = vmatpush.bf16.msra.mxu0 %v2405
    %2518 = vmatpush.bf16.msra.mxu0 %v2401
    %2519 = vmatpush.bf16.msra.mxu0 %v2397
    %2520 = vmatmul.bf16.gmra.mxu0 %v2467
    %v2521 = vpop.f32.mrf.mxu0
    %v2522 = vadd.f32 %v2498, %v2521
    %v2523 = vpop.f32.mrf.mxu0
    %v2524 = vadd.f32 %v2500, %v2523
    %2525 = vmatmul.bf16.gmra.mxu0 %v2470
    %v2526 = vpop.f32.mrf.mxu0
    %v2527 = vadd.f32 %v2503, %v2526
    %v2528 = vpop.f32.mrf.mxu0
    %v2529 = vadd.f32 %v2505, %v2528
    %2530 = vmatmul.bf16.gmra.mxu0 %v2473
    %v2531 = vpop.f32.mrf.mxu0
    %v2532 = vadd.f32 %v2508, %v2531
    %v2533 = vpop.f32.mrf.mxu0
    %v2534 = vadd.f32 %v2510, %v2533
    %2535 = vdwg.mxu0
    %2536 = vmatpush.bf16.msra.mxu0 %v2394
    %2537 = vmatpush.bf16.msra.mxu0 %v2390
    %2538 = vmatpush.bf16.msra.mxu0 %v2386
    %2539 = vmatpush.bf16.msra.mxu0 %v2382
    %2540 = vmatpush.bf16.msra.mxu0 %v2378
    %2541 = vmatpush.bf16.msra.mxu0 %v2374
    %2542 = vmatpush.bf16.msra.mxu0 %v2370
    %2543 = vmatpush.bf16.msra.mxu0 %v2366
    %2544 = vmatmul.bf16.gmra.mxu0 %v2206
    %v2545 = vpop.f32.mrf.mxu0
    %v2546 = vadd.f32 0.0, %v2545
    %v2547 = vpop.f32.mrf.mxu0
    %v2548 = vadd.f32 0.0, %v2547
    %2549 = vmatmul.bf16.gmra.mxu0 %v2208
    %v2550 = vpop.f32.mrf.mxu0
    %v2551 = vadd.f32 0.0, %v2550
    %v2552 = vpop.f32.mrf.mxu0
    %v2553 = vadd.f32 0.0, %v2552
    %2554 = vmatmul.bf16.gmra.mxu0 %v2210
    %v2555 = vpop.f32.mrf.mxu0
    %v2556 = vadd.f32 0.0, %v2555
    %v2557 = vpop.f32.mrf.mxu0
    %v2558 = vadd.f32 0.0, %v2557
    %2559 = vdwg.mxu0
    %2560 = vmatpush.bf16.msra.mxu0 0
    %2561 = vmatpush.bf16.msra.mxu0 0
    %2562 = vmatpush.bf16.msra.mxu0 0
    %2563 = vmatpush.bf16.msra.mxu0 %v2480
    %2564 = vmatpush.bf16.msra.mxu0 %v2410
    %2565 = vmatpush.bf16.msra.mxu0 %v2406
    %2566 = vmatpush.bf16.msra.mxu0 %v2402
    %2567 = vmatpush.bf16.msra.mxu0 %v2398
    %2568 = vmatmul.bf16.gmra.mxu0 %v2467
    %v2569 = vpop.f32.mrf.mxu0
    %v2570 = vadd.f32 %v2546, %v2569
    %v2571 = vpop.f32.mrf.mxu0
    %v2572 = vadd.f32 %v2548, %v2571
    %2573 = vmatmul.bf16.gmra.mxu0 %v2470
    %v2574 = vpop.f32.mrf.mxu0
    %v2575 = vadd.f32 %v2551, %v2574
    %v2576 = vpop.f32.mrf.mxu0
    %v2577 = vadd.f32 %v2553, %v2576
    %2578 = vmatmul.bf16.gmra.mxu0 %v2473
    %v2579 = vpop.f32.mrf.mxu0
    %v2580 = vadd.f32 %v2556, %v2579
    %v2581 = vpop.f32.mrf.mxu0
    %v2582 = vadd.f32 %v2558, %v2581
    %2583 = vdwg.mxu0
    %2584 = vmatpush.bf16.msra.mxu0 %v2395
    %2585 = vmatpush.bf16.msra.mxu0 %v2391
    %2586 = vmatpush.bf16.msra.mxu0 %v2387
    %2587 = vmatpush.bf16.msra.mxu0 %v2383
    %2588 = vmatpush.bf16.msra.mxu0 %v2379
    %2589 = vmatpush.bf16.msra.mxu0 %v2375
    %2590 = vmatpush.bf16.msra.mxu0 %v2371
    %2591 = vmatpush.bf16.msra.mxu0 %v2367
    %2592 = vmatmul.bf16.gmra.mxu0 %v2206
    %v2593 = vpop.f32.mrf.mxu0
    %v2594 = vadd.f32 0.0, %v2593
    %v2595 = vpop.f32.mrf.mxu0
    %v2596 = vadd.f32 0.0, %v2595
    %2597 = vmatmul.bf16.gmra.mxu0 %v2208
    %v2598 = vpop.f32.mrf.mxu0
    %v2599 = vadd.f32 0.0, %v2598
    %v2600 = vpop.f32.mrf.mxu0
    %v2601 = vadd.f32 0.0, %v2600
    %2602 = vmatmul.bf16.gmra.mxu0 %v2210
    %v2603 = vpop.f32.mrf.mxu0
    %v2604 = vadd.f32 0.0, %v2603
    %v2605 = vpop.f32.mrf.mxu0
    %v2606 = vadd.f32 0.0, %v2605
    %2607 = vdwg.mxu0
    %2608 = vmatpush.bf16.msra.mxu0 0
    %2609 = vmatpush.bf16.msra.mxu0 0
    %2610 = vmatpush.bf16.msra.mxu0 0
    %2611 = vmatpush.bf16.msra.mxu0 %v2483
    %2612 = vmatpush.bf16.msra.mxu0 %v2411
    %2613 = vmatpush.bf16.msra.mxu0 %v2407
    %2614 = vmatpush.bf16.msra.mxu0 %v2403
    %2615 = vmatpush.bf16.msra.mxu0 %v2399
    %2616 = vmatmul.bf16.gmra.mxu0 %v2467
    %v2617 = vpop.f32.mrf.mxu0
    %v2618 = vadd.f32 %v2594, %v2617
    %v2619 = vpop.f32.mrf.mxu0
    %v2620 = vadd.f32 %v2596, %v2619
    %2621 = vmatmul.bf16.gmra.mxu0 %v2470
    %v2622 = vpop.f32.mrf.mxu0
    %v2623 = vadd.f32 %v2599, %v2622
    %v2624 = vpop.f32.mrf.mxu0
    %v2625 = vadd.f32 %v2601, %v2624
    %2626 = vmatmul.bf16.gmra.mxu0 %v2473
    %v2627 = vpop.f32.mrf.mxu0
    %v2628 = vadd.f32 %v2604, %v2627
    %v2629 = vpop.f32.mrf.mxu0
    %v2630 = vadd.f32 %v2606, %v2629
    %2631 = vdwg.mxu0
    %2632 = vmatpush.bf16.msra.mxu0 %v2396
    %2633 = vmatpush.bf16.msra.mxu0 %v2392
    %2634 = vmatpush.bf16.msra.mxu0 %v2388
    %2635 = vmatpush.bf16.msra.mxu0 %v2384
    %2636 = vmatpush.bf16.msra.mxu0 %v2380
    %2637 = vmatpush.bf16.msra.mxu0 %v2376
    %2638 = vmatpush.bf16.msra.mxu0 %v2372
    %2639 = vmatpush.bf16.msra.mxu0 %v2368
    %2640 = vmatmul.bf16.gmra.mxu0 %v2206
    %v2641 = vpop.f32.mrf.mxu0
    %v2642 = vadd.f32 0.0, %v2641
    %v2643 = vpop.f32.mrf.mxu0
    %v2644 = vadd.f32 0.0, %v2643
    %2645 = vmatmul.bf16.gmra.mxu0 %v2208
    %v2646 = vpop.f32.mrf.mxu0
    %v2647 = vadd.f32 0.0, %v2646
    %v2648 = vpop.f32.mrf.mxu0
    %v2649 = vadd.f32 0.0, %v2648
    %2650 = vmatmul.bf16.gmra.mxu0 %v2210
    %v2651 = vpop.f32.mrf.mxu0
    %v2652 = vadd.f32 0.0, %v2651
    %v2653 = vpop.f32.mrf.mxu0
    %v2654 = vadd.f32 0.0, %v2653
    %2655 = vdwg.mxu0
    %2656 = vmatpush.bf16.msra.mxu0 0
    %2657 = vmatpush.bf16.msra.mxu0 0
    %2658 = vmatpush.bf16.msra.mxu0 0
    %2659 = vmatpush.bf16.msra.mxu0 %v2486
    %2660 = vmatpush.bf16.msra.mxu0 %v2412
    %2661 = vmatpush.bf16.msra.mxu0 %v2408
    %2662 = vmatpush.bf16.msra.mxu0 %v2404
    %2663 = vmatpush.bf16.msra.mxu0 %v2400
    %2664 = vmatmul.bf16.gmra.mxu0 %v2467
    %v2665 = vpop.f32.mrf.mxu0
    %v2666 = vadd.f32 %v2642, %v2665
    %v2667 = vpop.f32.mrf.mxu0
    %v2668 = vadd.f32 %v2644, %v2667
    %2669 = vmatmul.bf16.gmra.mxu0 %v2470
    %v2670 = vpop.f32.mrf.mxu0
    %v2671 = vadd.f32 %v2647, %v2670
    %v2672 = vpop.f32.mrf.mxu0
    %v2673 = vadd.f32 %v2649, %v2672
    %2674 = vmatmul.bf16.gmra.mxu0 %v2473
    %v2675 = vpop.f32.mrf.mxu0
    %v2676 = vadd.f32 %v2652, %v2675
    %v2677 = vpop.f32.mrf.mxu0
    %v2678 = vadd.f32 %v2654, %v2677
    %2679 = vdwg.mxu0
    %v2686 = vunpack.c.l.b16 %v2069
    %v2687 = vunpack.c.h.b16 %v2069
    %v2688 = vunpack.c.l.b16 %v2070
    %v2689 = vunpack.c.h.b16 %v2070
    %v2690 = vunpack.c.l.b16 %v2071
    %v2691 = vunpack.c.h.b16 %v2071
    %v2692 = vunpack.c.l.b16 %v2072
    %v2693 = vunpack.c.h.b16 %v2072
    %v2694 = vunpack.c.l.b16 %v2073
    %v2695 = vunpack.c.h.b16 %v2073
    %v2696 = vunpack.c.l.b16 %v2074
    %v2697 = vunpack.c.h.b16 %v2074
    %v2698 = vpack.c.b16 %v2688, %v2686
    %v2699 = vpack.c.b16 %v2689, %v2687
    %v2700 = vpack.c.b16 %v2692, %v2690
    %v2701 = vpack.c.b16 %v2693, %v2691
    %v2702 = vpack.c.b16 %v2696, %v2694
    %v2703 = vpack.c.b16 %v2697, %v2695
    %v2757 = vunpack.c.l.b16 %v2087
    %v2758 = vunpack.c.h.b16 %v2087
    %v2759 = vunpack.c.l.b16 %v2088
    %v2760 = vunpack.c.h.b16 %v2088
    %v2761 = vunpack.c.l.b16 %v2089
    %v2762 = vunpack.c.h.b16 %v2089
    %v2763 = vunpack.c.l.b16 %v2090
    %v2764 = vunpack.c.h.b16 %v2090
    %v2765 = vunpack.c.l.b16 %v2091
    %v2766 = vunpack.c.h.b16 %v2091
    %v2767 = vunpack.c.l.b16 %v2092
    %v2768 = vunpack.c.h.b16 %v2092
    %v2769 = vunpack.c.l.b16 %v2093
    %v2770 = vunpack.c.h.b16 %v2093
    %v2771 = vunpack.c.l.b16 %v2094
    %v2772 = vunpack.c.h.b16 %v2094
    %v2773 = vunpack.c.l.b16 %v2095
    %v2774 = vunpack.c.h.b16 %v2095
    %v2775 = vunpack.c.l.b16 %v2096
    %v2776 = vunpack.c.h.b16 %v2096
    %v2777 = vunpack.c.l.b16 %v2097
    %v2778 = vunpack.c.h.b16 %v2097
    %v2779 = vunpack.c.l.b16 %v2098
    %v2780 = vunpack.c.h.b16 %v2098
    %v2781 = vunpack.c.l.b16 %v2099
    %v2782 = vunpack.c.h.b16 %v2099
    %v2783 = vunpack.c.l.b16 %v2100
    %v2784 = vunpack.c.h.b16 %v2100
    %v2785 = vunpack.c.l.b16 %v2101
    %v2786 = vunpack.c.h.b16 %v2101
    %v2787 = vunpack.c.l.b16 %v2102
    %v2788 = vunpack.c.h.b16 %v2102
    %v2789 = vunpack.c.l.b16 %v2103
    %v2790 = vunpack.c.h.b16 %v2103
    %v2791 = vunpack.c.l.b16 %v2104
    %v2792 = vunpack.c.h.b16 %v2104
    %v2793 = vunpack.c.l.b16 %v2105
    %v2794 = vunpack.c.h.b16 %v2105
    %v2795 = vunpack.c.l.b16 %v2106
    %v2796 = vunpack.c.h.b16 %v2106
    %v2797 = vunpack.c.l.b16 %v2107
    %v2798 = vunpack.c.h.b16 %v2107
    %v2799 = vunpack.c.l.b16 %v2108
    %v2800 = vunpack.c.h.b16 %v2108
    %v2801 = vunpack.c.l.b16 %v2109
    %v2802 = vunpack.c.h.b16 %v2109
    %v2803 = vunpack.c.l.b16 %v2110
    %v2804 = vunpack.c.h.b16 %v2110
    %v2805 = vunpack.c.l.b16 %v2111
    %v2806 = vunpack.c.h.b16 %v2111
    %v2807 = vunpack.c.l.b16 %v2112
    %v2808 = vunpack.c.h.b16 %v2112
    %v2809 = vunpack.c.l.b16 %v2113
    %v2810 = vunpack.c.h.b16 %v2113
    %v2811 = vunpack.c.l.b16 %v2114
    %v2812 = vunpack.c.h.b16 %v2114
    %v2813 = vunpack.c.l.b16 %v2115
    %v2814 = vunpack.c.h.b16 %v2115
    %v2815 = vunpack.c.l.b16 %v2116
    %v2816 = vunpack.c.h.b16 %v2116
    %v2817 = vunpack.c.l.b16 %v2117
    %v2818 = vunpack.c.h.b16 %v2117
    %v2819 = vunpack.c.l.b16 %v2118
    %v2820 = vunpack.c.h.b16 %v2118
    %v2821 = vunpack.c.l.b16 %v2119
    %v2822 = vunpack.c.h.b16 %v2119
    %v2823 = vunpack.c.l.b16 %v2120
    %v2824 = vunpack.c.h.b16 %v2120
    %v2825 = vunpack.c.l.b16 %v2121
    %v2826 = vunpack.c.h.b16 %v2121
    %v2827 = vunpack.c.l.b16 %v2122
    %v2828 = vunpack.c.h.b16 %v2122
    %v2829 = vunpack.c.l.b16 %v2123
    %v2830 = vunpack.c.h.b16 %v2123
    %v2831 = vunpack.c.l.b16 %v2124
    %v2832 = vunpack.c.h.b16 %v2124
    %v2833 = vunpack.c.l.b16 %v2125
    %v2834 = vunpack.c.h.b16 %v2125
    %v2835 = vunpack.c.l.b16 %v2126
    %v2836 = vunpack.c.h.b16 %v2126
    %v2837 = vunpack.c.l.b16 %v2127
    %v2838 = vunpack.c.h.b16 %v2127
    %v2839 = vunpack.c.l.b16 %v2128
    %v2840 = vunpack.c.h.b16 %v2128
    %v2841 = vunpack.c.l.b16 %v2129
    %v2842 = vunpack.c.h.b16 %v2129
    %v2843 = vunpack.c.l.b16 %v2130
    %v2844 = vunpack.c.h.b16 %v2130
    %v2845 = vunpack.c.l.b16 %v2131
    %v2846 = vunpack.c.h.b16 %v2131
    %v2847 = vunpack.c.l.b16 %v2132
    %v2848 = vunpack.c.h.b16 %v2132
    %v2849 = vunpack.c.l.b16 %v2133
    %v2850 = vunpack.c.h.b16 %v2133
    %v2851 = vunpack.c.l.b16 %v2134
    %v2852 = vunpack.c.h.b16 %v2134
    %v2853 = vunpack.c.l.b16 %v2135
    %v2854 = vunpack.c.h.b16 %v2135
    %v2855 = vunpack.c.l.b16 %v2136
    %v2856 = vunpack.c.h.b16 %v2136
    %v2857 = vpack.c.b16 %v2761, %v2757
    %v2858 = vpack.c.b16 %v2762, %v2758
    %v2859 = vpack.c.b16 %v2763, %v2759
    %v2860 = vpack.c.b16 %v2764, %v2760
    %v2861 = vpack.c.b16 %v2769, %v2765
    %v2862 = vpack.c.b16 %v2770, %v2766
    %v2863 = vpack.c.b16 %v2771, %v2767
    %v2864 = vpack.c.b16 %v2772, %v2768
    %v2865 = vpack.c.b16 %v2777, %v2773
    %v2866 = vpack.c.b16 %v2778, %v2774
    %v2867 = vpack.c.b16 %v2779, %v2775
    %v2868 = vpack.c.b16 %v2780, %v2776
    %v2869 = vpack.c.b16 %v2785, %v2781
    %v2870 = vpack.c.b16 %v2786, %v2782
    %v2871 = vpack.c.b16 %v2787, %v2783
    %v2872 = vpack.c.b16 %v2788, %v2784
    %v2873 = vpack.c.b16 %v2793, %v2789
    %v2874 = vpack.c.b16 %v2794, %v2790
    %v2875 = vpack.c.b16 %v2795, %v2791
    %v2876 = vpack.c.b16 %v2796, %v2792
    %v2877 = vpack.c.b16 %v2801, %v2797
    %v2878 = vpack.c.b16 %v2802, %v2798
    %v2879 = vpack.c.b16 %v2803, %v2799
    %v2880 = vpack.c.b16 %v2804, %v2800
    %v2881 = vpack.c.b16 %v2809, %v2805
    %v2882 = vpack.c.b16 %v2810, %v2806
    %v2883 = vpack.c.b16 %v2811, %v2807
    %v2884 = vpack.c.b16 %v2812, %v2808
    %v2885 = vpack.c.b16 %v2817, %v2813
    %v2886 = vpack.c.b16 %v2818, %v2814
    %v2887 = vpack.c.b16 %v2819, %v2815
    %v2888 = vpack.c.b16 %v2820, %v2816
    %v2889 = vpack.c.b16 %v2825, %v2821
    %v2890 = vpack.c.b16 %v2826, %v2822
    %v2891 = vpack.c.b16 %v2827, %v2823
    %v2892 = vpack.c.b16 %v2828, %v2824
    %v2893 = vpack.c.b16 %v2833, %v2829
    %v2894 = vpack.c.b16 %v2834, %v2830
    %v2895 = vpack.c.b16 %v2835, %v2831
    %v2896 = vpack.c.b16 %v2836, %v2832
    %v2897 = vpack.c.b16 %v2841, %v2837
    %v2898 = vpack.c.b16 %v2842, %v2838
    %v2899 = vpack.c.b16 %v2843, %v2839
    %v2900 = vpack.c.b16 %v2844, %v2840
    %v2901 = vpack.c.b16 %v2849, %v2845
    %v2902 = vpack.c.b16 %v2850, %v2846
    %v2903 = vpack.c.b16 %v2851, %v2847
    %v2904 = vpack.c.b16 %v2852, %v2848
    %v2905 = vpack.c.b16 %v2853, %v2853
    %v2906 = vpack.c.b16 %v2854, %v2854
    %v2907 = vpack.c.b16 %v2855, %v2855
    %v2908 = vpack.c.b16 %v2856, %v2856
    %v2958 = vsel %vm2465, %v2699, 0
    %v2961 = vsel %vm2465, %v2701, 0
    %v2964 = vsel %vm2465, %v2703, 0
    %v2967 = vsel %vm2475, %v2905, 0
    %v2970 = vsel %vm2475, %v2906, 0
    %v2973 = vsel %vm2475, %v2907, 0
    %v2976 = vsel %vm2475, %v2908, 0
    %2978 = vmatpush.bf16.msra.mxu0 %v2885
    %2979 = vmatpush.bf16.msra.mxu0 %v2881
    %2980 = vmatpush.bf16.msra.mxu0 %v2877
    %2981 = vmatpush.bf16.msra.mxu0 %v2873
    %2982 = vmatpush.bf16.msra.mxu0 %v2869
    %2983 = vmatpush.bf16.msra.mxu0 %v2865
    %2984 = vmatpush.bf16.msra.mxu0 %v2861
    %2985 = vmatpush.bf16.msra.mxu0 %v2857
    %2986 = vmatmul.bf16.gmra.mxu0 %v2698
    %v2987 = vpop.f32.mrf.mxu0
    %v2988 = vadd.f32 %v2522, %v2987
    %v2989 = vpop.f32.mrf.mxu0
    %v2990 = vadd.f32 %v2524, %v2989
    %2991 = vmatmul.bf16.gmra.mxu0 %v2700
    %v2992 = vpop.f32.mrf.mxu0
    %v2993 = vadd.f32 %v2527, %v2992
    %v2994 = vpop.f32.mrf.mxu0
    %v2995 = vadd.f32 %v2529, %v2994
    %2996 = vmatmul.bf16.gmra.mxu0 %v2702
    %v2997 = vpop.f32.mrf.mxu0
    %v2998 = vadd.f32 %v2532, %v2997
    %v2999 = vpop.f32.mrf.mxu0
    %v3000 = vadd.f32 %v2534, %v2999
    %3001 = vdwg.mxu0
    %3002 = vmatpush.bf16.msra.mxu0 0
    %3003 = vmatpush.bf16.msra.mxu0 0
    %3004 = vmatpush.bf16.msra.mxu0 0
    %3005 = vmatpush.bf16.msra.mxu0 %v2967
    %3006 = vmatpush.bf16.msra.mxu0 %v2901
    %3007 = vmatpush.bf16.msra.mxu0 %v2897
    %3008 = vmatpush.bf16.msra.mxu0 %v2893
    %3009 = vmatpush.bf16.msra.mxu0 %v2889
    %3010 = vmatmul.bf16.gmra.mxu0 %v2958
    %v3011 = vpop.f32.mrf.mxu0
    %v3012 = vadd.f32 %v2988, %v3011
    %v3013 = vpop.f32.mrf.mxu0
    %v3014 = vadd.f32 %v2990, %v3013
    %3015 = vmatmul.bf16.gmra.mxu0 %v2961
    %v3016 = vpop.f32.mrf.mxu0
    %v3017 = vadd.f32 %v2993, %v3016
    %v3018 = vpop.f32.mrf.mxu0
    %v3019 = vadd.f32 %v2995, %v3018
    %3020 = vmatmul.bf16.gmra.mxu0 %v2964
    %v3021 = vpop.f32.mrf.mxu0
    %v3022 = vadd.f32 %v2998, %v3021
    %v3023 = vpop.f32.mrf.mxu0
    %v3024 = vadd.f32 %v3000, %v3023
    %3025 = vdwg.mxu0
    %3026 = vmatpush.bf16.msra.mxu0 %v2886
    %3027 = vmatpush.bf16.msra.mxu0 %v2882
    %3028 = vmatpush.bf16.msra.mxu0 %v2878
    %3029 = vmatpush.bf16.msra.mxu0 %v2874
    %3030 = vmatpush.bf16.msra.mxu0 %v2870
    %3031 = vmatpush.bf16.msra.mxu0 %v2866
    %3032 = vmatpush.bf16.msra.mxu0 %v2862
    %3033 = vmatpush.bf16.msra.mxu0 %v2858
    %3034 = vmatmul.bf16.gmra.mxu0 %v2698
    %v3035 = vpop.f32.mrf.mxu0
    %v3036 = vadd.f32 %v2570, %v3035
    %v3037 = vpop.f32.mrf.mxu0
    %v3038 = vadd.f32 %v2572, %v3037
    %3039 = vmatmul.bf16.gmra.mxu0 %v2700
    %v3040 = vpop.f32.mrf.mxu0
    %v3041 = vadd.f32 %v2575, %v3040
    %v3042 = vpop.f32.mrf.mxu0
    %v3043 = vadd.f32 %v2577, %v3042
    %3044 = vmatmul.bf16.gmra.mxu0 %v2702
    %v3045 = vpop.f32.mrf.mxu0
    %v3046 = vadd.f32 %v2580, %v3045
    %v3047 = vpop.f32.mrf.mxu0
    %v3048 = vadd.f32 %v2582, %v3047
    %3049 = vdwg.mxu0
    %3050 = vmatpush.bf16.msra.mxu0 0
    %3051 = vmatpush.bf16.msra.mxu0 0
    %3052 = vmatpush.bf16.msra.mxu0 0
    %3053 = vmatpush.bf16.msra.mxu0 %v2970
    %3054 = vmatpush.bf16.msra.mxu0 %v2902
    %3055 = vmatpush.bf16.msra.mxu0 %v2898
    %3056 = vmatpush.bf16.msra.mxu0 %v2894
    %3057 = vmatpush.bf16.msra.mxu0 %v2890
    %3058 = vmatmul.bf16.gmra.mxu0 %v2958
    %v3059 = vpop.f32.mrf.mxu0
    %v3060 = vadd.f32 %v3036, %v3059
    %v3061 = vpop.f32.mrf.mxu0
    %v3062 = vadd.f32 %v3038, %v3061
    %3063 = vmatmul.bf16.gmra.mxu0 %v2961
    %v3064 = vpop.f32.mrf.mxu0
    %v3065 = vadd.f32 %v3041, %v3064
    %v3066 = vpop.f32.mrf.mxu0
    %v3067 = vadd.f32 %v3043, %v3066
    %3068 = vmatmul.bf16.gmra.mxu0 %v2964
    %v3069 = vpop.f32.mrf.mxu0
    %v3070 = vadd.f32 %v3046, %v3069
    %v3071 = vpop.f32.mrf.mxu0
    %v3072 = vadd.f32 %v3048, %v3071
    %3073 = vdwg.mxu0
    %3074 = vmatpush.bf16.msra.mxu0 %v2887
    %3075 = vmatpush.bf16.msra.mxu0 %v2883
    %3076 = vmatpush.bf16.msra.mxu0 %v2879
    %3077 = vmatpush.bf16.msra.mxu0 %v2875
    %3078 = vmatpush.bf16.msra.mxu0 %v2871
    %3079 = vmatpush.bf16.msra.mxu0 %v2867
    %3080 = vmatpush.bf16.msra.mxu0 %v2863
    %3081 = vmatpush.bf16.msra.mxu0 %v2859
    %3082 = vmatmul.bf16.gmra.mxu0 %v2698
    %v3083 = vpop.f32.mrf.mxu0
    %v3084 = vadd.f32 %v2618, %v3083
    %v3085 = vpop.f32.mrf.mxu0
    %v3086 = vadd.f32 %v2620, %v3085
    %3087 = vmatmul.bf16.gmra.mxu0 %v2700
    %v3088 = vpop.f32.mrf.mxu0
    %v3089 = vadd.f32 %v2623, %v3088
    %v3090 = vpop.f32.mrf.mxu0
    %v3091 = vadd.f32 %v2625, %v3090
    %3092 = vmatmul.bf16.gmra.mxu0 %v2702
    %v3093 = vpop.f32.mrf.mxu0
    %v3094 = vadd.f32 %v2628, %v3093
    %v3095 = vpop.f32.mrf.mxu0
    %v3096 = vadd.f32 %v2630, %v3095
    %3097 = vdwg.mxu0
    %3098 = vmatpush.bf16.msra.mxu0 0
    %3099 = vmatpush.bf16.msra.mxu0 0
    %3100 = vmatpush.bf16.msra.mxu0 0
    %3101 = vmatpush.bf16.msra.mxu0 %v2973
    %3102 = vmatpush.bf16.msra.mxu0 %v2903
    %3103 = vmatpush.bf16.msra.mxu0 %v2899
    %3104 = vmatpush.bf16.msra.mxu0 %v2895
    %3105 = vmatpush.bf16.msra.mxu0 %v2891
    %3106 = vmatmul.bf16.gmra.mxu0 %v2958
    %v3107 = vpop.f32.mrf.mxu0
    %v3108 = vadd.f32 %v3084, %v3107
    %v3109 = vpop.f32.mrf.mxu0
    %v3110 = vadd.f32 %v3086, %v3109
    %3111 = vmatmul.bf16.gmra.mxu0 %v2961
    %v3112 = vpop.f32.mrf.mxu0
    %v3113 = vadd.f32 %v3089, %v3112
    %v3114 = vpop.f32.mrf.mxu0
    %v3115 = vadd.f32 %v3091, %v3114
    %3116 = vmatmul.bf16.gmra.mxu0 %v2964
    %v3117 = vpop.f32.mrf.mxu0
    %v3118 = vadd.f32 %v3094, %v3117
    %v3119 = vpop.f32.mrf.mxu0
    %v3120 = vadd.f32 %v3096, %v3119
    %3121 = vdwg.mxu0
    %3122 = vmatpush.bf16.msra.mxu0 %v2888
    %3123 = vmatpush.bf16.msra.mxu0 %v2884
    %3124 = vmatpush.bf16.msra.mxu0 %v2880
    %3125 = vmatpush.bf16.msra.mxu0 %v2876
    %3126 = vmatpush.bf16.msra.mxu0 %v2872
    %3127 = vmatpush.bf16.msra.mxu0 %v2868
    %3128 = vmatpush.bf16.msra.mxu0 %v2864
    %3129 = vmatpush.bf16.msra.mxu0 %v2860
    %3130 = vmatmul.bf16.gmra.mxu0 %v2698
    %v3131 = vpop.f32.mrf.mxu0
    %v3132 = vadd.f32 %v2666, %v3131
    %v3133 = vpop.f32.mrf.mxu0
    %v3134 = vadd.f32 %v2668, %v3133
    %3135 = vmatmul.bf16.gmra.mxu0 %v2700
    %v3136 = vpop.f32.mrf.mxu0
    %v3137 = vadd.f32 %v2671, %v3136
    %v3138 = vpop.f32.mrf.mxu0
    %v3139 = vadd.f32 %v2673, %v3138
    %3140 = vmatmul.bf16.gmra.mxu0 %v2702
    %v3141 = vpop.f32.mrf.mxu0
    %v3142 = vadd.f32 %v2676, %v3141
    %v3143 = vpop.f32.mrf.mxu0
    %v3144 = vadd.f32 %v2678, %v3143
    %3145 = vdwg.mxu0
    %3146 = vmatpush.bf16.msra.mxu0 0
    %3147 = vmatpush.bf16.msra.mxu0 0
    %3148 = vmatpush.bf16.msra.mxu0 0
    %3149 = vmatpush.bf16.msra.mxu0 %v2976
    %3150 = vmatpush.bf16.msra.mxu0 %v2904
    %3151 = vmatpush.bf16.msra.mxu0 %v2900
    %3152 = vmatpush.bf16.msra.mxu0 %v2896
    %3153 = vmatpush.bf16.msra.mxu0 %v2892
    %3154 = vmatmul.bf16.gmra.mxu0 %v2958
    %v3155 = vpop.f32.mrf.mxu0
    %v3156 = vadd.f32 %v3132, %v3155
    %v3157 = vpop.f32.mrf.mxu0
    %v3158 = vadd.f32 %v3134, %v3157
    %3159 = vmatmul.bf16.gmra.mxu0 %v2961
    %v3160 = vpop.f32.mrf.mxu0
    %v3161 = vadd.f32 %v3137, %v3160
    %v3162 = vpop.f32.mrf.mxu0
    %v3163 = vadd.f32 %v3139, %v3162
    %3164 = vmatmul.bf16.gmra.mxu0 %v2964
    %v3165 = vpop.f32.mrf.mxu0
    %v3166 = vadd.f32 %v3142, %v3165
    %v3167 = vpop.f32.mrf.mxu0
    %v3168 = vadd.f32 %v3144, %v3167
    %3169 = vdwg.mxu0
    %s3170 = scalar_lea.vmem %s10, 800
    %v3171 = vld [vmem:[%s3170] sm:$0xff]
    %v3172 = vld [vmem:[%s3170 + $0x8] sm:$0xff]
    %v3173 = vld [vmem:[%s3170 + $0x10] sm:$0xff]
    %v3174 = vld [vmem:[%s3170 + $0x18] sm:$0xff]
    %v3175 = vld [vmem:[%s3170 + $0x20] sm:$0xff]
    %v3176 = vld [vmem:[%s3170 + $0x28] sm:$0xff]
    %v3177 = vld [vmem:[%s3170 + $0x30] sm:$0xff]
    %v3178 = vld [vmem:[%s3170 + $0x38] sm:$0xff]
    %v3179 = vld [vmem:[%s3170 + $0x40] sm:$0xff]
    %v3180 = vld [vmem:[%s3170 + $0x48] sm:$0xff]
    %v3181 = vld [vmem:[%s3170 + $0x50] sm:$0xff]
    %v3182 = vld [vmem:[%s3170 + $0x58] sm:$0xff]
    %v3183 = vld [vmem:[%s3170 + $0x60] sm:$0xff]
    %v3184 = vld [vmem:[%s3170 + $0x68] sm:$0xff]
    %v3185 = vld [vmem:[%s3170 + $0x70] sm:$0xff]
    %v3186 = vld [vmem:[%s3170 + $0x78] sm:$0xff]
    %v3187 = vld [vmem:[%s3170 + $0x80] sm:$0xff]
    %v3188 = vld [vmem:[%s3170 + $0x88] sm:$0xff]
    %v3189 = vld [vmem:[%s3170 + $0x90] sm:$0xff]
    %v3190 = vld [vmem:[%s3170 + $0x98] sm:$0xff]
    %v3191 = vld [vmem:[%s3170 + $0xa0] sm:$0xff]
    %v3192 = vld [vmem:[%s3170 + $0xa8] sm:$0xff]
    %v3193 = vld [vmem:[%s3170 + $0xb0] sm:$0xff]
    %v3194 = vld [vmem:[%s3170 + $0xb8] sm:$0xff]
    %v3195 = vld [vmem:[%s3170 + $0xc0] sm:$0xff]
    %v3196 = vld [vmem:[%s3170 + $0xc8] sm:$0xff]
    %v3197 = vld [vmem:[%s3170 + $0xd0] sm:$0xff]
    %v3198 = vld [vmem:[%s3170 + $0xd8] sm:$0xff]
    %v3199 = vld [vmem:[%s3170 + $0xe0] sm:$0xff]
    %v3200 = vld [vmem:[%s3170 + $0xe8] sm:$0xff]
    %v3201 = vld [vmem:[%s3170 + $0xf0] sm:$0xff]
    %v3202 = vld [vmem:[%s3170 + $0xf8] sm:$0xff]
    %v3203 = vld [vmem:[%s3170 + $0x100] sm:$0xff]
    %v3204 = vld [vmem:[%s3170 + $0x108] sm:$0xff]
    %v3205 = vld [vmem:[%s3170 + $0x110] sm:$0xff]
    %v3206 = vld [vmem:[%s3170 + $0x118] sm:$0xff]
    %v3207 = vld [vmem:[%s3170 + $0x120] sm:$0xff]
    %v3208 = vld [vmem:[%s3170 + $0x128] sm:$0xff]
    %v3209 = vld [vmem:[%s3170 + $0x130] sm:$0xff]
    %v3210 = vld [vmem:[%s3170 + $0x138] sm:$0xff]
    %v3211 = vld [vmem:[%s3170 + $0x140] sm:$0xff]
    %v3212 = vld [vmem:[%s3170 + $0x148] sm:$0xff]
    %v3213 = vld [vmem:[%s3170 + $0x150] sm:$0xff]
    %v3214 = vld [vmem:[%s3170 + $0x158] sm:$0xff]
    %v3215 = vld [vmem:[%s3170 + $0x160] sm:$0xff]
    %v3216 = vld [vmem:[%s3170 + $0x168] sm:$0xff]
    %v3217 = vld [vmem:[%s3170 + $0x170] sm:$0xff]
    %v3218 = vld [vmem:[%s3170 + $0x178] sm:$0xff]
    %v3219 = vld [vmem:[%s3170 + $0x180] sm:$0x77]
    %v3220 = vld [vmem:[%s3170 + $0x188] sm:$0x77]
    %v3227 = vunpack.c.l.b16 %v2081
    %v3228 = vunpack.c.h.b16 %v2081
    %v3229 = vunpack.c.l.b16 %v2082
    %v3230 = vunpack.c.h.b16 %v2082
    %v3231 = vunpack.c.l.b16 %v2083
    %v3232 = vunpack.c.h.b16 %v2083
    %v3233 = vunpack.c.l.b16 %v2084
    %v3234 = vunpack.c.h.b16 %v2084
    %v3235 = vunpack.c.l.b16 %v2085
    %v3236 = vunpack.c.h.b16 %v2085
    %v3237 = vunpack.c.l.b16 %v2086
    %v3238 = vunpack.c.h.b16 %v2086
    %v3239 = vpack.c.b16 %v3229, %v3227
    %v3240 = vpack.c.b16 %v3230, %v3228
    %v3241 = vpack.c.b16 %v3233, %v3231
    %v3242 = vpack.c.b16 %v3234, %v3232
    %v3243 = vpack.c.b16 %v3237, %v3235
    %v3244 = vpack.c.b16 %v3238, %v3236
    %v3298 = vunpack.c.l.b16 %v3171
    %v3299 = vunpack.c.h.b16 %v3171
    %v3300 = vunpack.c.l.b16 %v3172
    %v3301 = vunpack.c.h.b16 %v3172
    %v3302 = vunpack.c.l.b16 %v3173
    %v3303 = vunpack.c.h.b16 %v3173
    %v3304 = vunpack.c.l.b16 %v3174
    %v3305 = vunpack.c.h.b16 %v3174
    %v3306 = vunpack.c.l.b16 %v3175
    %v3307 = vunpack.c.h.b16 %v3175
    %v3308 = vunpack.c.l.b16 %v3176
    %v3309 = vunpack.c.h.b16 %v3176
    %v3310 = vunpack.c.l.b16 %v3177
    %v3311 = vunpack.c.h.b16 %v3177
    %v3312 = vunpack.c.l.b16 %v3178
    %v3313 = vunpack.c.h.b16 %v3178
    %v3314 = vunpack.c.l.b16 %v3179
    %v3315 = vunpack.c.h.b16 %v3179
    %v3316 = vunpack.c.l.b16 %v3180
    %v3317 = vunpack.c.h.b16 %v3180
    %v3318 = vunpack.c.l.b16 %v3181
    %v3319 = vunpack.c.h.b16 %v3181
    %v3320 = vunpack.c.l.b16 %v3182
    %v3321 = vunpack.c.h.b16 %v3182
    %v3322 = vunpack.c.l.b16 %v3183
    %v3323 = vunpack.c.h.b16 %v3183
    %v3324 = vunpack.c.l.b16 %v3184
    %v3325 = vunpack.c.h.b16 %v3184
    %v3326 = vunpack.c.l.b16 %v3185
    %v3327 = vunpack.c.h.b16 %v3185
    %v3328 = vunpack.c.l.b16 %v3186
    %v3329 = vunpack.c.h.b16 %v3186
    %v3330 = vunpack.c.l.b16 %v3187
    %v3331 = vunpack.c.h.b16 %v3187
    %v3332 = vunpack.c.l.b16 %v3188
    %v3333 = vunpack.c.h.b16 %v3188
    %v3334 = vunpack.c.l.b16 %v3189
    %v3335 = vunpack.c.h.b16 %v3189
    %v3336 = vunpack.c.l.b16 %v3190
    %v3337 = vunpack.c.h.b16 %v3190
    %v3338 = vunpack.c.l.b16 %v3191
    %v3339 = vunpack.c.h.b16 %v3191
    %v3340 = vunpack.c.l.b16 %v3192
    %v3341 = vunpack.c.h.b16 %v3192
    %v3342 = vunpack.c.l.b16 %v3193
    %v3343 = vunpack.c.h.b16 %v3193
    %v3344 = vunpack.c.l.b16 %v3194
    %v3345 = vunpack.c.h.b16 %v3194
    %v3346 = vunpack.c.l.b16 %v3195
    %v3347 = vunpack.c.h.b16 %v3195
    %v3348 = vunpack.c.l.b16 %v3196
    %v3349 = vunpack.c.h.b16 %v3196
    %v3350 = vunpack.c.l.b16 %v3197
    %v3351 = vunpack.c.h.b16 %v3197
    %v3352 = vunpack.c.l.b16 %v3198
    %v3353 = vunpack.c.h.b16 %v3198
    %v3354 = vunpack.c.l.b16 %v3199
    %v3355 = vunpack.c.h.b16 %v3199
    %v3356 = vunpack.c.l.b16 %v3200
    %v3357 = vunpack.c.h.b16 %v3200
    %v3358 = vunpack.c.l.b16 %v3201
    %v3359 = vunpack.c.h.b16 %v3201
    %v3360 = vunpack.c.l.b16 %v3202
    %v3361 = vunpack.c.h.b16 %v3202
    %v3362 = vunpack.c.l.b16 %v3203
    %v3363 = vunpack.c.h.b16 %v3203
    %v3364 = vunpack.c.l.b16 %v3204
    %v3365 = vunpack.c.h.b16 %v3204
    %v3366 = vunpack.c.l.b16 %v3205
    %v3367 = vunpack.c.h.b16 %v3205
    %v3368 = vunpack.c.l.b16 %v3206
    %v3369 = vunpack.c.h.b16 %v3206
    %v3370 = vunpack.c.l.b16 %v3207
    %v3371 = vunpack.c.h.b16 %v3207
    %v3372 = vunpack.c.l.b16 %v3208
    %v3373 = vunpack.c.h.b16 %v3208
    %v3374 = vunpack.c.l.b16 %v3209
    %v3375 = vunpack.c.h.b16 %v3209
    %v3376 = vunpack.c.l.b16 %v3210
    %v3377 = vunpack.c.h.b16 %v3210
    %v3378 = vunpack.c.l.b16 %v3211
    %v3379 = vunpack.c.h.b16 %v3211
    %v3380 = vunpack.c.l.b16 %v3212
    %v3381 = vunpack.c.h.b16 %v3212
    %v3382 = vunpack.c.l.b16 %v3213
    %v3383 = vunpack.c.h.b16 %v3213
    %v3384 = vunpack.c.l.b16 %v3214
    %v3385 = vunpack.c.h.b16 %v3214
    %v3386 = vunpack.c.l.b16 %v3215
    %v3387 = vunpack.c.h.b16 %v3215
    %v3388 = vunpack.c.l.b16 %v3216
    %v3389 = vunpack.c.h.b16 %v3216
    %v3390 = vunpack.c.l.b16 %v3217
    %v3391 = vunpack.c.h.b16 %v3217
    %v3392 = vunpack.c.l.b16 %v3218
    %v3393 = vunpack.c.h.b16 %v3218
    %v3394 = vunpack.c.l.b16 %v3219
    %v3395 = vunpack.c.h.b16 %v3219
    %v3396 = vunpack.c.l.b16 %v3220
    %v3397 = vunpack.c.h.b16 %v3220
    %v3398 = vpack.c.b16 %v3302, %v3298
    %v3399 = vpack.c.b16 %v3303, %v3299
    %v3400 = vpack.c.b16 %v3304, %v3300
    %v3401 = vpack.c.b16 %v3305, %v3301
    %v3402 = vpack.c.b16 %v3310, %v3306
    %v3403 = vpack.c.b16 %v3311, %v3307
    %v3404 = vpack.c.b16 %v3312, %v3308
    %v3405 = vpack.c.b16 %v3313, %v3309
    %v3406 = vpack.c.b16 %v3318, %v3314
    %v3407 = vpack.c.b16 %v3319, %v3315
    %v3408 = vpack.c.b16 %v3320, %v3316
    %v3409 = vpack.c.b16 %v3321, %v3317
    %v3410 = vpack.c.b16 %v3326, %v3322
    %v3411 = vpack.c.b16 %v3327, %v3323
    %v3412 = vpack.c.b16 %v3328, %v3324
    %v3413 = vpack.c.b16 %v3329, %v3325
    %v3414 = vpack.c.b16 %v3334, %v3330
    %v3415 = vpack.c.b16 %v3335, %v3331
    %v3416 = vpack.c.b16 %v3336, %v3332
    %v3417 = vpack.c.b16 %v3337, %v3333
    %v3418 = vpack.c.b16 %v3342, %v3338
    %v3419 = vpack.c.b16 %v3343, %v3339
    %v3420 = vpack.c.b16 %v3344, %v3340
    %v3421 = vpack.c.b16 %v3345, %v3341
    %v3422 = vpack.c.b16 %v3350, %v3346
    %v3423 = vpack.c.b16 %v3351, %v3347
    %v3424 = vpack.c.b16 %v3352, %v3348
    %v3425 = vpack.c.b16 %v3353, %v3349
    %v3426 = vpack.c.b16 %v3358, %v3354
    %v3427 = vpack.c.b16 %v3359, %v3355
    %v3428 = vpack.c.b16 %v3360, %v3356
    %v3429 = vpack.c.b16 %v3361, %v3357
    %v3430 = vpack.c.b16 %v3366, %v3362
    %v3431 = vpack.c.b16 %v3367, %v3363
    %v3432 = vpack.c.b16 %v3368, %v3364
    %v3433 = vpack.c.b16 %v3369, %v3365
    %v3434 = vpack.c.b16 %v3374, %v3370
    %v3435 = vpack.c.b16 %v3375, %v3371
    %v3436 = vpack.c.b16 %v3376, %v3372
    %v3437 = vpack.c.b16 %v3377, %v3373
    %v3438 = vpack.c.b16 %v3382, %v3378
    %v3439 = vpack.c.b16 %v3383, %v3379
    %v3440 = vpack.c.b16 %v3384, %v3380
    %v3441 = vpack.c.b16 %v3385, %v3381
    %v3442 = vpack.c.b16 %v3390, %v3386
    %v3443 = vpack.c.b16 %v3391, %v3387
    %v3444 = vpack.c.b16 %v3392, %v3388
    %v3445 = vpack.c.b16 %v3393, %v3389
    %v3446 = vpack.c.b16 %v3394, %v3394
    %v3447 = vpack.c.b16 %v3395, %v3395
    %v3448 = vpack.c.b16 %v3396, %v3396
    %v3449 = vpack.c.b16 %v3397, %v3397
    %v3499 = vsel %vm2465, %v3240, 0
    %v3502 = vsel %vm2465, %v3242, 0
    %v3505 = vsel %vm2465, %v3244, 0
    %v3508 = vsel %vm2475, %v3446, 0
    %v3511 = vsel %vm2475, %v3447, 0
    %v3514 = vsel %vm2475, %v3448, 0
    %v3517 = vsel %vm2475, %v3449, 0
    %3519 = vmatpush.bf16.msra.mxu0 %v3426
    %3520 = vmatpush.bf16.msra.mxu0 %v3422
    %3521 = vmatpush.bf16.msra.mxu0 %v3418
    %3522 = vmatpush.bf16.msra.mxu0 %v3414
    %3523 = vmatpush.bf16.msra.mxu0 %v3410
    %3524 = vmatpush.bf16.msra.mxu0 %v3406
    %3525 = vmatpush.bf16.msra.mxu0 %v3402
    %3526 = vmatpush.bf16.msra.mxu0 %v3398
    %3527 = vmatmul.bf16.gmra.mxu0 %v3239
    %v3528 = vpop.f32.mrf.mxu0
    %v3529 = vadd.f32 0.0, %v3528
    %v3530 = vpop.f32.mrf.mxu0
    %v3531 = vadd.f32 0.0, %v3530
    %3532 = vmatmul.bf16.gmra.mxu0 %v3241
    %v3533 = vpop.f32.mrf.mxu0
    %v3534 = vadd.f32 0.0, %v3533
    %v3535 = vpop.f32.mrf.mxu0
    %v3536 = vadd.f32 0.0, %v3535
    %3537 = vmatmul.bf16.gmra.mxu0 %v3243
    %v3538 = vpop.f32.mrf.mxu0
    %v3539 = vadd.f32 0.0, %v3538
    %v3540 = vpop.f32.mrf.mxu0
    %v3541 = vadd.f32 0.0, %v3540
    %3542 = vdwg.mxu0
    %3543 = vmatpush.bf16.msra.mxu0 0
    %3544 = vmatpush.bf16.msra.mxu0 0
    %3545 = vmatpush.bf16.msra.mxu0 0
    %3546 = vmatpush.bf16.msra.mxu0 %v3508
    %3547 = vmatpush.bf16.msra.mxu0 %v3442
    %3548 = vmatpush.bf16.msra.mxu0 %v3438
    %3549 = vmatpush.bf16.msra.mxu0 %v3434
    %3550 = vmatpush.bf16.msra.mxu0 %v3430
    %3551 = vmatmul.bf16.gmra.mxu0 %v3499
    %v3552 = vpop.f32.mrf.mxu0
    %v3553 = vadd.f32 %v3529, %v3552
    %v3554 = vpop.f32.mrf.mxu0
    %v3555 = vadd.f32 %v3531, %v3554
    %3556 = vmatmul.bf16.gmra.mxu0 %v3502
    %v3557 = vpop.f32.mrf.mxu0
    %v3558 = vadd.f32 %v3534, %v3557
    %v3559 = vpop.f32.mrf.mxu0
    %v3560 = vadd.f32 %v3536, %v3559
    %3561 = vmatmul.bf16.gmra.mxu0 %v3505
    %v3562 = vpop.f32.mrf.mxu0
    %v3563 = vadd.f32 %v3539, %v3562
    %v3564 = vpop.f32.mrf.mxu0
    %v3565 = vadd.f32 %v3541, %v3564
    %3566 = vdwg.mxu0
    %3567 = vmatpush.bf16.msra.mxu0 %v3427
    %3568 = vmatpush.bf16.msra.mxu0 %v3423
    %3569 = vmatpush.bf16.msra.mxu0 %v3419
    %3570 = vmatpush.bf16.msra.mxu0 %v3415
    %3571 = vmatpush.bf16.msra.mxu0 %v3411
    %3572 = vmatpush.bf16.msra.mxu0 %v3407
    %3573 = vmatpush.bf16.msra.mxu0 %v3403
    %3574 = vmatpush.bf16.msra.mxu0 %v3399
    %3575 = vmatmul.bf16.gmra.mxu0 %v3239
    %v3576 = vpop.f32.mrf.mxu0
    %v3577 = vadd.f32 0.0, %v3576
    %v3578 = vpop.f32.mrf.mxu0
    %v3579 = vadd.f32 0.0, %v3578
    %3580 = vmatmul.bf16.gmra.mxu0 %v3241
    %v3581 = vpop.f32.mrf.mxu0
    %v3582 = vadd.f32 0.0, %v3581
    %v3583 = vpop.f32.mrf.mxu0
    %v3584 = vadd.f32 0.0, %v3583
    %3585 = vmatmul.bf16.gmra.mxu0 %v3243
    %v3586 = vpop.f32.mrf.mxu0
    %v3587 = vadd.f32 0.0, %v3586
    %v3588 = vpop.f32.mrf.mxu0
    %v3589 = vadd.f32 0.0, %v3588
    %3590 = vdwg.mxu0
    %3591 = vmatpush.bf16.msra.mxu0 0
    %3592 = vmatpush.bf16.msra.mxu0 0
    %3593 = vmatpush.bf16.msra.mxu0 0
    %3594 = vmatpush.bf16.msra.mxu0 %v3511
    %3595 = vmatpush.bf16.msra.mxu0 %v3443
    %3596 = vmatpush.bf16.msra.mxu0 %v3439
    %3597 = vmatpush.bf16.msra.mxu0 %v3435
    %3598 = vmatpush.bf16.msra.mxu0 %v3431
    %3599 = vmatmul.bf16.gmra.mxu0 %v3499
    %v3600 = vpop.f32.mrf.mxu0
    %v3601 = vadd.f32 %v3577, %v3600
    %v3602 = vpop.f32.mrf.mxu0
    %v3603 = vadd.f32 %v3579, %v3602
    %3604 = vmatmul.bf16.gmra.mxu0 %v3502
    %v3605 = vpop.f32.mrf.mxu0
    %v3606 = vadd.f32 %v3582, %v3605
    %v3607 = vpop.f32.mrf.mxu0
    %v3608 = vadd.f32 %v3584, %v3607
    %3609 = vmatmul.bf16.gmra.mxu0 %v3505
    %v3610 = vpop.f32.mrf.mxu0
    %v3611 = vadd.f32 %v3587, %v3610
    %v3612 = vpop.f32.mrf.mxu0
    %v3613 = vadd.f32 %v3589, %v3612
    %3614 = vdwg.mxu0
    %3615 = vmatpush.bf16.msra.mxu0 %v3428
    %3616 = vmatpush.bf16.msra.mxu0 %v3424
    %3617 = vmatpush.bf16.msra.mxu0 %v3420
    %3618 = vmatpush.bf16.msra.mxu0 %v3416
    %3619 = vmatpush.bf16.msra.mxu0 %v3412
    %3620 = vmatpush.bf16.msra.mxu0 %v3408
    %3621 = vmatpush.bf16.msra.mxu0 %v3404
    %3622 = vmatpush.bf16.msra.mxu0 %v3400
    %3623 = vmatmul.bf16.gmra.mxu0 %v3239
    %v3624 = vpop.f32.mrf.mxu0
    %v3625 = vadd.f32 0.0, %v3624
    %v3626 = vpop.f32.mrf.mxu0
    %v3627 = vadd.f32 0.0, %v3626
    %3628 = vmatmul.bf16.gmra.mxu0 %v3241
    %v3629 = vpop.f32.mrf.mxu0
    %v3630 = vadd.f32 0.0, %v3629
    %v3631 = vpop.f32.mrf.mxu0
    %v3632 = vadd.f32 0.0, %v3631
    %3633 = vmatmul.bf16.gmra.mxu0 %v3243
    %v3634 = vpop.f32.mrf.mxu0
    %v3635 = vadd.f32 0.0, %v3634
    %v3636 = vpop.f32.mrf.mxu0
    %v3637 = vadd.f32 0.0, %v3636
    %3638 = vdwg.mxu0
    %3639 = vmatpush.bf16.msra.mxu0 0
    %3640 = vmatpush.bf16.msra.mxu0 0
    %3641 = vmatpush.bf16.msra.mxu0 0
    %3642 = vmatpush.bf16.msra.mxu0 %v3514
    %3643 = vmatpush.bf16.msra.mxu0 %v3444
    %3644 = vmatpush.bf16.msra.mxu0 %v3440
    %3645 = vmatpush.bf16.msra.mxu0 %v3436
    %3646 = vmatpush.bf16.msra.mxu0 %v3432
    %3647 = vmatmul.bf16.gmra.mxu0 %v3499
    %v3648 = vpop.f32.mrf.mxu0
    %v3649 = vadd.f32 %v3625, %v3648
    %v3650 = vpop.f32.mrf.mxu0
    %v3651 = vadd.f32 %v3627, %v3650
    %3652 = vmatmul.bf16.gmra.mxu0 %v3502
    %v3653 = vpop.f32.mrf.mxu0
    %v3654 = vadd.f32 %v3630, %v3653
    %v3655 = vpop.f32.mrf.mxu0
    %v3656 = vadd.f32 %v3632, %v3655
    %3657 = vmatmul.bf16.gmra.mxu0 %v3505
    %v3658 = vpop.f32.mrf.mxu0
    %v3659 = vadd.f32 %v3635, %v3658
    %v3660 = vpop.f32.mrf.mxu0
    %v3661 = vadd.f32 %v3637, %v3660
    %3662 = vdwg.mxu0
    %3663 = vmatpush.bf16.msra.mxu0 %v3429
    %3664 = vmatpush.bf16.msra.mxu0 %v3425
    %3665 = vmatpush.bf16.msra.mxu0 %v3421
    %3666 = vmatpush.bf16.msra.mxu0 %v3417
    %3667 = vmatpush.bf16.msra.mxu0 %v3413
    %3668 = vmatpush.bf16.msra.mxu0 %v3409
    %3669 = vmatpush.bf16.msra.mxu0 %v3405
    %3670 = vmatpush.bf16.msra.mxu0 %v3401
    %3671 = vmatmul.bf16.gmra.mxu0 %v3239
    %v3672 = vpop.f32.mrf.mxu0
    %v3673 = vadd.f32 0.0, %v3672
    %v3674 = vpop.f32.mrf.mxu0
    %v3675 = vadd.f32 0.0, %v3674
    %3676 = vmatmul.bf16.gmra.mxu0 %v3241
    %v3677 = vpop.f32.mrf.mxu0
    %v3678 = vadd.f32 0.0, %v3677
    %v3679 = vpop.f32.mrf.mxu0
    %v3680 = vadd.f32 0.0, %v3679
    %3681 = vmatmul.bf16.gmra.mxu0 %v3243
    %v3682 = vpop.f32.mrf.mxu0
    %v3683 = vadd.f32 0.0, %v3682
    %v3684 = vpop.f32.mrf.mxu0
    %v3685 = vadd.f32 0.0, %v3684
    %3686 = vdwg.mxu0
    %3687 = vmatpush.bf16.msra.mxu0 0
    %3688 = vmatpush.bf16.msra.mxu0 0
    %3689 = vmatpush.bf16.msra.mxu0 0
    %3690 = vmatpush.bf16.msra.mxu0 %v3517
    %3691 = vmatpush.bf16.msra.mxu0 %v3445
    %3692 = vmatpush.bf16.msra.mxu0 %v3441
    %3693 = vmatpush.bf16.msra.mxu0 %v3437
    %3694 = vmatpush.bf16.msra.mxu0 %v3433
    %3695 = vmatmul.bf16.gmra.mxu0 %v3499
    %v3696 = vpop.f32.mrf.mxu0
    %v3697 = vadd.f32 %v3673, %v3696
    %v3698 = vpop.f32.mrf.mxu0
    %v3699 = vadd.f32 %v3675, %v3698
    %3700 = vmatmul.bf16.gmra.mxu0 %v3502
    %v3701 = vpop.f32.mrf.mxu0
    %v3702 = vadd.f32 %v3678, %v3701
    %v3703 = vpop.f32.mrf.mxu0
    %v3704 = vadd.f32 %v3680, %v3703
    %3705 = vmatmul.bf16.gmra.mxu0 %v3505
    %v3706 = vpop.f32.mrf.mxu0
    %v3707 = vadd.f32 %v3683, %v3706
    %v3708 = vpop.f32.mrf.mxu0
    %v3709 = vadd.f32 %v3685, %v3708
    %3710 = vdwg.mxu0
    %v3711 = vadd.f32 %v3012, %v3553
    %v3712 = vadd.f32 %v3060, %v3601
    %v3713 = vadd.f32 %v3108, %v3649
    %v3714 = vadd.f32 %v3156, %v3697
    %v3715 = vadd.f32 %v3014, %v3555
    %v3716 = vadd.f32 %v3062, %v3603
    %v3717 = vadd.f32 %v3110, %v3651
    %v3718 = vadd.f32 %v3158, %v3699
    %v3719 = vadd.f32 %v3017, %v3558
    %v3720 = vadd.f32 %v3065, %v3606
    %v3721 = vadd.f32 %v3113, %v3654
    %v3722 = vadd.f32 %v3161, %v3702
    %v3723 = vadd.f32 %v3019, %v3560
    %v3724 = vadd.f32 %v3067, %v3608
    %v3725 = vadd.f32 %v3115, %v3656
    %v3726 = vadd.f32 %v3163, %v3704
    %v3727 = vadd.f32 %v3022, %v3563
    %v3728 = vadd.f32 %v3070, %v3611
    %v3729 = vadd.f32 %v3118, %v3659
    %v3730 = vadd.f32 %v3166, %v3707
    %v3731 = vadd.f32 %v3024, %v3565
    %v3732 = vadd.f32 %v3072, %v3613
    %v3733 = vadd.f32 %v3120, %v3661
    %v3734 = vadd.f32 %v3168, %v3709
    %v3735 = vld [vmem:[%s12] sm:$0xff]
    %v3736 = vld [vmem:[%s12 + $0x8] sm:$0xff]
    %v3737 = vld [vmem:[%s12 + $0x10] sm:$0xff]
    %v3738 = vld [vmem:[%s12 + $0x18] sm:$0xff]
    %v3739 = vld [vmem:[%s12 + $0x20] sm:$0xff]
    %v3740 = vld [vmem:[%s12 + $0x28] sm:$0xff]
    %3742 = vset.pattern.permute.xlu0 0
    %3743 = vperm.xlu0 %3742, %v3735
    %v3744 = vpop.permute.xlu0 %3743
    %3747 = vset.pattern.permute.xlu0 0
    %3748 = vperm.xlu0 %3747, %v3736
    %v3749 = vpop.permute.xlu0 %3748
    %3752 = vset.pattern.permute.xlu0 0
    %3753 = vperm.xlu0 %3752, %v3737
    %v3754 = vpop.permute.xlu0 %3753
    %3757 = vset.pattern.permute.xlu0 0
    %3758 = vperm.xlu0 %3757, %v3738
    %v3759 = vpop.permute.xlu0 %3758
    %3762 = vset.pattern.permute.xlu0 0
    %3763 = vperm.xlu0 %3762, %v3739
    %v3764 = vpop.permute.xlu0 %3763
    %3767 = vset.pattern.permute.xlu0 0
    %3768 = vperm.xlu0 %3767, %v3740
    %v3769 = vpop.permute.xlu0 %3768
    %v3771 = vadd.f32 %v3711, %v3744
    %v3772 = vadd.f32 %v3712, %v3744
    %v3773 = vadd.f32 %v3713, %v3744
    %v3774 = vadd.f32 %v3714, %v3744
    %v3775 = vadd.f32 %v3715, %v3749
    %v3776 = vadd.f32 %v3716, %v3749
    %v3777 = vadd.f32 %v3717, %v3749
    %v3778 = vadd.f32 %v3718, %v3749
    %v3779 = vadd.f32 %v3719, %v3754
    %v3780 = vadd.f32 %v3720, %v3754
    %v3781 = vadd.f32 %v3721, %v3754
    %v3782 = vadd.f32 %v3722, %v3754
    %v3783 = vadd.f32 %v3723, %v3759
    %v3784 = vadd.f32 %v3724, %v3759
    %v3785 = vadd.f32 %v3725, %v3759
    %v3786 = vadd.f32 %v3726, %v3759
    %v3787 = vadd.f32 %v3727, %v3764
    %v3788 = vadd.f32 %v3728, %v3764
    %v3789 = vadd.f32 %v3729, %v3764
    %v3790 = vadd.f32 %v3730, %v3764
    %v3791 = vadd.f32 %v3731, %v3769
    %v3792 = vadd.f32 %v3732, %v3769
    %v3793 = vadd.f32 %v3733, %v3769
    %v3794 = vadd.f32 %v3734, %v3769
    %3795 = vst [vmem:[#allocation3] sm:$0xff] %v3771
    %3796 = vst [vmem:[#allocation3 + $0x8] sm:$0xff] %v3772
    %3797 = vst [vmem:[#allocation3 + $0x10] sm:$0xff] %v3773
    %vm3798 = vcmask 64512
    %3799 = vst.msk [vmem:[#allocation3 + $0x18] sm:$0xff] %vm3798, %v3774
    %3800 = vst [vmem:[#allocation3 + $0x20] sm:$0xff] %v3775
    %3801 = vst [vmem:[#allocation3 + $0x28] sm:$0xff] %v3776
    %3802 = vst [vmem:[#allocation3 + $0x30] sm:$0xff] %v3777
    %3803 = vst.msk [vmem:[#allocation3 + $0x38] sm:$0xff] %vm3798, %v3778
    %3804 = vst [vmem:[#allocation3 + $0x40] sm:$0xff] %v3779
    %3805 = vst [vmem:[#allocation3 + $0x48] sm:$0xff] %v3780
    %3806 = vst [vmem:[#allocation3 + $0x50] sm:$0xff] %v3781
    %3807 = vst.msk [vmem:[#allocation3 + $0x58] sm:$0xff] %vm3798, %v3782
    %3808 = vst [vmem:[#allocation3 + $0x60] sm:$0xff] %v3783
    %3809 = vst [vmem:[#allocation3 + $0x68] sm:$0xff] %v3784
    %3810 = vst [vmem:[#allocation3 + $0x70] sm:$0xff] %v3785
    %3811 = vst.msk [vmem:[#allocation3 + $0x78] sm:$0xff] %vm3798, %v3786
    %3812 = vst [vmem:[#allocation3 + $0x80] sm:$0xff] %v3787
    %3813 = vst [vmem:[#allocation3 + $0x88] sm:$0xff] %v3788
    %3814 = vst [vmem:[#allocation3 + $0x90] sm:$0xff] %v3789
    %3815 = vst.msk [vmem:[#allocation3 + $0x98] sm:$0xff] %vm3798, %v3790
    %3816 = vst [vmem:[#allocation3 + $0xa0] sm:$0xff] %v3791
    %3817 = vst [vmem:[#allocation3 + $0xa8] sm:$0xff] %v3792
    %3818 = vst [vmem:[#allocation3 + $0xb0] sm:$0xff] %v3793
    %3819 = vst.msk [vmem:[#allocation3 + $0xb8] sm:$0xff] %vm3798, %v3794
    %v3820 = vld [vmem:[#allocation3] sm:$0xff]
    %v3821 = vld [vmem:[#allocation3 + $0x8] sm:$0xff]
    %v3822 = vld [vmem:[#allocation3 + $0x20] sm:$0xff]
    %v3823 = vld [vmem:[#allocation3 + $0x28] sm:$0xff]
    %v3824 = vld [vmem:[#allocation3 + $0x40] sm:$0xff]
    %v3825 = vld [vmem:[#allocation3 + $0x48] sm:$0xff]
    %v3826 = vld [vmem:[#allocation3 + $0x60] sm:$0xff]
    %v3827 = vld [vmem:[#allocation3 + $0x68] sm:$0xff]
    %v3828 = vld [vmem:[#allocation3 + $0x80] sm:$0xff]
    %v3829 = vld [vmem:[#allocation3 + $0x88] sm:$0xff]
    %v3830 = vld [vmem:[#allocation3 + $0xa0] sm:$0xff]
    %v3831 = vld [vmem:[#allocation3 + $0xa8] sm:$0xff]
    %3832 = vst [vmem:[#allocation4] sm:$0xff] %v3820
    %vm3833 = vcmask 556032
    %3834 = vst.msk [vmem:[#allocation4 + $0x8] sm:$0xff] %vm3833, %v3821
    %3835 = vst [vmem:[#allocation4 + $0x10] sm:$0xff] %v3822
    %3836 = vst.msk [vmem:[#allocation4 + $0x18] sm:$0xff] %vm3833, %v3823
    %3837 = vst [vmem:[#allocation4 + $0x20] sm:$0xff] %v3824
    %3838 = vst.msk [vmem:[#allocation4 + $0x28] sm:$0xff] %vm3833, %v3825
    %3839 = vst [vmem:[#allocation4 + $0x30] sm:$0xff] %v3826
    %3840 = vst.msk [vmem:[#allocation4 + $0x38] sm:$0xff] %vm3833, %v3827
    %3841 = vst [vmem:[#allocation4 + $0x40] sm:$0xff] %v3828
    %3842 = vst.msk [vmem:[#allocation4 + $0x48] sm:$0xff] %vm3833, %v3829
    %3843 = vst [vmem:[#allocation4 + $0x50] sm:$0xff] %v3830
    %3844 = vst.msk [vmem:[#allocation4 + $0x58] sm:$0xff] %vm3833, %v3831
    %v3845 = vld [vmem:[#allocation3 + $0x8] sm:$0xff]
    %v3846 = vld [vmem:[#allocation3 + $0x10] sm:$0xff]
    %v3847 = vld [vmem:[#allocation3 + $0x18] sm:$0xff]
    %v3848 = vld [vmem:[#allocation3 + $0x28] sm:$0xff]
    %v3849 = vld [vmem:[#allocation3 + $0x30] sm:$0xff]
    %v3850 = vld [vmem:[#allocation3 + $0x38] sm:$0xff]
    %v3851 = vld [vmem:[#allocation3 + $0x48] sm:$0xff]
    %v3852 = vld [vmem:[#allocation3 + $0x50] sm:$0xff]
    %v3853 = vld [vmem:[#allocation3 + $0x58] sm:$0xff]
    %v3854 = vld [vmem:[#allocation3 + $0x68] sm:$0xff]
    %v3855 = vld [vmem:[#allocation3 + $0x70] sm:$0xff]
    %v3856 = vld [vmem:[#allocation3 + $0x78] sm:$0xff]
    %v3857 = vld [vmem:[#allocation3 + $0x88] sm:$0xff]
    %v3858 = vld [vmem:[#allocation3 + $0x90] sm:$0xff]
    %v3859 = vld [vmem:[#allocation3 + $0x98] sm:$0xff]
    %v3860 = vld [vmem:[#allocation3 + $0xa8] sm:$0xff]
    %v3861 = vld [vmem:[#allocation3 + $0xb0] sm:$0xff]
    %v3862 = vld [vmem:[#allocation3 + $0xb8] sm:$0xff]
    %3881 = vrot.lane.b32.xlu0 %v3845, 60
    %v3882 = vpop.permute.xlu0 %3881
    %3883 = vrot.lane.b32.xlu0 %v3846, 60
    %v3884 = vpop.permute.xlu0 %3883
    %3885 = vrot.lane.b32.xlu0 %v3847, 60
    %v3886 = vpop.permute.xlu0 %3885
    %3887 = vrot.lane.b32.xlu0 %v3848, 60
    %v3888 = vpop.permute.xlu0 %3887
    %3889 = vrot.lane.b32.xlu0 %v3849, 60
    %v3890 = vpop.permute.xlu0 %3889
    %3891 = vrot.lane.b32.xlu0 %v3850, 60
    %v3892 = vpop.permute.xlu0 %3891
    %3893 = vrot.lane.b32.xlu0 %v3851, 60
    %v3894 = vpop.permute.xlu0 %3893
    %3895 = vrot.lane.b32.xlu0 %v3852, 60
    %v3896 = vpop.permute.xlu0 %3895
    %3897 = vrot.lane.b32.xlu0 %v3853, 60
    %v3898 = vpop.permute.xlu0 %3897
    %3899 = vrot.lane.b32.xlu0 %v3854, 60
    %v3900 = vpop.permute.xlu0 %3899
    %3901 = vrot.lane.b32.xlu0 %v3855, 60
    %v3902 = vpop.permute.xlu0 %3901
    %3903 = vrot.lane.b32.xlu0 %v3856, 60
    %v3904 = vpop.permute.xlu0 %3903
    %3905 = vrot.lane.b32.xlu0 %v3857, 60
    %v3906 = vpop.permute.xlu0 %3905
    %3907 = vrot.lane.b32.xlu0 %v3858, 60
    %v3908 = vpop.permute.xlu0 %3907
    %3909 = vrot.lane.b32.xlu0 %v3859, 60
    %v3910 = vpop.permute.xlu0 %3909
    %3911 = vrot.lane.b32.xlu0 %v3860, 60
    %v3912 = vpop.permute.xlu0 %3911
    %3913 = vrot.lane.b32.xlu0 %v3861, 60
    %v3914 = vpop.permute.xlu0 %3913
    %3915 = vrot.lane.b32.xlu0 %v3862, 60
    %v3916 = vpop.permute.xlu0 %3915
    %vm3917 = vcmask 490496
    %v3918 = vsel %vm3917, %v3882, %v3884
    %v3919 = vsel %vm3917, %v3884, %v3886
    %v3920 = vsel %vm3917, %v3888, %v3890
    %v3921 = vsel %vm3917, %v3890, %v3892
    %v3922 = vsel %vm3917, %v3894, %v3896
    %v3923 = vsel %vm3917, %v3896, %v3898
    %v3924 = vsel %vm3917, %v3900, %v3902
    %v3925 = vsel %vm3917, %v3902, %v3904
    %v3926 = vsel %vm3917, %v3906, %v3908
    %v3927 = vsel %vm3917, %v3908, %v3910
    %v3928 = vsel %vm3917, %v3912, %v3914
    %v3929 = vsel %vm3917, %v3914, %v3916
    %s3942 = scalar_lea.vmem [#allocation4], 96
    %3943 = vst [vmem:[%s3942] sm:$0xff] %v3918
    %3944 = vst.msk [vmem:[%s3942 + $0x8] sm:$0xff] %vm3833, %v3919
    %3945 = vst [vmem:[%s3942 + $0x10] sm:$0xff] %v3920
    %3946 = vst.msk [vmem:[%s3942 + $0x18] sm:$0xff] %vm3833, %v3921
    %3947 = vst [vmem:[%s3942 + $0x20] sm:$0xff] %v3922
    %3948 = vst.msk [vmem:[%s3942 + $0x28] sm:$0xff] %vm3833, %v3923
    %3949 = vst [vmem:[%s3942 + $0x30] sm:$0xff] %v3924
    %3950 = vst.msk [vmem:[%s3942 + $0x38] sm:$0xff] %vm3833, %v3925
    %3951 = vst [vmem:[%s3942 + $0x40] sm:$0xff] %v3926
    %3952 = vst.msk [vmem:[%s3942 + $0x48] sm:$0xff] %vm3833, %v3927
    %3953 = vst [vmem:[%s3942 + $0x50] sm:$0xff] %v3928
    %3954 = vst.msk [vmem:[%s3942 + $0x58] sm:$0xff] %vm3833, %v3929
    // Predicated region
    $region54: #{conv1d_decoder.1} parent=1 // pred_check
      _
    $region55: #{conv1d_decoder.1} parent=1 // pred_check_branch
      %3956 = sbr.rel (0) target = $region57
    $region56: #{conv1d_decoder.1} parent=1 // pred_region
      %3958 = vsyncadd [#allocation5], 0
      %s3959 = sshll.u32 [#allocation4], 4
      %s3960 = int_to_ptr.vmem [resolvable:$true] %s3959
      %s3961 = sshll.u32 %s13, 4
      %s3962 = int_to_ptr.hbm [resolvable:$true] %s3961
      %3967 = dma.vmem_to_hbm [thread:$0]  %s3960, 3072, %s3962, [#allocation5], 256, 256, 16
    $region57: #{conv1d_decoder.1} parent=1 // pred_fallthru
      _
    // Predicated region
    $region58: #{conv1d_decoder.1} parent=1 // pred_check
      _
    $region59: #{conv1d_decoder.1} parent=1 // pred_check_branch
      %3969 = sbr.rel (0) target = $region61
    $region60: #{conv1d_decoder.1} parent=1 // pred_region
      %3971 = dma.done [#allocation5], 3072
    $region61: #{conv1d_decoder.1} parent=1 // pred_fallthru
      _
    %3972 = vsyncpa [#allocation5], 1

</llo_original>
